<compile_context>
chip_gen: v7x
topology: tpu7x:2x2x1
jax: 0.10.0
libtpu: 0.0.40
codegen_flags: <defaults>
</compile_context>

<pallas_src>
import jax
import jax.numpy as jnp
from jax.experimental import pallas as pl
from jax.experimental.pallas import tpu as pltpu

# ----------------------------- configuration --------------------------------
HIDDEN_NF = 32          # hidden_nf
N_LAYERS = 2            # n_layers
EDGE_FEAT_NF = 2        # edge_feat_nf  (1 distance + 1 extra edge attribute)
NORM_CONSTANT = 1.0     # norm_constant
NORM_FACTOR = 100.0     # normalization_factor, aggregation_method='sum'
COORDS_RANGE = 15.0     # coords_range (tanh=False -> unused in forward math)

N_NODES = 8
# fully connected graph without self loops
_ROWS = [i for i in range(N_NODES) for j in range(N_NODES) if i != j]
_COLS = [j for i in range(N_NODES) for j in range(N_NODES) if i != j]
N_EDGES = len(_ROWS)    # 56

# small-parameter slab row layout (per GCL layer, then the coord-update block)
_SM_PER_LAYER = 8       # [We1r, We1d, be1, be2, Wa^T, bn1, bn2, ba(bcast)]
_SM_UPD = 5             # [Wc1r, Wc1d, bc1, bc2, Wc3^T]


def _sigmoid(v):
    return 1.0 / (1.0 + jnp.exp(-v))


def _silu(v):
    return v * _sigmoid(v)


# ------------------------------- the kernel ---------------------------------
def _eqblock_kernel(oh_rc_ref, sc_row_ref, w64_ref, w32_ref, wsm_ref,
                    h_ref, xnl_ref, eed_ref, h_out_ref, x_out_ref):
    H = HIDDEN_NF
    E = N_EDGES

    def mm(a, b):
        return jnp.dot(a, b, preferred_element_type=jnp.float32)

    def srow(r):                              # [1, H] row of the small slab
        return wsm_ref[pl.ds(r, 1), :]

    def sigm(v):                              # exp + reciprocal -> EUP slot
        return pl.reciprocal(1.0 + jnp.exp(-v), approx=False)

    def silu(v):
        return v * sigm(v)

    h = h_ref[...]                            # [N, H]
    xnl = xnl_ref[...]                        # [N, 5] = [x(3) | nmask | lmask]
    x = xnl[:, 0:3]
    nmask = xnl[:, 3:4]
    lmask = xnl[:, 4:5]
    eed = eed_ref[...]                        # [E, 2] = [edge_attr | edge_mask]
    ea = eed[:, 0:1]
    emask = eed[:, 1:2]
    oh_rc = oh_rc_ref[...]                    # [2E, N]  one_hot(row) over one_hot(col)
    sc_row = sc_row_ref[...]                  # [N, E]   one_hot(row).T (scatter-add)

    # ---- coord2diff (single fused gather of x[row], x[col]) ----------------
    x_rc = mm(oh_rc, x)                       # [2E, 3]
    coord_diff = x_rc[:E] - x_rc[E:]          # [E, 3]
    radial = jnp.sum(coord_diff * coord_diff, axis=1, keepdims=True)   # [E, 1]
    inv_nrm = pl.reciprocal(jnp.sqrt(radial + 1e-8) + NORM_CONSTANT,
                            approx=False)
    coord_diff = coord_diff * inv_nrm
    inv_nf = 1.0 / NORM_FACTOR

    # ---- n_layers x GCL -----------------------------------------------------
    for l in range(N_LAYERS):
        off = _SM_PER_LAYER * l
        g = mm(oh_rc, h)                                       # [2E, H] gather
        e_in = jnp.concatenate([g[:E], g[E:]], axis=1)         # [E, 2H]
        z = (mm(e_in, w64_ref[2 * l])
             + radial * srow(off + 0) + ea * srow(off + 1) + srow(off + 2))
        m = silu(z)
        m = silu(mm(m, w32_ref[2 * l]) + srow(off + 3))        # mij  [E, H]
        # attention: sigmoid(mij @ Wa + ba)  (lane reduce, keeps MXU chain short)
        att = sigm(jnp.sum(m * srow(off + 4), axis=1, keepdims=True)
                   + srow(off + 7)[:, 0:1])
        ef = m * att * emask                                   # edge features
        agg = mm(sc_row, ef) * inv_nf                          # [N, H] segment sum
        n_in = jnp.concatenate([h, agg], axis=1)               # [N, 2H]
        nz = silu(mm(n_in, w64_ref[2 * l + 1]) + srow(off + 5))
        nz = mm(nz, w32_ref[2 * l + 1]) + srow(off + 6)
        h = (h + nz) * nmask                                   # residual + mask

    # ---- EquivariantUpdate --------------------------------------------------
    U = _SM_PER_LAYER * N_LAYERS
    g = mm(oh_rc, h)
    c_in = jnp.concatenate([g[:E], g[E:]], axis=1)
    c = silu(mm(c_in, w64_ref[2 * N_LAYERS])
             + radial * srow(U + 0) + ea * srow(U + 1) + srow(U + 2))
    c = silu(mm(c, w32_ref[2 * N_LAYERS]) + srow(U + 3))
    phi = jnp.sum(c * srow(U + 4), axis=1, keepdims=True)      # [E, 1]  (no bias)
    trans = coord_diff * phi * emask                           # [E, 3]
    aggx = mm(sc_row, trans) * inv_nf                          # [N, 3]
    x_out_ref[...] = (x + aggx * lmask) * nmask
    h_out_ref[...] = h * nmask


# ------------------------- one-time static setup ------------------------------
def build_graph_constants(row, col, num_nodes):
    oh_row = jax.nn.one_hot(row, num_nodes, dtype=jnp.float32)   # [E, N]
    oh_col = jax.nn.one_hot(col, num_nodes, dtype=jnp.float32)   # [E, N]
    oh_rc = jnp.concatenate([oh_row, oh_col], axis=0)            # [2E, N]
    sc_row = oh_row.T                                            # [N, E]
    return oh_rc, sc_row


def pack_params(p, H, L):
    """Pack all weights into three VMEM slabs: [2L+1,2H,H], [2L+1,H,H], [K,H]."""
    w64, w32, sm = [], [], []
    for l in range(L):
        w64.append(p['We1'][l, :2 * H, :])       # edge-MLP layer-1 [2H, H]
        w64.append(p['Wn1'][l])                  # node-MLP layer-1 [2H, H]
        w32.append(p['We2'][l])
        w32.append(p['Wn2'][l])
        sm += [p['We1'][l, 2 * H, :],            # radial column
               p['We1'][l, 2 * H + 1, :],        # extra-edge-attr column
               p['be1'][l], p['be2'][l],
               p['Wa'][l, :, 0],
               p['bn1'][l], p['bn2'][l],
               jnp.full((H,), p['ba'][l, 0])]
    w64.append(p['Wc1'][:2 * H, :])
    w32.append(p['Wc2'])
    sm += [p['Wc1'][2 * H, :], p['Wc1'][2 * H + 1, :],
           p['bc1'], p['bc2'], p['Wc3'][:, 0]]
    return jnp.stack(w64), jnp.stack(w32), jnp.stack(sm)


# ------------------------------ JAX wrapper ----------------------------------
def equivariant_block_pallas(h, xnl, eed, oh_rc, sc_row, w64, w32, wsm):
    B, N, H = h.shape
    E = eed.shape[1]

    def shared(arr):
        nd = arr.ndim
        return pl.BlockSpec(arr.shape, lambda b, nd=nd: (0,) * nd)

    def per_graph(*rest):
        nr = len(rest)
        return pl.BlockSpec((None,) + rest, lambda b, nr=nr: (b,) + (0,) * nr)

    in_specs = [shared(oh_rc), shared(sc_row),
                shared(w64), shared(w32), shared(wsm),
                per_graph(N, H), per_graph(N, 5), per_graph(E, 2)]
    out_specs = (per_graph(N, H), per_graph(N, 3))
    out_shape = (jax.ShapeDtypeStruct((B, N, H), jnp.float32),
                 jax.ShapeDtypeStruct((B, N, 3), jnp.float32))

    return pl.pallas_call(
        _eqblock_kernel,
        grid=(B,),
        out_shape=out_shape,
        in_specs=in_specs,
        out_specs=out_specs,
        compiler_params=pltpu.CompilerParams(
            dimension_semantics=("parallel",)),
    )(oh_rc, sc_row, w64, w32, wsm, h, xnl, eed)


# --------------------------- pure-JAX reference -------------------------------
def reference_forward(h, x, ea_in, row, col, node_mask, edge_mask, linker_mask, p):
    N, H = h.shape
    coord_diff = x[row] - x[col]
    radial = jnp.sum(coord_diff ** 2, axis=1, keepdims=True)
    nrm = jnp.sqrt(radial + 1e-8)
    coord_diff = coord_diff / (nrm + NORM_CONSTANT)
    edge_attr = jnp.concatenate([radial, ea_in], axis=1)

    for l in range(N_LAYERS):
        inp = jnp.concatenate([h[row], h[col], edge_attr], axis=1)
        m = _silu(inp @ p['We1'][l] + p['be1'][l])
        m = _silu(m @ p['We2'][l] + p['be2'][l])
        att = _sigmoid(m @ p['Wa'][l] + p['ba'][l])
        ef = m * att * edge_mask
        agg = jnp.zeros((N, H), jnp.float32).at[row].add(ef) / NORM_FACTOR
        node_in = jnp.concatenate([h, agg], axis=1)
        nz = _silu(node_in @ p['Wn1'][l] + p['bn1'][l])
        nz = nz @ p['Wn2'][l] + p['bn2'][l]
        h = (h + nz) * node_mask

    inp = jnp.concatenate([h[row], h[col], edge_attr], axis=1)
    c = _silu(inp @ p['Wc1'] + p['bc1'])
    c = _silu(c @ p['Wc2'] + p['bc2'])
    phi = c @ p['Wc3']
    trans = coord_diff * phi * edge_mask
    aggx = jnp.zeros((N, 3), jnp.float32).at[row].add(trans) / NORM_FACTOR
    aggx = aggx * linker_mask
    x_new = (x + aggx) * node_mask
    h = h * node_mask
    return h, x_new


# ------------------------- deterministic parameters ---------------------------
def init_params(key, H, L, edge_feat_nf):
    ks = iter(jax.random.split(key, 32))
    input_edge = 2 * H + edge_feat_nf

    def lin_w(k, fan_in, fan_out, scale=None):
        s = scale if scale is not None else 1.0 / jnp.sqrt(float(fan_in))
        return (jax.random.normal(k, (fan_in, fan_out), jnp.float32) * s)

    p = {
        'We1': jnp.stack([lin_w(next(ks), input_edge, H) for _ in range(L)]),
        'be1': jnp.stack([jax.random.normal(next(ks), (H,), jnp.float32) * 0.01
                          for _ in range(L)]),
        'We2': jnp.stack([lin_w(next(ks), H, H) for _ in range(L)]),
        'be2': jnp.stack([jax.random.normal(next(ks), (H,), jnp.float32) * 0.01
                          for _ in range(L)]),
        'Wa': jnp.stack([lin_w(next(ks), H, 1) for _ in range(L)]),
        'ba': jnp.stack([jax.random.normal(next(ks), (1,), jnp.float32) * 0.01
                         for _ in range(L)]),
        'Wn1': jnp.stack([lin_w(next(ks), 2 * H, H) for _ in range(L)]),
        'bn1': jnp.stack([jax.random.normal(next(ks), (H,), jnp.float32) * 0.01
                          for _ in range(L)]),
        'Wn2': jnp.stack([lin_w(next(ks), H, H) for _ in range(L)]),
        'bn2': jnp.stack([jax.random.normal(next(ks), (H,), jnp.float32) * 0.01
                          for _ in range(L)]),
        'Wc1': lin_w(next(ks), input_edge, H),
        'bc1': jax.random.normal(next(ks), (H,), jnp.float32) * 0.01,
        'Wc2': lin_w(next(ks), H, H),
        'bc2': jax.random.normal(next(ks), (H,), jnp.float32) * 0.01,
        # final layer: xavier_uniform with gain=0.001, bias=False
        'Wc3': lin_w(next(ks), H, 1, scale=0.001),
    }
    return p


# ---------------------------------- main --------------------------------------
if __name__ == "__main__":
    key = jax.random.PRNGKey(0)
    k_h, k_x, k_e, k_p = jax.random.split(key, 4)

    B, N, H, E = 4, N_NODES, HIDDEN_NF, N_EDGES
    row = jnp.asarray(_ROWS, dtype=jnp.int32)
    col = jnp.asarray(_COLS, dtype=jnp.int32)

    h = jax.random.normal(k_h, (B, N, H), jnp.float32)
    x = jax.random.normal(k_x, (B, N, 3), jnp.float32)
    ea_in = jax.random.normal(k_e, (B, E, 1), jnp.float32)   # extra edge attribute

    # deterministic masks, varying per graph
    node_mask = jnp.ones((B, N, 1), jnp.float32)
    for b in range(B):
        node_mask = node_mask.at[b, N - 1 - (b % 2), 0].set(0.0)
    edge_mask = node_mask[:, row, :] * node_mask[:, col, :]    # [B, E, 1]
    linker_mask = jnp.concatenate(
        [jnp.ones((B, N // 2, 1), jnp.float32),
         jnp.zeros((B, N - N // 2, 1), jnp.float32)], axis=1)

    params = init_params(k_p, H, N_LAYERS, EDGE_FEAT_NF)

    # one-time static setup (hoisted out of the per-call path)
    oh_rc, sc_row = build_graph_constants(row, col, N)
    w64, w32, wsm = pack_params(params, H, N_LAYERS)
    xnl = jnp.concatenate([x, node_mask, linker_mask], axis=2)  # [B, N, 5]
    eed = jnp.concatenate([ea_in, edge_mask], axis=2)           # [B, E, 2]

    h_out, x_out = equivariant_block_pallas(
        h, xnl, eed, oh_rc, sc_row, w64, w32, wsm)
    jax.block_until_ready((h_out, x_out))

    # per-graph reference check
    for b in range(B):
        h_ref, x_ref = reference_forward(
            h[b], x[b], ea_in[b], row, col,
            node_mask[b], edge_mask[b], linker_mask[b], params)
        assert jnp.allclose(h_out[b], h_ref, rtol=1e-4, atol=1e-5), \
            f"h mismatch graph {b}"
        assert jnp.allclose(x_out[b], x_ref, rtol=1e-4, atol=1e-5), \
            f"x mismatch graph {b}"

    print("KERNEL_OK")
</pallas_src>

<mosaic_0001>
module attributes {stable_mosaic.version = 11 : i64} {
  func.func @_eqblock_kernel(%arg0: i32, %arg1: memref<112x8xf32, #tpu.memory_space<vmem>>, %arg2: memref<8x56xf32, #tpu.memory_space<vmem>>, %arg3: memref<5x64x32xf32, #tpu.memory_space<vmem>>, %arg4: memref<5x32x32xf32, #tpu.memory_space<vmem>>, %arg5: memref<21x32xf32, #tpu.memory_space<vmem>>, %arg6: memref<1x8x32xf32, #tpu.memory_space<vmem>>, %arg7: memref<1x8x5xf32, #tpu.memory_space<vmem>>, %arg8: memref<1x56x2xf32, #tpu.memory_space<vmem>>, %arg9: memref<1x8x32xf32, #tpu.memory_space<vmem>>, %arg10: memref<1x8x3xf32, #tpu.memory_space<vmem>>) attributes {dimension_semantics = [#tpu.dimension_semantics<parallel>], iteration_bounds = array<i64: 4>, scalar_prefetch = 0 : i64, scratch_operands = 0 : i64, tpu.core_type = #tpu.core_type<tc>, window_params = [{pipeline_mode = #tpu.pipeline_mode<synchronous>, transform_indices = @transform_0, window_bounds = array<i64: 112, 8>}, {pipeline_mode = #tpu.pipeline_mode<synchronous>, transform_indices = @transform_1, window_bounds = array<i64: 8, 56>}, {pipeline_mode = #tpu.pipeline_mode<synchronous>, transform_indices = @transform_2, window_bounds = array<i64: 5, 64, 32>}, {pipeline_mode = #tpu.pipeline_mode<synchronous>, transform_indices = @transform_3, window_bounds = array<i64: 5, 32, 32>}, {pipeline_mode = #tpu.pipeline_mode<synchronous>, transform_indices = @transform_4, window_bounds = array<i64: 21, 32>}, {transform_indices = @transform_5, window_bounds = array<i64: 1, 8, 32>}, {transform_indices = @transform_6, window_bounds = array<i64: 1, 8, 5>}, {transform_indices = @transform_7, window_bounds = array<i64: 1, 56, 2>}, {transform_indices = @transform_8, window_bounds = array<i64: 1, 8, 32>}, {transform_indices = @transform_9, window_bounds = array<i64: 1, 8, 3>}]} {
    %c0 = arith.constant 0 : index
    %c0_0 = arith.constant 0 : index
    %c0_1 = arith.constant 0 : index
    %0 = vector.load %arg6[%c0, %c0_0, %c0_1] : memref<1x8x32xf32, #tpu.memory_space<vmem>>, vector<1x8x32xf32>
    %1 = vector.shape_cast %0 : vector<1x8x32xf32> to vector<8x32xf32>
    %c0_2 = arith.constant 0 : index
    %c0_3 = arith.constant 0 : index
    %c0_4 = arith.constant 0 : index
    %2 = vector.load %arg7[%c0_2, %c0_3, %c0_4] : memref<1x8x5xf32, #tpu.memory_space<vmem>>, vector<1x8x5xf32>
    %3 = vector.shape_cast %2 : vector<1x8x5xf32> to vector<8x5xf32>
    %4 = vector.extract_strided_slice %3 {offsets = [0, 0], sizes = [8, 3], strides = [1, 1]} : vector<8x5xf32> to vector<8x3xf32>
    %5 = vector.extract_strided_slice %3 {offsets = [0, 3], sizes = [8, 1], strides = [1, 1]} : vector<8x5xf32> to vector<8x1xf32>
    %6 = vector.extract_strided_slice %3 {offsets = [0, 4], sizes = [8, 1], strides = [1, 1]} : vector<8x5xf32> to vector<8x1xf32>
    %c0_5 = arith.constant 0 : index
    %c0_6 = arith.constant 0 : index
    %c0_7 = arith.constant 0 : index
    %7 = vector.load %arg8[%c0_5, %c0_6, %c0_7] : memref<1x56x2xf32, #tpu.memory_space<vmem>>, vector<1x56x2xf32>
    %8 = vector.shape_cast %7 : vector<1x56x2xf32> to vector<56x2xf32>
    %9 = vector.extract_strided_slice %8 {offsets = [0, 0], sizes = [56, 1], strides = [1, 1]} : vector<56x2xf32> to vector<56x1xf32>
    %10 = vector.extract_strided_slice %8 {offsets = [0, 1], sizes = [56, 1], strides = [1, 1]} : vector<56x2xf32> to vector<56x1xf32>
    %c0_8 = arith.constant 0 : index
    %c0_9 = arith.constant 0 : index
    %11 = vector.load %arg1[%c0_8, %c0_9] : memref<112x8xf32, #tpu.memory_space<vmem>>, vector<112x8xf32>
    %c0_10 = arith.constant 0 : index
    %c0_11 = arith.constant 0 : index
    %12 = vector.load %arg2[%c0_10, %c0_11] : memref<8x56xf32, #tpu.memory_space<vmem>>, vector<8x56xf32>
    %cst = arith.constant dense<0.000000e+00> : vector<112x3xf32>
    %13 = tpu.matmul %11, %4, %cst {dimension_numbers = #tpu.dot_dimension_numbers<[1], [0], [0], [1], [0, 0, 1, 1], [], []>} : vector<112x8xf32>, vector<8x3xf32>, vector<112x3xf32> -> vector<112x3xf32>
    %14 = vector.extract_strided_slice %13 {offsets = [0, 0], sizes = [56, 3], strides = [1, 1]} : vector<112x3xf32> to vector<56x3xf32>
    %15 = vector.extract_strided_slice %13 {offsets = [56, 0], sizes = [56, 3], strides = [1, 1]} : vector<112x3xf32> to vector<56x3xf32>
    %16 = arith.subf %14, %15 : vector<56x3xf32>
    %17 = arith.mulf %16, %16 : vector<56x3xf32>
    %cst_12 = arith.constant dense<0.000000e+00> : vector<56xf32>
    %18 = vector.multi_reduction <add>, %17, %cst_12 [1] : vector<56x3xf32> to vector<56xf32>
    %19 = vector.shape_cast %18 : vector<56xf32> to vector<56x1xf32>
    %cst_13 = arith.constant 9.99999993E-9 : f32
    %20 = vector.broadcast %cst_13 : f32 to vector<56x1xf32>
    %21 = arith.addf %19, %20 : vector<56x1xf32>
    %22 = math.sqrt %21 : vector<56x1xf32>
    %cst_14 = arith.constant 1.000000e+00 : f32
    %23 = vector.broadcast %cst_14 : f32 to vector<56x1xf32>
    %24 = arith.addf %22, %23 : vector<56x1xf32>
    %25 = tpu.reciprocal %24 : vector<56x1xf32> -> vector<56x1xf32>
    %26 = vector.broadcast %25 : vector<56x1xf32> to vector<56x3xf32>
    %27 = arith.mulf %16, %26 : vector<56x3xf32>
    %cst_15 = arith.constant dense<0.000000e+00> : vector<112x32xf32>
    %28 = tpu.matmul %11, %1, %cst_15 {dimension_numbers = #tpu.dot_dimension_numbers<[1], [0], [0], [1], [0, 0, 1, 1], [], []>} : vector<112x8xf32>, vector<8x32xf32>, vector<112x32xf32> -> vector<112x32xf32>
    %29 = vector.extract_strided_slice %28 {offsets = [0, 0], sizes = [56, 32], strides = [1, 1]} : vector<112x32xf32> to vector<56x32xf32>
    %30 = vector.extract_strided_slice %28 {offsets = [56, 0], sizes = [56, 32], strides = [1, 1]} : vector<112x32xf32> to vector<56x32xf32>
    %31 = tpu.concatenate %29, %30 in 1 : vector<56x32xf32>, vector<56x32xf32> -> vector<56x64xf32>
    %c0_16 = arith.constant 0 : index
    %c0_17 = arith.constant 0 : index
    %c0_18 = arith.constant 0 : index
    %32 = vector.load %arg3[%c0_16, %c0_17, %c0_18] : memref<5x64x32xf32, #tpu.memory_space<vmem>>, vector<1x64x32xf32>
    %33 = vector.shape_cast %32 : vector<1x64x32xf32> to vector<64x32xf32>
    %cst_19 = arith.constant dense<0.000000e+00> : vector<56x32xf32>
    %34 = tpu.matmul %31, %33, %cst_19 {dimension_numbers = #tpu.dot_dimension_numbers<[1], [0], [0], [1], [0, 0, 1, 1], [], []>} : vector<56x64xf32>, vector<64x32xf32>, vector<56x32xf32> -> vector<56x32xf32>
    %c0_20 = arith.constant 0 : index
    %c0_21 = arith.constant 0 : index
    %35 = vector.load %arg5[%c0_20, %c0_21] : memref<21x32xf32, #tpu.memory_space<vmem>>, vector<1x32xf32>
    %36 = vector.broadcast %19 : vector<56x1xf32> to vector<56x32xf32>
    %37 = vector.broadcast %35 : vector<1x32xf32> to vector<56x32xf32>
    %38 = arith.mulf %36, %37 : vector<56x32xf32>
    %39 = arith.addf %34, %38 : vector<56x32xf32>
    %c1 = arith.constant 1 : index
    %c0_22 = arith.constant 0 : index
    %40 = vector.load %arg5[%c1, %c0_22] : memref<21x32xf32, #tpu.memory_space<vmem>>, vector<1x32xf32>
    %41 = vector.broadcast %9 : vector<56x1xf32> to vector<56x32xf32>
    %42 = vector.broadcast %40 : vector<1x32xf32> to vector<56x32xf32>
    %43 = arith.mulf %41, %42 : vector<56x32xf32>
    %44 = arith.addf %39, %43 : vector<56x32xf32>
    %c2 = arith.constant 2 : index
    %c0_23 = arith.constant 0 : index
    %45 = vector.load %arg5[%c2, %c0_23] : memref<21x32xf32, #tpu.memory_space<vmem>>, vector<1x32xf32>
    %46 = vector.broadcast %45 : vector<1x32xf32> to vector<56x32xf32>
    %47 = arith.addf %44, %46 : vector<56x32xf32>
    %cst_24 = arith.constant 0.000000e+00 : f32
    %48 = vector.broadcast %cst_24 : f32 to vector<56x32xf32>
    %49 = arith.subf %48, %47 : vector<56x32xf32>
    %50 = math.exp %49 : vector<56x32xf32>
    %cst_25 = arith.constant 1.000000e+00 : f32
    %51 = vector.broadcast %cst_25 : f32 to vector<56x32xf32>
    %52 = arith.addf %51, %50 : vector<56x32xf32>
    %53 = tpu.reciprocal %52 : vector<56x32xf32> -> vector<56x32xf32>
    %54 = arith.mulf %47, %53 : vector<56x32xf32>
    %c0_26 = arith.constant 0 : index
    %c0_27 = arith.constant 0 : index
    %c0_28 = arith.constant 0 : index
    %55 = vector.load %arg4[%c0_26, %c0_27, %c0_28] : memref<5x32x32xf32, #tpu.memory_space<vmem>>, vector<1x32x32xf32>
    %56 = vector.shape_cast %55 : vector<1x32x32xf32> to vector<32x32xf32>
    %cst_29 = arith.constant dense<0.000000e+00> : vector<56x32xf32>
    %57 = tpu.matmul %54, %56, %cst_29 {dimension_numbers = #tpu.dot_dimension_numbers<[1], [0], [0], [1], [0, 0, 1, 1], [], []>} : vector<56x32xf32>, vector<32x32xf32>, vector<56x32xf32> -> vector<56x32xf32>
    %c3 = arith.constant 3 : index
    %c0_30 = arith.constant 0 : index
    %58 = vector.load %arg5[%c3, %c0_30] : memref<21x32xf32, #tpu.memory_space<vmem>>, vector<1x32xf32>
    %59 = vector.broadcast %58 : vector<1x32xf32> to vector<56x32xf32>
    %60 = arith.addf %57, %59 : vector<56x32xf32>
    %cst_31 = arith.constant 0.000000e+00 : f32
    %61 = vector.broadcast %cst_31 : f32 to vector<56x32xf32>
    %62 = arith.subf %61, %60 : vector<56x32xf32>
    %63 = math.exp %62 : vector<56x32xf32>
    %cst_32 = arith.constant 1.000000e+00 : f32
    %64 = vector.broadcast %cst_32 : f32 to vector<56x32xf32>
    %65 = arith.addf %64, %63 : vector<56x32xf32>
    %66 = tpu.reciprocal %65 : vector<56x32xf32> -> vector<56x32xf32>
    %67 = arith.mulf %60, %66 : vector<56x32xf32>
    %c4 = arith.constant 4 : index
    %c0_33 = arith.constant 0 : index
    %68 = vector.load %arg5[%c4, %c0_33] : memref<21x32xf32, #tpu.memory_space<vmem>>, vector<1x32xf32>
    %69 = vector.broadcast %68 : vector<1x32xf32> to vector<56x32xf32>
    %70 = arith.mulf %67, %69 : vector<56x32xf32>
    %cst_34 = arith.constant dense<0.000000e+00> : vector<56xf32>
    %71 = vector.multi_reduction <add>, %70, %cst_34 [1] : vector<56x32xf32> to vector<56xf32>
    %72 = vector.shape_cast %71 : vector<56xf32> to vector<56x1xf32>
    %c7 = arith.constant 7 : index
    %c0_35 = arith.constant 0 : index
    %73 = vector.load %arg5[%c7, %c0_35] : memref<21x32xf32, #tpu.memory_space<vmem>>, vector<1x32xf32>
    %74 = vector.extract_strided_slice %73 {offsets = [0, 0], sizes = [1, 1], strides = [1, 1]} : vector<1x32xf32> to vector<1x1xf32>
    %75 = vector.broadcast %74 : vector<1x1xf32> to vector<56x1xf32>
    %76 = arith.addf %72, %75 : vector<56x1xf32>
    %cst_36 = arith.constant 0.000000e+00 : f32
    %77 = vector.broadcast %cst_36 : f32 to vector<56x1xf32>
    %78 = arith.subf %77, %76 : vector<56x1xf32>
    %79 = math.exp %78 : vector<56x1xf32>
    %cst_37 = arith.constant 1.000000e+00 : f32
    %80 = vector.broadcast %cst_37 : f32 to vector<56x1xf32>
    %81 = arith.addf %80, %79 : vector<56x1xf32>
    %82 = tpu.reciprocal %81 : vector<56x1xf32> -> vector<56x1xf32>
    %83 = vector.broadcast %82 : vector<56x1xf32> to vector<56x32xf32>
    %84 = arith.mulf %67, %83 : vector<56x32xf32>
    %85 = vector.broadcast %10 : vector<56x1xf32> to vector<56x32xf32>
    %86 = arith.mulf %84, %85 : vector<56x32xf32>
    %cst_38 = arith.constant dense<0.000000e+00> : vector<8x32xf32>
    %87 = tpu.matmul %12, %86, %cst_38 {dimension_numbers = #tpu.dot_dimension_numbers<[1], [0], [0], [1], [0, 0, 1, 1], [], []>} : vector<8x56xf32>, vector<56x32xf32>, vector<8x32xf32> -> vector<8x32xf32>
    %cst_39 = arith.constant 0.00999999977 : f32
    %88 = vector.broadcast %cst_39 : f32 to vector<8x32xf32>
    %89 = arith.mulf %87, %88 : vector<8x32xf32>
    %90 = tpu.concatenate %1, %89 in 1 : vector<8x32xf32>, vector<8x32xf32> -> vector<8x64xf32>
    %c1_40 = arith.constant 1 : index
    %c0_41 = arith.constant 0 : index
    %c0_42 = arith.constant 0 : index
    %91 = vector.load %arg3[%c1_40, %c0_41, %c0_42] : memref<5x64x32xf32, #tpu.memory_space<vmem>>, vector<1x64x32xf32>
    %92 = vector.shape_cast %91 : vector<1x64x32xf32> to vector<64x32xf32>
    %cst_43 = arith.constant dense<0.000000e+00> : vector<8x32xf32>
    %93 = tpu.matmul %90, %92, %cst_43 {dimension_numbers = #tpu.dot_dimension_numbers<[1], [0], [0], [1], [0, 0, 1, 1], [], []>} : vector<8x64xf32>, vector<64x32xf32>, vector<8x32xf32> -> vector<8x32xf32>
    %c5 = arith.constant 5 : index
    %c0_44 = arith.constant 0 : index
    %94 = vector.load %arg5[%c5, %c0_44] : memref<21x32xf32, #tpu.memory_space<vmem>>, vector<1x32xf32>
    %95 = vector.broadcast %94 : vector<1x32xf32> to vector<8x32xf32>
    %96 = arith.addf %93, %95 : vector<8x32xf32>
    %cst_45 = arith.constant 0.000000e+00 : f32
    %97 = vector.broadcast %cst_45 : f32 to vector<8x32xf32>
    %98 = arith.subf %97, %96 : vector<8x32xf32>
    %99 = math.exp %98 : vector<8x32xf32>
    %cst_46 = arith.constant 1.000000e+00 : f32
    %100 = vector.broadcast %cst_46 : f32 to vector<8x32xf32>
    %101 = arith.addf %100, %99 : vector<8x32xf32>
    %102 = tpu.reciprocal %101 : vector<8x32xf32> -> vector<8x32xf32>
    %103 = arith.mulf %96, %102 : vector<8x32xf32>
    %c1_47 = arith.constant 1 : index
    %c0_48 = arith.constant 0 : index
    %c0_49 = arith.constant 0 : index
    %104 = vector.load %arg4[%c1_47, %c0_48, %c0_49] : memref<5x32x32xf32, #tpu.memory_space<vmem>>, vector<1x32x32xf32>
    %105 = vector.shape_cast %104 : vector<1x32x32xf32> to vector<32x32xf32>
    %cst_50 = arith.constant dense<0.000000e+00> : vector<8x32xf32>
    %106 = tpu.matmul %103, %105, %cst_50 {dimension_numbers = #tpu.dot_dimension_numbers<[1], [0], [0], [1], [0, 0, 1, 1], [], []>} : vector<8x32xf32>, vector<32x32xf32>, vector<8x32xf32> -> vector<8x32xf32>
    %c6 = arith.constant 6 : index
    %c0_51 = arith.constant 0 : index
    %107 = vector.load %arg5[%c6, %c0_51] : memref<21x32xf32, #tpu.memory_space<vmem>>, vector<1x32xf32>
    %108 = vector.broadcast %107 : vector<1x32xf32> to vector<8x32xf32>
    %109 = arith.addf %106, %108 : vector<8x32xf32>
    %110 = arith.addf %1, %109 : vector<8x32xf32>
    %111 = vector.broadcast %5 : vector<8x1xf32> to vector<8x32xf32>
    %112 = arith.mulf %110, %111 : vector<8x32xf32>
    %cst_52 = arith.constant dense<0.000000e+00> : vector<112x32xf32>
    %113 = tpu.matmul %11, %112, %cst_52 {dimension_numbers = #tpu.dot_dimension_numbers<[1], [0], [0], [1], [0, 0, 1, 1], [], []>} : vector<112x8xf32>, vector<8x32xf32>, vector<112x32xf32> -> vector<112x32xf32>
    %114 = vector.extract_strided_slice %113 {offsets = [0, 0], sizes = [56, 32], strides = [1, 1]} : vector<112x32xf32> to vector<56x32xf32>
    %115 = vector.extract_strided_slice %113 {offsets = [56, 0], sizes = [56, 32], strides = [1, 1]} : vector<112x32xf32> to vector<56x32xf32>
    %116 = tpu.concatenate %114, %115 in 1 : vector<56x32xf32>, vector<56x32xf32> -> vector<56x64xf32>
    %c2_53 = arith.constant 2 : index
    %c0_54 = arith.constant 0 : index
    %c0_55 = arith.constant 0 : index
    %117 = vector.load %arg3[%c2_53, %c0_54, %c0_55] : memref<5x64x32xf32, #tpu.memory_space<vmem>>, vector<1x64x32xf32>
    %118 = vector.shape_cast %117 : vector<1x64x32xf32> to vector<64x32xf32>
    %cst_56 = arith.constant dense<0.000000e+00> : vector<56x32xf32>
    %119 = tpu.matmul %116, %118, %cst_56 {dimension_numbers = #tpu.dot_dimension_numbers<[1], [0], [0], [1], [0, 0, 1, 1], [], []>} : vector<56x64xf32>, vector<64x32xf32>, vector<56x32xf32> -> vector<56x32xf32>
    %c8 = arith.constant 8 : index
    %c0_57 = arith.constant 0 : index
    %120 = vector.load %arg5[%c8, %c0_57] : memref<21x32xf32, #tpu.memory_space<vmem>>, vector<1x32xf32>
    %121 = vector.broadcast %19 : vector<56x1xf32> to vector<56x32xf32>
    %122 = vector.broadcast %120 : vector<1x32xf32> to vector<56x32xf32>
    %123 = arith.mulf %121, %122 : vector<56x32xf32>
    %124 = arith.addf %119, %123 : vector<56x32xf32>
    %c9 = arith.constant 9 : index
    %c0_58 = arith.constant 0 : index
    %125 = vector.load %arg5[%c9, %c0_58] : memref<21x32xf32, #tpu.memory_space<vmem>>, vector<1x32xf32>
    %126 = vector.broadcast %9 : vector<56x1xf32> to vector<56x32xf32>
    %127 = vector.broadcast %125 : vector<1x32xf32> to vector<56x32xf32>
    %128 = arith.mulf %126, %127 : vector<56x32xf32>
    %129 = arith.addf %124, %128 : vector<56x32xf32>
    %c10 = arith.constant 10 : index
    %c0_59 = arith.constant 0 : index
    %130 = vector.load %arg5[%c10, %c0_59] : memref<21x32xf32, #tpu.memory_space<vmem>>, vector<1x32xf32>
    %131 = vector.broadcast %130 : vector<1x32xf32> to vector<56x32xf32>
    %132 = arith.addf %129, %131 : vector<56x32xf32>
    %cst_60 = arith.constant 0.000000e+00 : f32
    %133 = vector.broadcast %cst_60 : f32 to vector<56x32xf32>
    %134 = arith.subf %133, %132 : vector<56x32xf32>
    %135 = math.exp %134 : vector<56x32xf32>
    %cst_61 = arith.constant 1.000000e+00 : f32
    %136 = vector.broadcast %cst_61 : f32 to vector<56x32xf32>
    %137 = arith.addf %136, %135 : vector<56x32xf32>
    %138 = tpu.reciprocal %137 : vector<56x32xf32> -> vector<56x32xf32>
    %139 = arith.mulf %132, %138 : vector<56x32xf32>
    %c2_62 = arith.constant 2 : index
    %c0_63 = arith.constant 0 : index
    %c0_64 = arith.constant 0 : index
    %140 = vector.load %arg4[%c2_62, %c0_63, %c0_64] : memref<5x32x32xf32, #tpu.memory_space<vmem>>, vector<1x32x32xf32>
    %141 = vector.shape_cast %140 : vector<1x32x32xf32> to vector<32x32xf32>
    %cst_65 = arith.constant dense<0.000000e+00> : vector<56x32xf32>
    %142 = tpu.matmul %139, %141, %cst_65 {dimension_numbers = #tpu.dot_dimension_numbers<[1], [0], [0], [1], [0, 0, 1, 1], [], []>} : vector<56x32xf32>, vector<32x32xf32>, vector<56x32xf32> -> vector<56x32xf32>
    %c11 = arith.constant 11 : index
    %c0_66 = arith.constant 0 : index
    %143 = vector.load %arg5[%c11, %c0_66] : memref<21x32xf32, #tpu.memory_space<vmem>>, vector<1x32xf32>
    %144 = vector.broadcast %143 : vector<1x32xf32> to vector<56x32xf32>
    %145 = arith.addf %142, %144 : vector<56x32xf32>
    %cst_67 = arith.constant 0.000000e+00 : f32
    %146 = vector.broadcast %cst_67 : f32 to vector<56x32xf32>
    %147 = arith.subf %146, %145 : vector<56x32xf32>
    %148 = math.exp %147 : vector<56x32xf32>
    %cst_68 = arith.constant 1.000000e+00 : f32
    %149 = vector.broadcast %cst_68 : f32 to vector<56x32xf32>
    %150 = arith.addf %149, %148 : vector<56x32xf32>
    %151 = tpu.reciprocal %150 : vector<56x32xf32> -> vector<56x32xf32>
    %152 = arith.mulf %145, %151 : vector<56x32xf32>
    %c12 = arith.constant 12 : index
    %c0_69 = arith.constant 0 : index
    %153 = vector.load %arg5[%c12, %c0_69] : memref<21x32xf32, #tpu.memory_space<vmem>>, vector<1x32xf32>
    %154 = vector.broadcast %153 : vector<1x32xf32> to vector<56x32xf32>
    %155 = arith.mulf %152, %154 : vector<56x32xf32>
    %cst_70 = arith.constant dense<0.000000e+00> : vector<56xf32>
    %156 = vector.multi_reduction <add>, %155, %cst_70 [1] : vector<56x32xf32> to vector<56xf32>
    %157 = vector.shape_cast %156 : vector<56xf32> to vector<56x1xf32>
    %c15 = arith.constant 15 : index
    %c0_71 = arith.constant 0 : index
    %158 = vector.load %arg5[%c15, %c0_71] : memref<21x32xf32, #tpu.memory_space<vmem>>, vector<1x32xf32>
    %159 = vector.extract_strided_slice %158 {offsets = [0, 0], sizes = [1, 1], strides = [1, 1]} : vector<1x32xf32> to vector<1x1xf32>
    %160 = vector.broadcast %159 : vector<1x1xf32> to vector<56x1xf32>
    %161 = arith.addf %157, %160 : vector<56x1xf32>
    %cst_72 = arith.constant 0.000000e+00 : f32
    %162 = vector.broadcast %cst_72 : f32 to vector<56x1xf32>
    %163 = arith.subf %162, %161 : vector<56x1xf32>
    %164 = math.exp %163 : vector<56x1xf32>
    %cst_73 = arith.constant 1.000000e+00 : f32
    %165 = vector.broadcast %cst_73 : f32 to vector<56x1xf32>
    %166 = arith.addf %165, %164 : vector<56x1xf32>
    %167 = tpu.reciprocal %166 : vector<56x1xf32> -> vector<56x1xf32>
    %168 = vector.broadcast %167 : vector<56x1xf32> to vector<56x32xf32>
    %169 = arith.mulf %152, %168 : vector<56x32xf32>
    %170 = vector.broadcast %10 : vector<56x1xf32> to vector<56x32xf32>
    %171 = arith.mulf %169, %170 : vector<56x32xf32>
    %cst_74 = arith.constant dense<0.000000e+00> : vector<8x32xf32>
    %172 = tpu.matmul %12, %171, %cst_74 {dimension_numbers = #tpu.dot_dimension_numbers<[1], [0], [0], [1], [0, 0, 1, 1], [], []>} : vector<8x56xf32>, vector<56x32xf32>, vector<8x32xf32> -> vector<8x32xf32>
    %cst_75 = arith.constant 0.00999999977 : f32
    %173 = vector.broadcast %cst_75 : f32 to vector<8x32xf32>
    %174 = arith.mulf %172, %173 : vector<8x32xf32>
    %175 = tpu.concatenate %112, %174 in 1 : vector<8x32xf32>, vector<8x32xf32> -> vector<8x64xf32>
    %c3_76 = arith.constant 3 : index
    %c0_77 = arith.constant 0 : index
    %c0_78 = arith.constant 0 : index
    %176 = vector.load %arg3[%c3_76, %c0_77, %c0_78] : memref<5x64x32xf32, #tpu.memory_space<vmem>>, vector<1x64x32xf32>
    %177 = vector.shape_cast %176 : vector<1x64x32xf32> to vector<64x32xf32>
    %cst_79 = arith.constant dense<0.000000e+00> : vector<8x32xf32>
    %178 = tpu.matmul %175, %177, %cst_79 {dimension_numbers = #tpu.dot_dimension_numbers<[1], [0], [0], [1], [0, 0, 1, 1], [], []>} : vector<8x64xf32>, vector<64x32xf32>, vector<8x32xf32> -> vector<8x32xf32>
    %c13 = arith.constant 13 : index
    %c0_80 = arith.constant 0 : index
    %179 = vector.load %arg5[%c13, %c0_80] : memref<21x32xf32, #tpu.memory_space<vmem>>, vector<1x32xf32>
    %180 = vector.broadcast %179 : vector<1x32xf32> to vector<8x32xf32>
    %181 = arith.addf %178, %180 : vector<8x32xf32>
    %cst_81 = arith.constant 0.000000e+00 : f32
    %182 = vector.broadcast %cst_81 : f32 to vector<8x32xf32>
    %183 = arith.subf %182, %181 : vector<8x32xf32>
    %184 = math.exp %183 : vector<8x32xf32>
    %cst_82 = arith.constant 1.000000e+00 : f32
    %185 = vector.broadcast %cst_82 : f32 to vector<8x32xf32>
    %186 = arith.addf %185, %184 : vector<8x32xf32>
    %187 = tpu.reciprocal %186 : vector<8x32xf32> -> vector<8x32xf32>
    %188 = arith.mulf %181, %187 : vector<8x32xf32>
    %c3_83 = arith.constant 3 : index
    %c0_84 = arith.constant 0 : index
    %c0_85 = arith.constant 0 : index
    %189 = vector.load %arg4[%c3_83, %c0_84, %c0_85] : memref<5x32x32xf32, #tpu.memory_space<vmem>>, vector<1x32x32xf32>
    %190 = vector.shape_cast %189 : vector<1x32x32xf32> to vector<32x32xf32>
    %cst_86 = arith.constant dense<0.000000e+00> : vector<8x32xf32>
    %191 = tpu.matmul %188, %190, %cst_86 {dimension_numbers = #tpu.dot_dimension_numbers<[1], [0], [0], [1], [0, 0, 1, 1], [], []>} : vector<8x32xf32>, vector<32x32xf32>, vector<8x32xf32> -> vector<8x32xf32>
    %c14 = arith.constant 14 : index
    %c0_87 = arith.constant 0 : index
    %192 = vector.load %arg5[%c14, %c0_87] : memref<21x32xf32, #tpu.memory_space<vmem>>, vector<1x32xf32>
    %193 = vector.broadcast %192 : vector<1x32xf32> to vector<8x32xf32>
    %194 = arith.addf %191, %193 : vector<8x32xf32>
    %195 = arith.addf %112, %194 : vector<8x32xf32>
    %196 = vector.broadcast %5 : vector<8x1xf32> to vector<8x32xf32>
    %197 = arith.mulf %195, %196 : vector<8x32xf32>
    %cst_88 = arith.constant dense<0.000000e+00> : vector<112x32xf32>
    %198 = tpu.matmul %11, %197, %cst_88 {dimension_numbers = #tpu.dot_dimension_numbers<[1], [0], [0], [1], [0, 0, 1, 1], [], []>} : vector<112x8xf32>, vector<8x32xf32>, vector<112x32xf32> -> vector<112x32xf32>
    %199 = vector.extract_strided_slice %198 {offsets = [0, 0], sizes = [56, 32], strides = [1, 1]} : vector<112x32xf32> to vector<56x32xf32>
    %200 = vector.extract_strided_slice %198 {offsets = [56, 0], sizes = [56, 32], strides = [1, 1]} : vector<112x32xf32> to vector<56x32xf32>
    %201 = tpu.concatenate %199, %200 in 1 : vector<56x32xf32>, vector<56x32xf32> -> vector<56x64xf32>
    %c4_89 = arith.constant 4 : index
    %c0_90 = arith.constant 0 : index
    %c0_91 = arith.constant 0 : index
    %202 = vector.load %arg3[%c4_89, %c0_90, %c0_91] : memref<5x64x32xf32, #tpu.memory_space<vmem>>, vector<1x64x32xf32>
    %203 = vector.shape_cast %202 : vector<1x64x32xf32> to vector<64x32xf32>
    %cst_92 = arith.constant dense<0.000000e+00> : vector<56x32xf32>
    %204 = tpu.matmul %201, %203, %cst_92 {dimension_numbers = #tpu.dot_dimension_numbers<[1], [0], [0], [1], [0, 0, 1, 1], [], []>} : vector<56x64xf32>, vector<64x32xf32>, vector<56x32xf32> -> vector<56x32xf32>
    %c16 = arith.constant 16 : index
    %c0_93 = arith.constant 0 : index
    %205 = vector.load %arg5[%c16, %c0_93] : memref<21x32xf32, #tpu.memory_space<vmem>>, vector<1x32xf32>
    %206 = vector.broadcast %19 : vector<56x1xf32> to vector<56x32xf32>
    %207 = vector.broadcast %205 : vector<1x32xf32> to vector<56x32xf32>
    %208 = arith.mulf %206, %207 : vector<56x32xf32>
    %209 = arith.addf %204, %208 : vector<56x32xf32>
    %c17 = arith.constant 17 : index
    %c0_94 = arith.constant 0 : index
    %210 = vector.load %arg5[%c17, %c0_94] : memref<21x32xf32, #tpu.memory_space<vmem>>, vector<1x32xf32>
    %211 = vector.broadcast %9 : vector<56x1xf32> to vector<56x32xf32>
    %212 = vector.broadcast %210 : vector<1x32xf32> to vector<56x32xf32>
    %213 = arith.mulf %211, %212 : vector<56x32xf32>
    %214 = arith.addf %209, %213 : vector<56x32xf32>
    %c18 = arith.constant 18 : index
    %c0_95 = arith.constant 0 : index
    %215 = vector.load %arg5[%c18, %c0_95] : memref<21x32xf32, #tpu.memory_space<vmem>>, vector<1x32xf32>
    %216 = vector.broadcast %215 : vector<1x32xf32> to vector<56x32xf32>
    %217 = arith.addf %214, %216 : vector<56x32xf32>
    %cst_96 = arith.constant 0.000000e+00 : f32
    %218 = vector.broadcast %cst_96 : f32 to vector<56x32xf32>
    %219 = arith.subf %218, %217 : vector<56x32xf32>
    %220 = math.exp %219 : vector<56x32xf32>
    %cst_97 = arith.constant 1.000000e+00 : f32
    %221 = vector.broadcast %cst_97 : f32 to vector<56x32xf32>
    %222 = arith.addf %221, %220 : vector<56x32xf32>
    %223 = tpu.reciprocal %222 : vector<56x32xf32> -> vector<56x32xf32>
    %224 = arith.mulf %217, %223 : vector<56x32xf32>
    %c4_98 = arith.constant 4 : index
    %c0_99 = arith.constant 0 : index
    %c0_100 = arith.constant 0 : index
    %225 = vector.load %arg4[%c4_98, %c0_99, %c0_100] : memref<5x32x32xf32, #tpu.memory_space<vmem>>, vector<1x32x32xf32>
    %226 = vector.shape_cast %225 : vector<1x32x32xf32> to vector<32x32xf32>
    %cst_101 = arith.constant dense<0.000000e+00> : vector<56x32xf32>
    %227 = tpu.matmul %224, %226, %cst_101 {dimension_numbers = #tpu.dot_dimension_numbers<[1], [0], [0], [1], [0, 0, 1, 1], [], []>} : vector<56x32xf32>, vector<32x32xf32>, vector<56x32xf32> -> vector<56x32xf32>
    %c19 = arith.constant 19 : index
    %c0_102 = arith.constant 0 : index
    %228 = vector.load %arg5[%c19, %c0_102] : memref<21x32xf32, #tpu.memory_space<vmem>>, vector<1x32xf32>
    %229 = vector.broadcast %228 : vector<1x32xf32> to vector<56x32xf32>
    %230 = arith.addf %227, %229 : vector<56x32xf32>
    %cst_103 = arith.constant 0.000000e+00 : f32
    %231 = vector.broadcast %cst_103 : f32 to vector<56x32xf32>
    %232 = arith.subf %231, %230 : vector<56x32xf32>
    %233 = math.exp %232 : vector<56x32xf32>
    %cst_104 = arith.constant 1.000000e+00 : f32
    %234 = vector.broadcast %cst_104 : f32 to vector<56x32xf32>
    %235 = arith.addf %234, %233 : vector<56x32xf32>
    %236 = tpu.reciprocal %235 : vector<56x32xf32> -> vector<56x32xf32>
    %237 = arith.mulf %230, %236 : vector<56x32xf32>
    %c20 = arith.constant 20 : index
    %c0_105 = arith.constant 0 : index
    %238 = vector.load %arg5[%c20, %c0_105] : memref<21x32xf32, #tpu.memory_space<vmem>>, vector<1x32xf32>
    %239 = vector.broadcast %238 : vector<1x32xf32> to vector<56x32xf32>
    %240 = arith.mulf %237, %239 : vector<56x32xf32>
    %cst_106 = arith.constant dense<0.000000e+00> : vector<56xf32>
    %241 = vector.multi_reduction <add>, %240, %cst_106 [1] : vector<56x32xf32> to vector<56xf32>
    %242 = vector.shape_cast %241 : vector<56xf32> to vector<56x1xf32>
    %243 = vector.broadcast %242 : vector<56x1xf32> to vector<56x3xf32>
    %244 = arith.mulf %27, %243 : vector<56x3xf32>
    %245 = vector.broadcast %10 : vector<56x1xf32> to vector<56x3xf32>
    %246 = arith.mulf %244, %245 : vector<56x3xf32>
    %cst_107 = arith.constant dense<0.000000e+00> : vector<8x3xf32>
    %247 = tpu.matmul %12, %246, %cst_107 {dimension_numbers = #tpu.dot_dimension_numbers<[1], [0], [0], [1], [0, 0, 1, 1], [], []>} : vector<8x56xf32>, vector<56x3xf32>, vector<8x3xf32> -> vector<8x3xf32>
    %cst_108 = arith.constant 0.00999999977 : f32
    %248 = vector.broadcast %cst_108 : f32 to vector<8x3xf32>
    %249 = arith.mulf %247, %248 : vector<8x3xf32>
    %250 = vector.broadcast %6 : vector<8x1xf32> to vector<8x3xf32>
    %251 = arith.mulf %249, %250 : vector<8x3xf32>
    %252 = arith.addf %4, %251 : vector<8x3xf32>
    %253 = vector.broadcast %5 : vector<8x1xf32> to vector<8x3xf32>
    %254 = arith.mulf %252, %253 : vector<8x3xf32>
    %c0_109 = arith.constant 0 : index
    %c0_110 = arith.constant 0 : index
    %c0_111 = arith.constant 0 : index
    %255 = vector.load %arg10[%c0_109, %c0_110, %c0_111] : memref<1x8x3xf32, #tpu.memory_space<vmem>>, vector<1x8x3xf32>
    %256 = vector.shape_cast %255 : vector<1x8x3xf32> to vector<8x3xf32>
    %257 = vector.shape_cast %254 : vector<8x3xf32> to vector<1x8x3xf32>
    tpu.vector_store %arg10[%c0_109, %c0_110, %c0_111], %257 {strides = array<i32>} : memref<1x8x3xf32, #tpu.memory_space<vmem>>, vector<1x8x3xf32>,
    %258 = vector.broadcast %5 : vector<8x1xf32> to vector<8x32xf32>
    %259 = arith.mulf %197, %258 : vector<8x32xf32>
    %c0_112 = arith.constant 0 : index
    %c0_113 = arith.constant 0 : index
    %c0_114 = arith.constant 0 : index
    %260 = vector.load %arg9[%c0_112, %c0_113, %c0_114] : memref<1x8x32xf32, #tpu.memory_space<vmem>>, vector<1x8x32xf32>
    %261 = vector.shape_cast %260 : vector<1x8x32xf32> to vector<8x32xf32>
    %262 = vector.shape_cast %259 : vector<8x32xf32> to vector<1x8x32xf32>
    tpu.vector_store %arg9[%c0_112, %c0_113, %c0_114], %262 {strides = array<i32>} : memref<1x8x32xf32, #tpu.memory_space<vmem>>, vector<1x8x32xf32>,
    return
  }
  func.func @transform_0(%arg0: i32) -> (i32, i32) {
    %c0_i32 = arith.constant 0 : i32
    %c0_i32_0 = arith.constant 0 : i32
    %c0_i32_1 = arith.constant 0 : i32
    return %c0_i32, %c0_i32_0 : i32, i32
  }
  func.func @transform_1(%arg0: i32) -> (i32, i32) {
    %c0_i32 = arith.constant 0 : i32
    %c0_i32_0 = arith.constant 0 : i32
    %c0_i32_1 = arith.constant 0 : i32
    return %c0_i32, %c0_i32_0 : i32, i32
  }
  func.func @transform_2(%arg0: i32) -> (i32, i32, i32) {
    %c0_i32 = arith.constant 0 : i32
    %c0_i32_0 = arith.constant 0 : i32
    %c0_i32_1 = arith.constant 0 : i32
    %c0_i32_2 = arith.constant 0 : i32
    return %c0_i32, %c0_i32_0, %c0_i32_1 : i32, i32, i32
  }
  func.func @transform_3(%arg0: i32) -> (i32, i32, i32) {
    %c0_i32 = arith.constant 0 : i32
    %c0_i32_0 = arith.constant 0 : i32
    %c0_i32_1 = arith.constant 0 : i32
    %c0_i32_2 = arith.constant 0 : i32
    return %c0_i32, %c0_i32_0, %c0_i32_1 : i32, i32, i32
  }
  func.func @transform_4(%arg0: i32) -> (i32, i32) {
    %c0_i32 = arith.constant 0 : i32
    %c0_i32_0 = arith.constant 0 : i32
    %c0_i32_1 = arith.constant 0 : i32
    return %c0_i32, %c0_i32_0 : i32, i32
  }
  func.func @transform_5(%arg0: i32) -> (i32, i32, i32) {
    %c0_i32 = arith.constant 0 : i32
    %c0_i32_0 = arith.constant 0 : i32
    %c0_i32_1 = arith.constant 0 : i32
    return %arg0, %c0_i32, %c0_i32_0 : i32, i32, i32
  }
  func.func @transform_6(%arg0: i32) -> (i32, i32, i32) {
    %c0_i32 = arith.constant 0 : i32
    %c0_i32_0 = arith.constant 0 : i32
    %c0_i32_1 = arith.constant 0 : i32
    return %arg0, %c0_i32, %c0_i32_0 : i32, i32, i32
  }
  func.func @transform_7(%arg0: i32) -> (i32, i32, i32) {
    %c0_i32 = arith.constant 0 : i32
    %c0_i32_0 = arith.constant 0 : i32
    %c0_i32_1 = arith.constant 0 : i32
    return %arg0, %c0_i32, %c0_i32_0 : i32, i32, i32
  }
  func.func @transform_8(%arg0: i32) -> (i32, i32, i32) {
    %c0_i32 = arith.constant 0 : i32
    %c0_i32_0 = arith.constant 0 : i32
    %c0_i32_1 = arith.constant 0 : i32
    return %arg0, %c0_i32, %c0_i32_0 : i32, i32, i32
  }
  func.func @transform_9(%arg0: i32) -> (i32, i32, i32) {
    %c0_i32 = arith.constant 0 : i32
    %c0_i32_0 = arith.constant 0 : i32
    %c0_i32_1 = arith.constant 0 : i32
    return %arg0, %c0_i32, %c0_i32_0 : i32, i32, i32
  }
}

</mosaic_0001>

<llo_original>
// kernel: tpu_custom_call.1
$region0: #{tpu_custom_call.1}
  #allocation0 [shape = 'u32[]', space=smem, size = 0x4, offset = 0x4, fixed_abs, tag = 'smem constant byte address 0x4 - core index']
  #allocation1 [shape = 'u32[144,128]{1,0:T(1,128)}', space=vmem, size = 0x12000, scoped, tag = 'internal scratch']
  %s0 = inlined_call_operand.vmem [shape: f32[112,8], index: 0, kind: input, shape index: {}]
  %s1 = inlined_call_operand.vmem [shape: f32[8,56], index: 1, kind: input, shape index: {}]
  %s2 = inlined_call_operand.vmem [shape: f32[5,64,32], index: 2, kind: input, shape index: {}]
  %s3 = inlined_call_operand.vmem [shape: f32[5,32,32], index: 3, kind: input, shape index: {}]
  %s4 = inlined_call_operand.vmem [shape: f32[21,32], index: 4, kind: input, shape index: {}]
  %s5 = inlined_call_operand.vmem [shape: f32[4,8,32], index: 5, kind: input, shape index: {}]
  %s6 = inlined_call_operand.vmem [shape: f32[4,8,5], index: 6, kind: input, shape index: {}]
  %s7 = inlined_call_operand.vmem [shape: f32[4,56,2], index: 7, kind: input, shape index: {}]
  %s8 = inlined_call_operand.hbm [shape: f32[4,8,32], index: 8, kind: output, shape index: {0}]
  %s9 = inlined_call_operand.vmem [shape: f32[4,8,3], index: 9, kind: output, shape index: {1}]
  %10 = xla_tuple %s8, %s9
  %s11 = sld [smem:[#allocation0]]
  $region73: #{tpu_custom_call.1} parent=0
    _
  %s13 = ssub.s32 1, %s11
  %s14 = scalar_select 0, %s13, %s11
  $region1: #{tpu_custom_call.1} parent=0
    #allocation2 [shape = 'u8[8192]{0}', space=vmem, size = 0x2000, scoped, tag = 'output window, operand 0']
    #allocation3 [shape = 's32[2]{0}', space=sflag, size = 0x8, scoped, tag = 'scoped memory for tpu_custom_call.1']
    %15 = vsyncpa [#allocation3], 0
    %s16 = scalar_lea.sflag [#allocation3], 1
    %17 = vsyncpa %s16, 0
    loop: start=0, step=1, limit=6
    $region2: #{tpu_custom_call.1} parent=1 // loop_pre_header
      _
    $region3: #{tpu_custom_call.1} parent=1 // loop_header
      %s19 = sphi 0, %s23
      %p20 = scmp.ge.s32.totalorder %s19, 6
      %s27 = sphi 0, %s27
      %s29 = sphi 0, %s27
      %s30 = sphi 0, %s29
      %s44 = sphi 0, %s30
      %s48 = sphi 0, %s48
      %s50 = sphi 0, %s48
      %s51 = sphi 0, %s50
      %s65 = sphi 0, %s51
      %s69 = sphi 0, %s69
      %s71 = sphi 0, %s69
      %s72 = sphi 0, %s71
      %s86 = sphi 0, %s72
      %s90 = sphi 0, %s90
      %s92 = sphi 0, %s90
      %s93 = sphi 0, %s92
      %s107 = sphi 0, %s93
      %s111 = sphi 0, %s111
      %s113 = sphi 0, %s111
      %s114 = sphi 0, %s113
      %s128 = sphi 0, %s114
      %s134 = sphi 0, %s136
      %s137 = sphi 0, %s134
      %s138 = sphi 0, %s137
      %s154 = sphi 0, %s138
      %s160 = sphi 0, %s162
      %s163 = sphi 0, %s160
      %s164 = sphi 0, %s163
      %s180 = sphi 0, %s164
      %s186 = sphi 0, %s188
      %s189 = sphi 0, %s186
      %s190 = sphi 0, %s189
      %s206 = sphi 0, %s190
      %s212 = sphi 0, %s214
      %s215 = sphi 0, %s212
      %s216 = sphi 0, %s215
      %s232 = sphi 0, %s216
      %s238 = sphi 0, %s240
      %s241 = sphi 0, %s238
      %s242 = sphi 0, %s241
      %s258 = sphi 0, %s242
    $region4: #{tpu_custom_call.1} parent=1 // loop_header_branch
      %22 = sbr.rel (%p20) target = $region8
    $region5: #{tpu_custom_call.1} parent=1 // loop_body
      %s24 = ssub.s32 %s19, 1
      %s25 = ssub.s32 %s19, 2
      %s26 = sadd.s32 %s19, 1
      %s28 = sadd.s32 %s27, 1
      %p31 = scmp.eq.s32.totalorder %s19, 3
      %p32 = scmp.ne.s32.totalorder %s27, %s29
      %p33 = scmp.eq.s32.totalorder %s19, 0
      %p34 = por %p32, %p33
      %p35 = scmp.ne.s32.totalorder %s27, %s29
      %p36 = scmp.eq.s32.totalorder %s24, 3
      %p37 = por %p35, %p36
      %p38 = scmp.ne.s32.totalorder %s29, %s30
      %p39 = scmp.eq.s32.totalorder %s24, 0
      %p40 = por %p38, %p39
      %p41 = scmp.ne.s32.totalorder %s29, %s30
      %p42 = scmp.eq.s32.totalorder %s25, 3
      %p43 = por %p41, %p42
      %p45 = scmp.ne.s32.totalorder %s30, %s44
      %p46 = scmp.eq.s32.totalorder %s25, 0
      %p47 = por %p45, %p46
      %s49 = sadd.s32 %s48, 1
      %p52 = scmp.eq.s32.totalorder %s19, 3
      %p53 = scmp.ne.s32.totalorder %s48, %s50
      %p54 = scmp.eq.s32.totalorder %s19, 0
      %p55 = por %p53, %p54
      %p56 = scmp.ne.s32.totalorder %s48, %s50
      %p57 = scmp.eq.s32.totalorder %s24, 3
      %p58 = por %p56, %p57
      %p59 = scmp.ne.s32.totalorder %s50, %s51
      %p60 = scmp.eq.s32.totalorder %s24, 0
      %p61 = por %p59, %p60
      %p62 = scmp.ne.s32.totalorder %s50, %s51
      %p63 = scmp.eq.s32.totalorder %s25, 3
      %p64 = por %p62, %p63
      %p66 = scmp.ne.s32.totalorder %s51, %s65
      %p67 = scmp.eq.s32.totalorder %s25, 0
      %p68 = por %p66, %p67
      %s70 = sadd.s32 %s69, 1
      %p73 = scmp.eq.s32.totalorder %s19, 3
      %p74 = scmp.ne.s32.totalorder %s69, %s71
      %p75 = scmp.eq.s32.totalorder %s19, 0
      %p76 = por %p74, %p75
      %p77 = scmp.ne.s32.totalorder %s69, %s71
      %p78 = scmp.eq.s32.totalorder %s24, 3
      %p79 = por %p77, %p78
      %p80 = scmp.ne.s32.totalorder %s71, %s72
      %p81 = scmp.eq.s32.totalorder %s24, 0
      %p82 = por %p80, %p81
      %p83 = scmp.ne.s32.totalorder %s71, %s72
      %p84 = scmp.eq.s32.totalorder %s25, 3
      %p85 = por %p83, %p84
      %p87 = scmp.ne.s32.totalorder %s72, %s86
      %p88 = scmp.eq.s32.totalorder %s25, 0
      %p89 = por %p87, %p88
      %s91 = sadd.s32 %s90, 1
      %p94 = scmp.eq.s32.totalorder %s19, 3
      %p95 = scmp.ne.s32.totalorder %s90, %s92
      %p96 = scmp.eq.s32.totalorder %s19, 0
      %p97 = por %p95, %p96
      %p98 = scmp.ne.s32.totalorder %s90, %s92
      %p99 = scmp.eq.s32.totalorder %s24, 3
      %p100 = por %p98, %p99
      %p101 = scmp.ne.s32.totalorder %s92, %s93
      %p102 = scmp.eq.s32.totalorder %s24, 0
      %p103 = por %p101, %p102
      %p104 = scmp.ne.s32.totalorder %s92, %s93
      %p105 = scmp.eq.s32.totalorder %s25, 3
      %p106 = por %p104, %p105
      %p108 = scmp.ne.s32.totalorder %s93, %s107
      %p109 = scmp.eq.s32.totalorder %s25, 0
      %p110 = por %p108, %p109
      %s112 = sadd.s32 %s111, 1
      %p115 = scmp.eq.s32.totalorder %s19, 3
      %p116 = scmp.ne.s32.totalorder %s111, %s113
      %p117 = scmp.eq.s32.totalorder %s19, 0
      %p118 = por %p116, %p117
      %p119 = scmp.ne.s32.totalorder %s111, %s113
      %p120 = scmp.eq.s32.totalorder %s24, 3
      %p121 = por %p119, %p120
      %p122 = scmp.ne.s32.totalorder %s113, %s114
      %p123 = scmp.eq.s32.totalorder %s24, 0
      %p124 = por %p122, %p123
      %p125 = scmp.ne.s32.totalorder %s113, %s114
      %p126 = scmp.eq.s32.totalorder %s25, 3
      %p127 = por %p125, %p126
      %p129 = scmp.ne.s32.totalorder %s114, %s128
      %p130 = scmp.eq.s32.totalorder %s25, 0
      %p131 = por %p129, %p130
      %s132 = ssub.s32 %s19, %s26
      %p133 = scmp.eq.s32.totalorder %s132, 0
      %s135 = sadd.s32 %s134, 1
      %s136 = scalar_select %p133, %s134, %s135
      %p139 = pneg %p133
      %p140 = scmp.eq.s32.totalorder %s19, 3
      %p141 = por %p139, %p140
      %p142 = scmp.ne.s32.totalorder %s134, %s137
      %p143 = scmp.eq.s32.totalorder %s19, 0
      %p144 = por %p142, %p143
      %p145 = scmp.ne.s32.totalorder %s134, %s137
      %p146 = scmp.eq.s32.totalorder %s24, 3
      %p147 = por %p145, %p146
      %p148 = scmp.ne.s32.totalorder %s137, %s138
      %p149 = scmp.eq.s32.totalorder %s24, 0
      %p150 = por %p148, %p149
      %p151 = scmp.ne.s32.totalorder %s137, %s138
      %p152 = scmp.eq.s32.totalorder %s25, 3
      %p153 = por %p151, %p152
      %p155 = scmp.ne.s32.totalorder %s138, %s154
      %p156 = scmp.eq.s32.totalorder %s25, 0
      %p157 = por %p155, %p156
      %s158 = ssub.s32 %s19, %s26
      %p159 = scmp.eq.s32.totalorder %s158, 0
      %s161 = sadd.s32 %s160, 1
      %s162 = scalar_select %p159, %s160, %s161
      %p165 = pneg %p159
      %p166 = scmp.eq.s32.totalorder %s19, 3
      %p167 = por %p165, %p166
      %p168 = scmp.ne.s32.totalorder %s160, %s163
      %p169 = scmp.eq.s32.totalorder %s19, 0
      %p170 = por %p168, %p169
      %p171 = scmp.ne.s32.totalorder %s160, %s163
      %p172 = scmp.eq.s32.totalorder %s24, 3
      %p173 = por %p171, %p172
      %p174 = scmp.ne.s32.totalorder %s163, %s164
      %p175 = scmp.eq.s32.totalorder %s24, 0
      %p176 = por %p174, %p175
      %p177 = scmp.ne.s32.totalorder %s163, %s164
      %p178 = scmp.eq.s32.totalorder %s25, 3
      %p179 = por %p177, %p178
      %p181 = scmp.ne.s32.totalorder %s164, %s180
      %p182 = scmp.eq.s32.totalorder %s25, 0
      %p183 = por %p181, %p182
      %s184 = ssub.s32 %s19, %s26
      %p185 = scmp.eq.s32.totalorder %s184, 0
      %s187 = sadd.s32 %s186, 1
      %s188 = scalar_select %p185, %s186, %s187
      %p191 = pneg %p185
      %p192 = scmp.eq.s32.totalorder %s19, 3
      %p193 = por %p191, %p192
      %p194 = scmp.ne.s32.totalorder %s186, %s189
      %p195 = scmp.eq.s32.totalorder %s19, 0
      %p196 = por %p194, %p195
      %p197 = scmp.ne.s32.totalorder %s186, %s189
      %p198 = scmp.eq.s32.totalorder %s24, 3
      %p199 = por %p197, %p198
      %p200 = scmp.ne.s32.totalorder %s189, %s190
      %p201 = scmp.eq.s32.totalorder %s24, 0
      %p202 = por %p200, %p201
      %p203 = scmp.ne.s32.totalorder %s189, %s190
      %p204 = scmp.eq.s32.totalorder %s25, 3
      %p205 = por %p203, %p204
      %p207 = scmp.ne.s32.totalorder %s190, %s206
      %p208 = scmp.eq.s32.totalorder %s25, 0
      %p209 = por %p207, %p208
      %s210 = ssub.s32 %s19, %s26
      %p211 = scmp.eq.s32.totalorder %s210, 0
      %s213 = sadd.s32 %s212, 1
      %s214 = scalar_select %p211, %s212, %s213
      %p217 = pneg %p211
      %p218 = scmp.eq.s32.totalorder %s19, 3
      %p219 = por %p217, %p218
      %p220 = scmp.ne.s32.totalorder %s212, %s215
      %p221 = scmp.eq.s32.totalorder %s19, 0
      %p222 = por %p220, %p221
      %p223 = scmp.ne.s32.totalorder %s212, %s215
      %p224 = scmp.eq.s32.totalorder %s24, 3
      %p225 = por %p223, %p224
      %p226 = scmp.ne.s32.totalorder %s215, %s216
      %p227 = scmp.eq.s32.totalorder %s24, 0
      %p228 = por %p226, %p227
      %p229 = scmp.ne.s32.totalorder %s215, %s216
      %p230 = scmp.eq.s32.totalorder %s25, 3
      %p231 = por %p229, %p230
      %p233 = scmp.ne.s32.totalorder %s216, %s232
      %p234 = scmp.eq.s32.totalorder %s25, 0
      %p235 = por %p233, %p234
      %s236 = ssub.s32 %s19, %s26
      %p237 = scmp.eq.s32.totalorder %s236, 0
      %s239 = sadd.s32 %s238, 1
      %s240 = scalar_select %p237, %s238, %s239
      %p243 = pneg %p237
      %p244 = scmp.eq.s32.totalorder %s19, 3
      %p245 = por %p243, %p244
      %p246 = scmp.ne.s32.totalorder %s238, %s241
      %p247 = scmp.eq.s32.totalorder %s19, 0
      %p248 = por %p246, %p247
      %p249 = scmp.ne.s32.totalorder %s238, %s241
      %p250 = scmp.eq.s32.totalorder %s24, 3
      %p251 = por %p249, %p250
      %p252 = scmp.ne.s32.totalorder %s241, %s242
      %p253 = scmp.eq.s32.totalorder %s24, 0
      %p254 = por %p252, %p253
      %p255 = scmp.ne.s32.totalorder %s241, %s242
      %p256 = scmp.eq.s32.totalorder %s25, 3
      %p257 = por %p255, %p256
      %p259 = scmp.ne.s32.totalorder %s242, %s258
      %p260 = scmp.eq.s32.totalorder %s25, 0
      %p261 = por %p259, %p260
      %p262 = scmp.le.s32.totalorder 1, %s19
      %p263 = scmp.lt.s32.totalorder %s19, 5
      %p264 = pnand %p262, %p263
      %p265 = pneg %p264
      // Predicated region
      $region9: #{tpu_custom_call.1} parent=5 // pred_check
        _
      $region10: #{tpu_custom_call.1} parent=5 // pred_check_branch
        %267 = sbr.rel (%p264) target = $region12
      $region11: #{tpu_custom_call.1} parent=5 // pred_region
        %s268 = ssub.s32 %s19, 1
        // Predicated region
        $region13: #{tpu_custom_call.1} parent=11 // pred_check
          %p269 = pneg %p40
        $region14: #{tpu_custom_call.1} parent=11 // pred_check_branch
          %271 = sbr.rel (%p269) target = $region16
        $region15: #{tpu_custom_call.1} parent=11 // pred_region
          _
        $region16: #{tpu_custom_call.1} parent=11 // pred_fallthru
          _
        // Predicated region
        $region17: #{tpu_custom_call.1} parent=11 // pred_check
          %p272 = pneg %p61
        $region18: #{tpu_custom_call.1} parent=11 // pred_check_branch
          %274 = sbr.rel (%p272) target = $region20
        $region19: #{tpu_custom_call.1} parent=11 // pred_region
          _
        $region20: #{tpu_custom_call.1} parent=11 // pred_fallthru
          _
        // Predicated region
        $region21: #{tpu_custom_call.1} parent=11 // pred_check
          %p275 = pneg %p82
        $region22: #{tpu_custom_call.1} parent=11 // pred_check_branch
          %277 = sbr.rel (%p275) target = $region24
        $region23: #{tpu_custom_call.1} parent=11 // pred_region
          _
        $region24: #{tpu_custom_call.1} parent=11 // pred_fallthru
          _
        // Predicated region
        $region25: #{tpu_custom_call.1} parent=11 // pred_check
          %p278 = pneg %p103
        $region26: #{tpu_custom_call.1} parent=11 // pred_check_branch
          %280 = sbr.rel (%p278) target = $region28
        $region27: #{tpu_custom_call.1} parent=11 // pred_region
          _
        $region28: #{tpu_custom_call.1} parent=11 // pred_fallthru
          _
        // Predicated region
        $region29: #{tpu_custom_call.1} parent=11 // pred_check
          %p281 = pneg %p124
        $region30: #{tpu_custom_call.1} parent=11 // pred_check_branch
          %283 = sbr.rel (%p281) target = $region32
        $region31: #{tpu_custom_call.1} parent=11 // pred_region
          _
        $region32: #{tpu_custom_call.1} parent=11 // pred_fallthru
          _
      $region12: #{tpu_custom_call.1} parent=5 // pred_fallthru
        _
      %p284 = scmp.lt.s32.totalorder %s19, 4
      // Predicated region
      $region33: #{tpu_custom_call.1} parent=5 // pred_check
        %p285 = pneg %p284
      $region34: #{tpu_custom_call.1} parent=5 // pred_check_branch
        %287 = sbr.rel (%p285) target = $region36
      $region35: #{tpu_custom_call.1} parent=5 // pred_region
        // Predicated region
        $region37: #{tpu_custom_call.1} parent=35 // pred_check
          %p288 = pneg %p144
        $region38: #{tpu_custom_call.1} parent=35 // pred_check_branch
          %290 = sbr.rel (%p288) target = $region40
        $region39: #{tpu_custom_call.1} parent=35 // pred_region
          %p291 = scmp.lt.s32.totalorder %s19, 3
          %s292 = scalar_select %p291, %s19, 3
          %s293 = smul.addr %s292, 8
          %s294 = scalar_lea.vmem %s5, %s293
        $region40: #{tpu_custom_call.1} parent=35 // pred_fallthru
          _
        // Predicated region
        $region41: #{tpu_custom_call.1} parent=35 // pred_check
          %p295 = pneg %p170
        $region42: #{tpu_custom_call.1} parent=35 // pred_check_branch
          %297 = sbr.rel (%p295) target = $region44
        $region43: #{tpu_custom_call.1} parent=35 // pred_region
          %p298 = scmp.lt.s32.totalorder %s19, 3
          %s299 = scalar_select %p298, %s19, 3
          %s300 = smul.addr %s299, 8
          %s301 = scalar_lea.vmem %s6, %s300
        $region44: #{tpu_custom_call.1} parent=35 // pred_fallthru
          _
        // Predicated region
        $region45: #{tpu_custom_call.1} parent=35 // pred_check
          %p302 = pneg %p196
        $region46: #{tpu_custom_call.1} parent=35 // pred_check_branch
          %304 = sbr.rel (%p302) target = $region48
        $region47: #{tpu_custom_call.1} parent=35 // pred_region
          %p305 = scmp.lt.s32.totalorder %s19, 3
          %s306 = scalar_select %p305, %s19, 3
          %s307 = smul.addr %s306, 7
          %s308 = smul.addr %s307, 8
          %s309 = scalar_lea.vmem %s7, %s308
        $region48: #{tpu_custom_call.1} parent=35 // pred_fallthru
          _
      $region36: #{tpu_custom_call.1} parent=5 // pred_fallthru
        _
      %p310 = scmp.le.s32.totalorder 1, %s19
      %p311 = scmp.lt.s32.totalorder %s19, 5
      %p312 = pnand %p310, %p311
      %p313 = pneg %p312
      // Predicated region
      $region49: #{tpu_custom_call.1} parent=5 // pred_check
        _
      $region50: #{tpu_custom_call.1} parent=5 // pred_check_branch
        %315 = sbr.rel (%p312) target = $region52
      $region51: #{tpu_custom_call.1} parent=5 // pred_region
        %s316 = ssub.s32 %s19, 1
        %p317 = pneg %p40
        %p318 = pneg %p37
        %p319 = pneg %p61
        %p320 = pneg %p58
        %p321 = pneg %p82
        %p322 = pneg %p79
        %p323 = pneg %p103
        %p324 = pneg %p100
        %p325 = pneg %p124
        %p326 = pneg %p121
        %p327 = scmp.lt.s32.totalorder %s24, 3
        %s328 = scalar_select %p327, %s24, 3
        %s329 = smul.addr %s328, 8
        %s330 = scalar_lea.vmem %s5, %s329
        %p331 = pneg %p150
        %p332 = pneg %p147
        %p333 = scmp.lt.s32.totalorder %s24, 3
        %s334 = scalar_select %p333, %s24, 3
        %s335 = smul.addr %s334, 8
        %s336 = scalar_lea.vmem %s6, %s335
        %p337 = pneg %p176
        %p338 = pneg %p173
        %p339 = scmp.lt.s32.totalorder %s24, 3
        %s340 = scalar_select %p339, %s24, 3
        %s341 = smul.addr %s340, 7
        %s342 = smul.addr %s341, 8
        %s343 = scalar_lea.vmem %s7, %s342
        %p344 = pneg %p202
        %p345 = pneg %p199
        %p346 = pneg %p228
        %p347 = pneg %p225
        %s348 = sand.u32 %s215, 1
        %s349 = scalar_lea.sflag [#allocation3], %s348
        %s350 = sand.u32 %s215, 1
        %s351 = smul.addr %s350, 8
        %s352 = scalar_lea.vmem [#allocation2], %s351
        %p353 = pneg %p254
        %p354 = pneg %p251
        %p355 = scmp.lt.s32.totalorder %s24, 3
        %s356 = scalar_select %p355, %s24, 3
        %s357 = smul.addr %s356, 8
        %s358 = scalar_lea.vmem %s9, %s357
        %p359 = scmp.lt.s32.totalorder %s24, 3
        %s360 = scalar_select %p359, %s24, 3
        %s361 = smul.addr %s360, 8
        %s362 = scalar_lea.vmem %s5, %s361
        %p363 = scmp.lt.s32.totalorder %s24, 3
        %s364 = scalar_select %p363, %s24, 3
        %s365 = smul.addr %s364, 8
        %s366 = scalar_lea.vmem %s6, %s365
        %p367 = scmp.lt.s32.totalorder %s24, 3
        %s368 = scalar_select %p367, %s24, 3
        %s369 = smul.addr %s368, 7
        %s370 = smul.addr %s369, 8
        %s371 = scalar_lea.vmem %s7, %s370
        %p372 = scmp.lt.s32.totalorder %s24, 3
        %s373 = scalar_select %p372, %s24, 3
        %s374 = smul.addr %s373, 8
        %s375 = scalar_lea.vmem %s9, %s374
        %v376 = vld [vmem:[%s362] sm:$0xff]
        %v377 = vld [vmem:[%s366] sm:$0xff]
        %v378 = vld [vmem:[%s371] sm:$0xff]
        %v379 = vld [vmem:[%s371 + $0x8] sm:$0xff]
        %v380 = vld [vmem:[%s371 + $0x10] sm:$0xff]
        %v381 = vld [vmem:[%s371 + $0x18] sm:$0xff]
        %v382 = vld [vmem:[%s371 + $0x20] sm:$0xff]
        %v383 = vld [vmem:[%s371 + $0x28] sm:$0xff]
        %v384 = vld [vmem:[%s371 + $0x30] sm:$0xff]
        %v385 = vld [vmem:[%s0] sm:$0xff]
        %v386 = vld [vmem:[%s0 + $0x8] sm:$0xff]
        %v387 = vld [vmem:[%s0 + $0x10] sm:$0xff]
        %v388 = vld [vmem:[%s0 + $0x18] sm:$0xff]
        %v389 = vld [vmem:[%s0 + $0x20] sm:$0xff]
        %v390 = vld [vmem:[%s0 + $0x28] sm:$0xff]
        %v391 = vld [vmem:[%s0 + $0x30] sm:$0xff]
        %v392 = vld [vmem:[%s0 + $0x38] sm:$0xff]
        %v393 = vld [vmem:[%s0 + $0x40] sm:$0xff]
        %v394 = vld [vmem:[%s0 + $0x48] sm:$0xff]
        %v395 = vld [vmem:[%s0 + $0x50] sm:$0xff]
        %v396 = vld [vmem:[%s0 + $0x58] sm:$0xff]
        %v397 = vld [vmem:[%s0 + $0x60] sm:$0xff]
        %v398 = vld [vmem:[%s0 + $0x68] sm:$0xff]
        %v399 = vld [vmem:[%s1] sm:$0xff]
        %vm400 = vcmask 64512
        %v402 = vsel %vm400, %v385, 0
        %v405 = vsel %vm400, %v386, 0
        %v408 = vsel %vm400, %v387, 0
        %v411 = vsel %vm400, %v388, 0
        %v414 = vsel %vm400, %v389, 0
        %v417 = vsel %vm400, %v390, 0
        %v420 = vsel %vm400, %v391, 0
        %v423 = vsel %vm400, %v392, 0
        %v426 = vsel %vm400, %v393, 0
        %v429 = vsel %vm400, %v394, 0
        %v432 = vsel %vm400, %v395, 0
        %v435 = vsel %vm400, %v396, 0
        %v438 = vsel %vm400, %v397, 0
        %v441 = vsel %vm400, %v398, 0
        %443 = vmatprep.subr.mxu0 0.0
        %444 = vmatpush1.msra.mxu0 %v377
        %445 = vmatprep.subr.mxu0 0.0
        %446 = vmatpush1.msra.mxu0 0.0
        %447 = vmatprep.subr.mxu0 0.0
        %448 = vmatpush1.msra.mxu0 0.0
        %449 = vmatprep.subr.mxu0 0.0
        %450 = vmatpush1.msra.mxu0 0.0
        %451 = vmatprep.subr.mxu0 0.0
        %452 = vmatpush1.msra.mxu0 0.0
        %453 = vmatprep.subr.mxu0 0.0
        %454 = vmatpush1.msra.mxu0 0.0
        %455 = vmatprep.subr.mxu0 0.0
        %456 = vmatpush1.msra.mxu0 0.0
        %457 = vmatprep.subr.mxu0 0.0
        %458 = vmatpush1.msra.mxu0 0.0
        %459 = vmatprep.subr.mxu0 0.0
        %460 = vmatpush1.msra.mxu0 0.0
        %461 = vmatprep.subr.mxu0 0.0
        %462 = vmatpush1.msra.mxu0 0.0
        %463 = vmatprep.subr.mxu0 0.0
        %464 = vmatpush1.msra.mxu0 0.0
        %465 = vmatprep.subr.mxu0 0.0
        %466 = vmatpush1.msra.mxu0 0.0
        %467 = vmatprep.subr.mxu0 0.0
        %468 = vmatpush1.msra.mxu0 0.0
        %469 = vmatprep.subr.mxu0 0.0
        %470 = vmatpush1.msra.mxu0 0.0
        %471 = vmatprep.subr.mxu0 0.0
        %472 = vmatpush1.msra.mxu0 0.0
        %473 = vmatprep.subr.mxu0 0.0
        %474 = vmatpush1.msra.mxu0 0.0
        %475 = vmatprep.subr.mxu0 0.0
        %476 = vmatpush1.msra.mxu0 0.0
        %477 = vmatprep.subr.mxu0 0.0
        %478 = vmatpush1.msra.mxu0 0.0
        %479 = vmatprep.subr.mxu0 0.0
        %480 = vmatpush1.msra.mxu0 0.0
        %481 = vmatprep.subr.mxu0 0.0
        %482 = vmatpush1.msra.mxu0 0.0
        %483 = vmatprep.subr.mxu0 0.0
        %484 = vmatpush1.msra.mxu0 0.0
        %485 = vmatprep.subr.mxu0 0.0
        %486 = vmatpush1.msra.mxu0 0.0
        %487 = vmatprep.subr.mxu0 0.0
        %488 = vmatpush1.msra.mxu0 0.0
        %489 = vmatprep.subr.mxu0 0.0
        %490 = vmatpush1.msra.mxu0 0.0
        %491 = vmatprep.subr.mxu0 0.0
        %492 = vmatpush1.msra.mxu0 0.0
        %493 = vmatprep.subr.mxu0 0.0
        %494 = vmatpush1.msra.mxu0 0.0
        %495 = vmatprep.subr.mxu0 0.0
        %496 = vmatpush1.msra.mxu0 0.0
        %497 = vmatprep.subr.mxu0 0.0
        %498 = vmatpush1.msra.mxu0 0.0
        %499 = vmatprep.subr.mxu0 0.0
        %500 = vmatpush1.msra.mxu0 0.0
        %501 = vmatprep.subr.mxu0 0.0
        %502 = vmatpush1.msra.mxu0 0.0
        %503 = vmatprep.subr.mxu0 0.0
        %504 = vmatpush1.msra.mxu0 0.0
        %505 = vmatprep.subr.mxu0 0.0
        %506 = vmatpush1.msra.mxu0 0.0
        %507 = vmatprep.mubr.f32.mxu0 0.0
        %508 = vmatmul.mubr.f32.gmra.mrb[0].mxu0 %v402
        %v509 = vpop.f32.mrb[0].mxu0
        %v510 = vadd.f32 0.0, %v509
        %v511 = vpop.f32.mrb[0].mxu0
        %512 = vmatprep.mubr.f32.mxu0 0.0
        %513 = vmatmul.mubr.f32.gmra.mrb[0].mxu0 %v405
        %v514 = vpop.f32.mrb[0].mxu0
        %v515 = vadd.f32 0.0, %v514
        %v516 = vpop.f32.mrb[0].mxu0
        %517 = vmatprep.mubr.f32.mxu0 0.0
        %518 = vmatmul.mubr.f32.gmra.mrb[0].mxu0 %v408
        %v519 = vpop.f32.mrb[0].mxu0
        %v520 = vadd.f32 0.0, %v519
        %v521 = vpop.f32.mrb[0].mxu0
        %522 = vmatprep.mubr.f32.mxu0 0.0
        %523 = vmatmul.mubr.f32.gmra.mrb[0].mxu0 %v411
        %v524 = vpop.f32.mrb[0].mxu0
        %v525 = vadd.f32 0.0, %v524
        %v526 = vpop.f32.mrb[0].mxu0
        %527 = vmatprep.mubr.f32.mxu0 0.0
        %528 = vmatmul.mubr.f32.gmra.mrb[0].mxu0 %v414
        %v529 = vpop.f32.mrb[0].mxu0
        %v530 = vadd.f32 0.0, %v529
        %v531 = vpop.f32.mrb[0].mxu0
        %532 = vmatprep.mubr.f32.mxu0 0.0
        %533 = vmatmul.mubr.f32.gmra.mrb[0].mxu0 %v417
        %v534 = vpop.f32.mrb[0].mxu0
        %v535 = vadd.f32 0.0, %v534
        %v536 = vpop.f32.mrb[0].mxu0
        %537 = vmatprep.mubr.f32.mxu0 0.0
        %538 = vmatmul.mubr.f32.gmra.mrb[0].mxu0 %v420
        %v539 = vpop.f32.mrb[0].mxu0
        %v540 = vadd.f32 0.0, %v539
        %v541 = vpop.f32.mrb[0].mxu0
        %542 = vmatprep.mubr.f32.mxu0 0.0
        %543 = vmatmul.mubr.f32.gmra.mrb[0].mxu0 %v423
        %v544 = vpop.f32.mrb[0].mxu0
        %v545 = vadd.f32 0.0, %v544
        %v546 = vpop.f32.mrb[0].mxu0
        %547 = vmatprep.mubr.f32.mxu0 0.0
        %548 = vmatmul.mubr.f32.gmra.mrb[0].mxu0 %v426
        %v549 = vpop.f32.mrb[0].mxu0
        %v550 = vadd.f32 0.0, %v549
        %v551 = vpop.f32.mrb[0].mxu0
        %552 = vmatprep.mubr.f32.mxu0 0.0
        %553 = vmatmul.mubr.f32.gmra.mrb[0].mxu0 %v429
        %v554 = vpop.f32.mrb[0].mxu0
        %v555 = vadd.f32 0.0, %v554
        %v556 = vpop.f32.mrb[0].mxu0
        %557 = vmatprep.mubr.f32.mxu0 0.0
        %558 = vmatmul.mubr.f32.gmra.mrb[0].mxu0 %v432
        %v559 = vpop.f32.mrb[0].mxu0
        %v560 = vadd.f32 0.0, %v559
        %v561 = vpop.f32.mrb[0].mxu0
        %562 = vmatprep.mubr.f32.mxu0 0.0
        %563 = vmatmul.mubr.f32.gmra.mrb[0].mxu0 %v435
        %v564 = vpop.f32.mrb[0].mxu0
        %v565 = vadd.f32 0.0, %v564
        %v566 = vpop.f32.mrb[0].mxu0
        %567 = vmatprep.mubr.f32.mxu0 0.0
        %568 = vmatmul.mubr.f32.gmra.mrb[0].mxu0 %v438
        %v569 = vpop.f32.mrb[0].mxu0
        %v570 = vadd.f32 0.0, %v569
        %v571 = vpop.f32.mrb[0].mxu0
        %572 = vmatprep.mubr.f32.mxu0 0.0
        %573 = vmatmul.mubr.f32.gmra.mrb[0].mxu0 %v441
        %v574 = vpop.f32.mrb[0].mxu0
        %v575 = vadd.f32 0.0, %v574
        %v576 = vpop.f32.mrb[0].mxu0
        %577 = vdwg.mxu0
        %v578 = vsub.f32 %v510, %v545
        %v579 = vsub.f32 %v515, %v550
        %v580 = vsub.f32 %v520, %v555
        %v581 = vsub.f32 %v525, %v560
        %v582 = vsub.f32 %v530, %v565
        %v583 = vsub.f32 %v535, %v570
        %v584 = vsub.f32 %v540, %v575
        %v585 = vmul.f32 %v578, %v578
        %v586 = vmul.f32 %v579, %v579
        %v587 = vmul.f32 %v580, %v580
        %v588 = vmul.f32 %v581, %v581
        %v589 = vmul.f32 %v582, %v582
        %v590 = vmul.f32 %v583, %v583
        %v591 = vmul.f32 %v584, %v584
        %vm592 = vcmask 23552
        %v593 = vsel %vm592, %v585, 0.0
        %594 = vadd.xlane.f32.xlu0 %v593
        %v595 = vpop.xlane.xlu0 %594
        %v596 = vsel %vm592, %v586, 0.0
        %597 = vadd.xlane.f32.xlu0 %v596
        %v598 = vpop.xlane.xlu0 %597
        %v599 = vsel %vm592, %v587, 0.0
        %600 = vadd.xlane.f32.xlu0 %v599
        %v601 = vpop.xlane.xlu0 %600
        %v602 = vsel %vm592, %v588, 0.0
        %603 = vadd.xlane.f32.xlu0 %v602
        %v604 = vpop.xlane.xlu0 %603
        %v605 = vsel %vm592, %v589, 0.0
        %606 = vadd.xlane.f32.xlu0 %v605
        %v607 = vpop.xlane.xlu0 %606
        %v608 = vsel %vm592, %v590, 0.0
        %609 = vadd.xlane.f32.xlu0 %v608
        %v610 = vpop.xlane.xlu0 %609
        %v611 = vsel %vm592, %v591, 0.0
        %612 = vadd.xlane.f32.xlu0 %v611
        %v613 = vpop.xlane.xlu0 %612
        %v614 = vadd.f32 %v595, 1e-08
        %v615 = vadd.f32 %v598, 1e-08
        %v616 = vadd.f32 %v601, 1e-08
        %v617 = vadd.f32 %v604, 1e-08
        %v618 = vadd.f32 %v607, 1e-08
        %v619 = vadd.f32 %v610, 1e-08
        %v620 = vadd.f32 %v613, 1e-08
        %v621 = vrsqrt.pop %v614
        %v622 = vmul.f32 %v614, %v621
        %vm623 = vcmp.eq.f32.partialorder %v614, inf
        %v624 = vsel %vm623, %v614, %v622
        %vm625 = vcmp.eq.f32.partialorder %v614, 0.0
        %v626 = vand.u32 %v614, 2147483648
        %v627 = vsel %vm625, %v626, %v624
        %v628 = vrsqrt.pop %v615
        %v629 = vmul.f32 %v615, %v628
        %vm630 = vcmp.eq.f32.partialorder %v615, inf
        %v631 = vsel %vm630, %v615, %v629
        %vm632 = vcmp.eq.f32.partialorder %v615, 0.0
        %v633 = vand.u32 %v615, 2147483648
        %v634 = vsel %vm632, %v633, %v631
        %v635 = vrsqrt.pop %v616
        %v636 = vmul.f32 %v616, %v635
        %vm637 = vcmp.eq.f32.partialorder %v616, inf
        %v638 = vsel %vm637, %v616, %v636
        %vm639 = vcmp.eq.f32.partialorder %v616, 0.0
        %v640 = vand.u32 %v616, 2147483648
        %v641 = vsel %vm639, %v640, %v638
        %v642 = vrsqrt.pop %v617
        %v643 = vmul.f32 %v617, %v642
        %vm644 = vcmp.eq.f32.partialorder %v617, inf
        %v645 = vsel %vm644, %v617, %v643
        %vm646 = vcmp.eq.f32.partialorder %v617, 0.0
        %v647 = vand.u32 %v617, 2147483648
        %v648 = vsel %vm646, %v647, %v645
        %v649 = vrsqrt.pop %v618
        %v650 = vmul.f32 %v618, %v649
        %vm651 = vcmp.eq.f32.partialorder %v618, inf
        %v652 = vsel %vm651, %v618, %v650
        %vm653 = vcmp.eq.f32.partialorder %v618, 0.0
        %v654 = vand.u32 %v618, 2147483648
        %v655 = vsel %vm653, %v654, %v652
        %v656 = vrsqrt.pop %v619
        %v657 = vmul.f32 %v619, %v656
        %vm658 = vcmp.eq.f32.partialorder %v619, inf
        %v659 = vsel %vm658, %v619, %v657
        %vm660 = vcmp.eq.f32.partialorder %v619, 0.0
        %v661 = vand.u32 %v619, 2147483648
        %v662 = vsel %vm660, %v661, %v659
        %v663 = vrsqrt.pop %v620
        %v664 = vmul.f32 %v620, %v663
        %vm665 = vcmp.eq.f32.partialorder %v620, inf
        %v666 = vsel %vm665, %v620, %v664
        %vm667 = vcmp.eq.f32.partialorder %v620, 0.0
        %v668 = vand.u32 %v620, 2147483648
        %v669 = vsel %vm667, %v668, %v666
        %v670 = vadd.f32 %v627, 1.0
        %v671 = vadd.f32 %v634, 1.0
        %v672 = vadd.f32 %v641, 1.0
        %v673 = vadd.f32 %v648, 1.0
        %v674 = vadd.f32 %v655, 1.0
        %v675 = vadd.f32 %v662, 1.0
        %v676 = vadd.f32 %v669, 1.0
        %v677 = vrcp.pop %v670
        %v678 = vrcp.pop %v671
        %v679 = vrcp.pop %v672
        %v680 = vrcp.pop %v673
        %v681 = vrcp.pop %v674
        %v682 = vrcp.pop %v675
        %v683 = vrcp.pop %v676
        %v684 = vmul.f32 %v578, %v677
        %v685 = vmul.f32 %v579, %v678
        %v686 = vmul.f32 %v580, %v679
        %v687 = vmul.f32 %v581, %v680
        %v688 = vmul.f32 %v582, %v681
        %v689 = vmul.f32 %v583, %v682
        %v690 = vmul.f32 %v584, %v683
        %691 = vmatprep.subr.mxu0 0.0
        %692 = vmatpush1.msra.mxu0 %v376
        %693 = vmatprep.subr.mxu0 0.0
        %694 = vmatpush1.msra.mxu0 0.0
        %695 = vmatprep.subr.mxu0 0.0
        %696 = vmatpush1.msra.mxu0 0.0
        %697 = vmatprep.subr.mxu0 0.0
        %698 = vmatpush1.msra.mxu0 0.0
        %699 = vmatprep.subr.mxu0 0.0
        %700 = vmatpush1.msra.mxu0 0.0
        %701 = vmatprep.subr.mxu0 0.0
        %702 = vmatpush1.msra.mxu0 0.0
        %703 = vmatprep.subr.mxu0 0.0
        %704 = vmatpush1.msra.mxu0 0.0
        %705 = vmatprep.subr.mxu0 0.0
        %706 = vmatpush1.msra.mxu0 0.0
        %707 = vmatprep.subr.mxu0 0.0
        %708 = vmatpush1.msra.mxu0 0.0
        %709 = vmatprep.subr.mxu0 0.0
        %710 = vmatpush1.msra.mxu0 0.0
        %711 = vmatprep.subr.mxu0 0.0
        %712 = vmatpush1.msra.mxu0 0.0
        %713 = vmatprep.subr.mxu0 0.0
        %714 = vmatpush1.msra.mxu0 0.0
        %715 = vmatprep.subr.mxu0 0.0
        %716 = vmatpush1.msra.mxu0 0.0
        %717 = vmatprep.subr.mxu0 0.0
        %718 = vmatpush1.msra.mxu0 0.0
        %719 = vmatprep.subr.mxu0 0.0
        %720 = vmatpush1.msra.mxu0 0.0
        %721 = vmatprep.subr.mxu0 0.0
        %722 = vmatpush1.msra.mxu0 0.0
        %723 = vmatprep.subr.mxu0 0.0
        %724 = vmatpush1.msra.mxu0 0.0
        %725 = vmatprep.subr.mxu0 0.0
        %726 = vmatpush1.msra.mxu0 0.0
        %727 = vmatprep.subr.mxu0 0.0
        %728 = vmatpush1.msra.mxu0 0.0
        %729 = vmatprep.subr.mxu0 0.0
        %730 = vmatpush1.msra.mxu0 0.0
        %731 = vmatprep.subr.mxu0 0.0
        %732 = vmatpush1.msra.mxu0 0.0
        %733 = vmatprep.subr.mxu0 0.0
        %734 = vmatpush1.msra.mxu0 0.0
        %735 = vmatprep.subr.mxu0 0.0
        %736 = vmatpush1.msra.mxu0 0.0
        %737 = vmatprep.subr.mxu0 0.0
        %738 = vmatpush1.msra.mxu0 0.0
        %739 = vmatprep.subr.mxu0 0.0
        %740 = vmatpush1.msra.mxu0 0.0
        %741 = vmatprep.subr.mxu0 0.0
        %742 = vmatpush1.msra.mxu0 0.0
        %743 = vmatprep.subr.mxu0 0.0
        %744 = vmatpush1.msra.mxu0 0.0
        %745 = vmatprep.subr.mxu0 0.0
        %746 = vmatpush1.msra.mxu0 0.0
        %747 = vmatprep.subr.mxu0 0.0
        %748 = vmatpush1.msra.mxu0 0.0
        %749 = vmatprep.subr.mxu0 0.0
        %750 = vmatpush1.msra.mxu0 0.0
        %751 = vmatprep.subr.mxu0 0.0
        %752 = vmatpush1.msra.mxu0 0.0
        %753 = vmatprep.subr.mxu0 0.0
        %754 = vmatpush1.msra.mxu0 0.0
        %755 = vmatprep.mubr.f32.mxu0 0.0
        %756 = vmatmul.mubr.f32.gmra.mrb[0].mxu0 %v402
        %v757 = vpop.f32.mrb[0].mxu0
        %v758 = vadd.f32 0.0, %v757
        %v759 = vpop.f32.mrb[0].mxu0
        %760 = vmatprep.mubr.f32.mxu0 0.0
        %761 = vmatmul.mubr.f32.gmra.mrb[0].mxu0 %v405
        %v762 = vpop.f32.mrb[0].mxu0
        %v763 = vadd.f32 0.0, %v762
        %v764 = vpop.f32.mrb[0].mxu0
        %765 = vmatprep.mubr.f32.mxu0 0.0
        %766 = vmatmul.mubr.f32.gmra.mrb[0].mxu0 %v408
        %v767 = vpop.f32.mrb[0].mxu0
        %v768 = vadd.f32 0.0, %v767
        %v769 = vpop.f32.mrb[0].mxu0
        %770 = vmatprep.mubr.f32.mxu0 0.0
        %771 = vmatmul.mubr.f32.gmra.mrb[0].mxu0 %v411
        %v772 = vpop.f32.mrb[0].mxu0
        %v773 = vadd.f32 0.0, %v772
        %v774 = vpop.f32.mrb[0].mxu0
        %775 = vmatprep.mubr.f32.mxu0 0.0
        %776 = vmatmul.mubr.f32.gmra.mrb[0].mxu0 %v414
        %v777 = vpop.f32.mrb[0].mxu0
        %v778 = vadd.f32 0.0, %v777
        %v779 = vpop.f32.mrb[0].mxu0
        %780 = vmatprep.mubr.f32.mxu0 0.0
        %781 = vmatmul.mubr.f32.gmra.mrb[0].mxu0 %v417
        %v782 = vpop.f32.mrb[0].mxu0
        %v783 = vadd.f32 0.0, %v782
        %v784 = vpop.f32.mrb[0].mxu0
        %785 = vmatprep.mubr.f32.mxu0 0.0
        %786 = vmatmul.mubr.f32.gmra.mrb[0].mxu0 %v420
        %v787 = vpop.f32.mrb[0].mxu0
        %v788 = vadd.f32 0.0, %v787
        %v789 = vpop.f32.mrb[0].mxu0
        %790 = vmatprep.mubr.f32.mxu0 0.0
        %791 = vmatmul.mubr.f32.gmra.mrb[0].mxu0 %v423
        %v792 = vpop.f32.mrb[0].mxu0
        %v793 = vadd.f32 0.0, %v792
        %v794 = vpop.f32.mrb[0].mxu0
        %795 = vmatprep.mubr.f32.mxu0 0.0
        %796 = vmatmul.mubr.f32.gmra.mrb[0].mxu0 %v426
        %v797 = vpop.f32.mrb[0].mxu0
        %v798 = vadd.f32 0.0, %v797
        %v799 = vpop.f32.mrb[0].mxu0
        %800 = vmatprep.mubr.f32.mxu0 0.0
        %801 = vmatmul.mubr.f32.gmra.mrb[0].mxu0 %v429
        %v802 = vpop.f32.mrb[0].mxu0
        %v803 = vadd.f32 0.0, %v802
        %v804 = vpop.f32.mrb[0].mxu0
        %805 = vmatprep.mubr.f32.mxu0 0.0
        %806 = vmatmul.mubr.f32.gmra.mrb[0].mxu0 %v432
        %v807 = vpop.f32.mrb[0].mxu0
        %v808 = vadd.f32 0.0, %v807
        %v809 = vpop.f32.mrb[0].mxu0
        %810 = vmatprep.mubr.f32.mxu0 0.0
        %811 = vmatmul.mubr.f32.gmra.mrb[0].mxu0 %v435
        %v812 = vpop.f32.mrb[0].mxu0
        %v813 = vadd.f32 0.0, %v812
        %v814 = vpop.f32.mrb[0].mxu0
        %815 = vmatprep.mubr.f32.mxu0 0.0
        %816 = vmatmul.mubr.f32.gmra.mrb[0].mxu0 %v438
        %v817 = vpop.f32.mrb[0].mxu0
        %v818 = vadd.f32 0.0, %v817
        %v819 = vpop.f32.mrb[0].mxu0
        %820 = vmatprep.mubr.f32.mxu0 0.0
        %821 = vmatmul.mubr.f32.gmra.mrb[0].mxu0 %v441
        %v822 = vpop.f32.mrb[0].mxu0
        %v823 = vadd.f32 0.0, %v822
        %v824 = vpop.f32.mrb[0].mxu0
        %825 = vdwg.mxu0
        %833 = vrot.lane.b32.xlu0 %v793, 32
        %v834 = vpop.permute.xlu0 %833
        %835 = vrot.lane.b32.xlu0 %v798, 32
        %v836 = vpop.permute.xlu0 %835
        %837 = vrot.lane.b32.xlu0 %v803, 32
        %v838 = vpop.permute.xlu0 %837
        %839 = vrot.lane.b32.xlu0 %v808, 32
        %v840 = vpop.permute.xlu0 %839
        %841 = vrot.lane.b32.xlu0 %v813, 32
        %v842 = vpop.permute.xlu0 %841
        %843 = vrot.lane.b32.xlu0 %v818, 32
        %v844 = vpop.permute.xlu0 %843
        %845 = vrot.lane.b32.xlu0 %v823, 32
        %v846 = vpop.permute.xlu0 %845
        %vm854 = vcmask 261120
        %v855 = vsel %vm854, %v758, %v834
        %v856 = vsel %vm854, %v763, %v836
        %v857 = vsel %vm854, %v768, %v838
        %v858 = vsel %vm854, %v773, %v840
        %v859 = vsel %vm854, %v778, %v842
        %v860 = vsel %vm854, %v783, %v844
        %v861 = vsel %vm854, %v788, %v846
        %v862 = vld [vmem:[%s2] sm:$0xff]
        %v863 = vld [vmem:[%s2 + $0x8] sm:$0xff]
        %v864 = vld [vmem:[%s2 + $0x10] sm:$0xff]
        %v865 = vld [vmem:[%s2 + $0x18] sm:$0xff]
        %v866 = vld [vmem:[%s2 + $0x20] sm:$0xff]
        %v867 = vld [vmem:[%s2 + $0x28] sm:$0xff]
        %v868 = vld [vmem:[%s2 + $0x30] sm:$0xff]
        %v869 = vld [vmem:[%s2 + $0x38] sm:$0xff]
        %v870 = vld [vmem:[%s4] sm:$0x1]
        %v871 = vlaneseq
        %v872 = vshrl.u32 %v871, 7
        %v873 = vsub.s32 0, %v872
        %v874 = vrot.slane %v870, %v873
        %v875 = vmul.f32 %v595, %v874
        %v876 = vmul.f32 %v598, %v874
        %v877 = vmul.f32 %v601, %v874
        %v878 = vmul.f32 %v604, %v874
        %v879 = vmul.f32 %v607, %v874
        %v880 = vmul.f32 %v610, %v874
        %v881 = vmul.f32 %v613, %v874
        %vm882 = vcmask 523264
        %v884 = vsel %vm882, %v855, 0
        %v887 = vsel %vm882, %v856, 0
        %v890 = vsel %vm882, %v857, 0
        %v893 = vsel %vm882, %v858, 0
        %v896 = vsel %vm882, %v859, 0
        %v899 = vsel %vm882, %v860, 0
        %v902 = vsel %vm882, %v861, 0
        %904 = vmatprep.subr.mxu0 0.0
        %905 = vmatpush1.msra.mxu0 %v862
        %906 = vmatprep.subr.mxu0 0.0
        %907 = vmatpush1.msra.mxu0 %v863
        %908 = vmatprep.subr.mxu0 0.0
        %909 = vmatpush1.msra.mxu0 %v864
        %910 = vmatprep.subr.mxu0 0.0
        %911 = vmatpush1.msra.mxu0 %v865
        %912 = vmatprep.subr.mxu0 0.0
        %913 = vmatpush1.msra.mxu0 %v866
        %914 = vmatprep.subr.mxu0 0.0
        %915 = vmatpush1.msra.mxu0 %v867
        %916 = vmatprep.subr.mxu0 0.0
        %917 = vmatpush1.msra.mxu0 %v868
        %918 = vmatprep.subr.mxu0 0.0
        %919 = vmatpush1.msra.mxu0 %v869
        %920 = vmatprep.subr.mxu0 0.0
        %921 = vmatpush1.msra.mxu0 0.0
        %922 = vmatprep.subr.mxu0 0.0
        %923 = vmatpush1.msra.mxu0 0.0
        %924 = vmatprep.subr.mxu0 0.0
        %925 = vmatpush1.msra.mxu0 0.0
        %926 = vmatprep.subr.mxu0 0.0
        %927 = vmatpush1.msra.mxu0 0.0
        %928 = vmatprep.subr.mxu0 0.0
        %929 = vmatpush1.msra.mxu0 0.0
        %930 = vmatprep.subr.mxu0 0.0
        %931 = vmatpush1.msra.mxu0 0.0
        %932 = vmatprep.subr.mxu0 0.0
        %933 = vmatpush1.msra.mxu0 0.0
        %934 = vmatprep.subr.mxu0 0.0
        %935 = vmatpush1.msra.mxu0 0.0
        %936 = vmatprep.subr.mxu0 0.0
        %937 = vmatpush1.msra.mxu0 0.0
        %938 = vmatprep.subr.mxu0 0.0
        %939 = vmatpush1.msra.mxu0 0.0
        %940 = vmatprep.subr.mxu0 0.0
        %941 = vmatpush1.msra.mxu0 0.0
        %942 = vmatprep.subr.mxu0 0.0
        %943 = vmatpush1.msra.mxu0 0.0
        %944 = vmatprep.subr.mxu0 0.0
        %945 = vmatpush1.msra.mxu0 0.0
        %946 = vmatprep.subr.mxu0 0.0
        %947 = vmatpush1.msra.mxu0 0.0
        %948 = vmatprep.subr.mxu0 0.0
        %949 = vmatpush1.msra.mxu0 0.0
        %950 = vmatprep.subr.mxu0 0.0
        %951 = vmatpush1.msra.mxu0 0.0
        %952 = vmatprep.subr.mxu0 0.0
        %953 = vmatpush1.msra.mxu0 0.0
        %954 = vmatprep.subr.mxu0 0.0
        %955 = vmatpush1.msra.mxu0 0.0
        %956 = vmatprep.subr.mxu0 0.0
        %957 = vmatpush1.msra.mxu0 0.0
        %958 = vmatprep.subr.mxu0 0.0
        %959 = vmatpush1.msra.mxu0 0.0
        %960 = vmatprep.subr.mxu0 0.0
        %961 = vmatpush1.msra.mxu0 0.0
        %962 = vmatprep.subr.mxu0 0.0
        %963 = vmatpush1.msra.mxu0 0.0
        %964 = vmatprep.subr.mxu0 0.0
        %965 = vmatpush1.msra.mxu0 0.0
        %966 = vmatprep.subr.mxu0 0.0
        %967 = vmatpush1.msra.mxu0 0.0
        %968 = vmatprep.mubr.f32.mxu0 0.0
        %969 = vmatmul.mubr.f32.gmra.mrb[0].mxu0 %v884
        %v970 = vpop.f32.mrb[0].mxu0
        %v971 = vadd.f32 %v875, %v970
        %v972 = vpop.f32.mrb[0].mxu0
        %973 = vmatprep.mubr.f32.mxu0 0.0
        %974 = vmatmul.mubr.f32.gmra.mrb[0].mxu0 %v887
        %v975 = vpop.f32.mrb[0].mxu0
        %v976 = vadd.f32 %v876, %v975
        %v977 = vpop.f32.mrb[0].mxu0
        %978 = vmatprep.mubr.f32.mxu0 0.0
        %979 = vmatmul.mubr.f32.gmra.mrb[0].mxu0 %v890
        %v980 = vpop.f32.mrb[0].mxu0
        %v981 = vadd.f32 %v877, %v980
        %v982 = vpop.f32.mrb[0].mxu0
        %983 = vmatprep.mubr.f32.mxu0 0.0
        %984 = vmatmul.mubr.f32.gmra.mrb[0].mxu0 %v893
        %v985 = vpop.f32.mrb[0].mxu0
        %v986 = vadd.f32 %v878, %v985
        %v987 = vpop.f32.mrb[0].mxu0
        %988 = vmatprep.mubr.f32.mxu0 0.0
        %989 = vmatmul.mubr.f32.gmra.mrb[0].mxu0 %v896
        %v990 = vpop.f32.mrb[0].mxu0
        %v991 = vadd.f32 %v879, %v990
        %v992 = vpop.f32.mrb[0].mxu0
        %993 = vmatprep.mubr.f32.mxu0 0.0
        %994 = vmatmul.mubr.f32.gmra.mrb[0].mxu0 %v899
        %v995 = vpop.f32.mrb[0].mxu0
        %v996 = vadd.f32 %v880, %v995
        %v997 = vpop.f32.mrb[0].mxu0
        %998 = vmatprep.mubr.f32.mxu0 0.0
        %999 = vmatmul.mubr.f32.gmra.mrb[0].mxu0 %v902
        %v1000 = vpop.f32.mrb[0].mxu0
        %v1001 = vadd.f32 %v881, %v1000
        %v1002 = vpop.f32.mrb[0].mxu0
        %1003 = vdwg.mxu0
        %v1004 = vld [vmem:[%s4 + $0x1] sm:$0x1]
        %1006 = vset.pattern.permute.xlu0 0
        %1007 = vperm.xlu0 %1006, %v378
        %v1008 = vpop.permute.xlu0 %1007
        %1011 = vset.pattern.permute.xlu0 0
        %1012 = vperm.xlu0 %1011, %v379
        %v1013 = vpop.permute.xlu0 %1012
        %1016 = vset.pattern.permute.xlu0 0
        %1017 = vperm.xlu0 %1016, %v380
        %v1018 = vpop.permute.xlu0 %1017
        %1021 = vset.pattern.permute.xlu0 0
        %1022 = vperm.xlu0 %1021, %v381
        %v1023 = vpop.permute.xlu0 %1022
        %1026 = vset.pattern.permute.xlu0 0
        %1027 = vperm.xlu0 %1026, %v382
        %v1028 = vpop.permute.xlu0 %1027
        %1031 = vset.pattern.permute.xlu0 0
        %1032 = vperm.xlu0 %1031, %v383
        %v1033 = vpop.permute.xlu0 %1032
        %1036 = vset.pattern.permute.xlu0 0
        %1037 = vperm.xlu0 %1036, %v384
        %v1038 = vpop.permute.xlu0 %1037
        %v1040 = vlaneseq
        %v1041 = vshrl.u32 %v1040, 7
        %v1042 = vsub.s32 0, %v1041
        %v1043 = vrot.slane %v1004, %v1042
        %v1044 = vmul.f32 %v1008, %v1043
        %v1045 = vmul.f32 %v1013, %v1043
        %v1046 = vmul.f32 %v1018, %v1043
        %v1047 = vmul.f32 %v1023, %v1043
        %v1048 = vmul.f32 %v1028, %v1043
        %v1049 = vmul.f32 %v1033, %v1043
        %v1050 = vmul.f32 %v1038, %v1043
        %v1051 = vadd.f32 %v971, %v1044
        %v1052 = vadd.f32 %v976, %v1045
        %v1053 = vadd.f32 %v981, %v1046
        %v1054 = vadd.f32 %v986, %v1047
        %v1055 = vadd.f32 %v991, %v1048
        %v1056 = vadd.f32 %v996, %v1049
        %v1057 = vadd.f32 %v1001, %v1050
        %v1058 = vld [vmem:[%s4 + $0x2] sm:$0x1]
        %v1059 = vlaneseq
        %v1060 = vshrl.u32 %v1059, 7
        %v1061 = vsub.s32 0, %v1060
        %v1062 = vrot.slane %v1058, %v1061
        %v1063 = vadd.f32 %v1051, %v1062
        %v1064 = vadd.f32 %v1052, %v1062
        %v1065 = vadd.f32 %v1053, %v1062
        %v1066 = vadd.f32 %v1054, %v1062
        %v1067 = vadd.f32 %v1055, %v1062
        %v1068 = vadd.f32 %v1056, %v1062
        %v1069 = vadd.f32 %v1057, %v1062
        %v1070 = vsub.f32 0.0, %v1063
        %v1071 = vsub.f32 0.0, %v1064
        %v1072 = vsub.f32 0.0, %v1065
        %v1073 = vsub.f32 0.0, %v1066
        %v1074 = vsub.f32 0.0, %v1067
        %v1075 = vsub.f32 0.0, %v1068
        %v1076 = vsub.f32 0.0, %v1069
        %v1077 = vmul.f32 %v1070, 1.442695
        %v1078 = vpow.pop %v1077
        %v1079 = vmul.f32 %v1071, 1.442695
        %v1080 = vpow.pop %v1079
        %v1081 = vmul.f32 %v1072, 1.442695
        %v1082 = vpow.pop %v1081
        %v1083 = vmul.f32 %v1073, 1.442695
        %v1084 = vpow.pop %v1083
        %v1085 = vmul.f32 %v1074, 1.442695
        %v1086 = vpow.pop %v1085
        %v1087 = vmul.f32 %v1075, 1.442695
        %v1088 = vpow.pop %v1087
        %v1089 = vmul.f32 %v1076, 1.442695
        %v1090 = vpow.pop %v1089
        %v1091 = vadd.f32 %v1078, 1.0
        %v1092 = vadd.f32 %v1080, 1.0
        %v1093 = vadd.f32 %v1082, 1.0
        %v1094 = vadd.f32 %v1084, 1.0
        %v1095 = vadd.f32 %v1086, 1.0
        %v1096 = vadd.f32 %v1088, 1.0
        %v1097 = vadd.f32 %v1090, 1.0
        %v1098 = vrcp.pop %v1091
        %v1099 = vrcp.pop %v1092
        %v1100 = vrcp.pop %v1093
        %v1101 = vrcp.pop %v1094
        %v1102 = vrcp.pop %v1095
        %v1103 = vrcp.pop %v1096
        %v1104 = vrcp.pop %v1097
        %v1105 = vmul.f32 %v1063, %v1098
        %v1106 = vmul.f32 %v1064, %v1099
        %v1107 = vmul.f32 %v1065, %v1100
        %v1108 = vmul.f32 %v1066, %v1101
        %v1109 = vmul.f32 %v1067, %v1102
        %v1110 = vmul.f32 %v1068, %v1103
        %v1111 = vmul.f32 %v1069, %v1104
        %v1112 = vld [vmem:[%s3] sm:$0xff]
        %v1113 = vld [vmem:[%s3 + $0x8] sm:$0xff]
        %v1114 = vld [vmem:[%s3 + $0x10] sm:$0xff]
        %v1115 = vld [vmem:[%s3 + $0x18] sm:$0xff]
        %v1116 = vld [vmem:[%s4 + $0x3] sm:$0x1]
        %v1117 = vlaneseq
        %v1118 = vshrl.u32 %v1117, 7
        %v1119 = vsub.s32 0, %v1118
        %v1120 = vrot.slane %v1116, %v1119
        %v1122 = vsel %vm854, %v1105, 0
        %v1125 = vsel %vm854, %v1106, 0
        %v1128 = vsel %vm854, %v1107, 0
        %v1131 = vsel %vm854, %v1108, 0
        %v1134 = vsel %vm854, %v1109, 0
        %v1137 = vsel %vm854, %v1110, 0
        %v1140 = vsel %vm854, %v1111, 0
        %1142 = vmatprep.subr.mxu0 0.0
        %1143 = vmatpush1.msra.mxu0 %v1112
        %1144 = vmatprep.subr.mxu0 0.0
        %1145 = vmatpush1.msra.mxu0 %v1113
        %1146 = vmatprep.subr.mxu0 0.0
        %1147 = vmatpush1.msra.mxu0 %v1114
        %1148 = vmatprep.subr.mxu0 0.0
        %1149 = vmatpush1.msra.mxu0 %v1115
        %1150 = vmatprep.subr.mxu0 0.0
        %1151 = vmatpush1.msra.mxu0 0.0
        %1152 = vmatprep.subr.mxu0 0.0
        %1153 = vmatpush1.msra.mxu0 0.0
        %1154 = vmatprep.subr.mxu0 0.0
        %1155 = vmatpush1.msra.mxu0 0.0
        %1156 = vmatprep.subr.mxu0 0.0
        %1157 = vmatpush1.msra.mxu0 0.0
        %1158 = vmatprep.subr.mxu0 0.0
        %1159 = vmatpush1.msra.mxu0 0.0
        %1160 = vmatprep.subr.mxu0 0.0
        %1161 = vmatpush1.msra.mxu0 0.0
        %1162 = vmatprep.subr.mxu0 0.0
        %1163 = vmatpush1.msra.mxu0 0.0
        %1164 = vmatprep.subr.mxu0 0.0
        %1165 = vmatpush1.msra.mxu0 0.0
        %1166 = vmatprep.subr.mxu0 0.0
        %1167 = vmatpush1.msra.mxu0 0.0
        %1168 = vmatprep.subr.mxu0 0.0
        %1169 = vmatpush1.msra.mxu0 0.0
        %1170 = vmatprep.subr.mxu0 0.0
        %1171 = vmatpush1.msra.mxu0 0.0
        %1172 = vmatprep.subr.mxu0 0.0
        %1173 = vmatpush1.msra.mxu0 0.0
        %1174 = vmatprep.subr.mxu0 0.0
        %1175 = vmatpush1.msra.mxu0 0.0
        %1176 = vmatprep.subr.mxu0 0.0
        %1177 = vmatpush1.msra.mxu0 0.0
        %1178 = vmatprep.subr.mxu0 0.0
        %1179 = vmatpush1.msra.mxu0 0.0
        %1180 = vmatprep.subr.mxu0 0.0
        %1181 = vmatpush1.msra.mxu0 0.0
        %1182 = vmatprep.subr.mxu0 0.0
        %1183 = vmatpush1.msra.mxu0 0.0
        %1184 = vmatprep.subr.mxu0 0.0
        %1185 = vmatpush1.msra.mxu0 0.0
        %1186 = vmatprep.subr.mxu0 0.0
        %1187 = vmatpush1.msra.mxu0 0.0
        %1188 = vmatprep.subr.mxu0 0.0
        %1189 = vmatpush1.msra.mxu0 0.0
        %1190 = vmatprep.subr.mxu0 0.0
        %1191 = vmatpush1.msra.mxu0 0.0
        %1192 = vmatprep.subr.mxu0 0.0
        %1193 = vmatpush1.msra.mxu0 0.0
        %1194 = vmatprep.subr.mxu0 0.0
        %1195 = vmatpush1.msra.mxu0 0.0
        %1196 = vmatprep.subr.mxu0 0.0
        %1197 = vmatpush1.msra.mxu0 0.0
        %1198 = vmatprep.subr.mxu0 0.0
        %1199 = vmatpush1.msra.mxu0 0.0
        %1200 = vmatprep.subr.mxu0 0.0
        %1201 = vmatpush1.msra.mxu0 0.0
        %1202 = vmatprep.subr.mxu0 0.0
        %1203 = vmatpush1.msra.mxu0 0.0
        %1204 = vmatprep.subr.mxu0 0.0
        %1205 = vmatpush1.msra.mxu0 0.0
        %1206 = vmatprep.mubr.f32.mxu0 0.0
        %1207 = vmatmul.mubr.f32.gmra.mrb[0].mxu0 %v1122
        %v1208 = vpop.f32.mrb[0].mxu0
        %v1209 = vadd.f32 %v1120, %v1208
        %v1210 = vpop.f32.mrb[0].mxu0
        %1211 = vmatprep.mubr.f32.mxu0 0.0
        %1212 = vmatmul.mubr.f32.gmra.mrb[0].mxu0 %v1125
        %v1213 = vpop.f32.mrb[0].mxu0
        %v1214 = vadd.f32 %v1120, %v1213
        %v1215 = vpop.f32.mrb[0].mxu0
        %1216 = vmatprep.mubr.f32.mxu0 0.0
        %1217 = vmatmul.mubr.f32.gmra.mrb[0].mxu0 %v1128
        %v1218 = vpop.f32.mrb[0].mxu0
        %v1219 = vadd.f32 %v1120, %v1218
        %v1220 = vpop.f32.mrb[0].mxu0
        %1221 = vmatprep.mubr.f32.mxu0 0.0
        %1222 = vmatmul.mubr.f32.gmra.mrb[0].mxu0 %v1131
        %v1223 = vpop.f32.mrb[0].mxu0
        %v1224 = vadd.f32 %v1120, %v1223
        %v1225 = vpop.f32.mrb[0].mxu0
        %1226 = vmatprep.mubr.f32.mxu0 0.0
        %1227 = vmatmul.mubr.f32.gmra.mrb[0].mxu0 %v1134
        %v1228 = vpop.f32.mrb[0].mxu0
        %v1229 = vadd.f32 %v1120, %v1228
        %v1230 = vpop.f32.mrb[0].mxu0
        %1231 = vmatprep.mubr.f32.mxu0 0.0
        %1232 = vmatmul.mubr.f32.gmra.mrb[0].mxu0 %v1137
        %v1233 = vpop.f32.mrb[0].mxu0
        %v1234 = vadd.f32 %v1120, %v1233
        %v1235 = vpop.f32.mrb[0].mxu0
        %1236 = vmatprep.mubr.f32.mxu0 0.0
        %1237 = vmatmul.mubr.f32.gmra.mrb[0].mxu0 %v1140
        %v1238 = vpop.f32.mrb[0].mxu0
        %v1239 = vadd.f32 %v1120, %v1238
        %v1240 = vpop.f32.mrb[0].mxu0
        %1241 = vdwg.mxu0
        %v1242 = vsub.f32 0.0, %v1209
        %v1243 = vsub.f32 0.0, %v1214
        %v1244 = vsub.f32 0.0, %v1219
        %v1245 = vsub.f32 0.0, %v1224
        %v1246 = vsub.f32 0.0, %v1229
        %v1247 = vsub.f32 0.0, %v1234
        %v1248 = vsub.f32 0.0, %v1239
        %v1249 = vmul.f32 %v1242, 1.442695
        %v1250 = vpow.pop %v1249
        %v1251 = vmul.f32 %v1243, 1.442695
        %v1252 = vpow.pop %v1251
        %v1253 = vmul.f32 %v1244, 1.442695
        %v1254 = vpow.pop %v1253
        %v1255 = vmul.f32 %v1245, 1.442695
        %v1256 = vpow.pop %v1255
        %v1257 = vmul.f32 %v1246, 1.442695
        %v1258 = vpow.pop %v1257
        %v1259 = vmul.f32 %v1247, 1.442695
        %v1260 = vpow.pop %v1259
        %v1261 = vmul.f32 %v1248, 1.442695
        %v1262 = vpow.pop %v1261
        %v1263 = vadd.f32 %v1250, 1.0
        %v1264 = vadd.f32 %v1252, 1.0
        %v1265 = vadd.f32 %v1254, 1.0
        %v1266 = vadd.f32 %v1256, 1.0
        %v1267 = vadd.f32 %v1258, 1.0
        %v1268 = vadd.f32 %v1260, 1.0
        %v1269 = vadd.f32 %v1262, 1.0
        %v1270 = vrcp.pop %v1263
        %v1271 = vrcp.pop %v1264
        %v1272 = vrcp.pop %v1265
        %v1273 = vrcp.pop %v1266
        %v1274 = vrcp.pop %v1267
        %v1275 = vrcp.pop %v1268
        %v1276 = vrcp.pop %v1269
        %v1277 = vmul.f32 %v1209, %v1270
        %v1278 = vmul.f32 %v1214, %v1271
        %v1279 = vmul.f32 %v1219, %v1272
        %v1280 = vmul.f32 %v1224, %v1273
        %v1281 = vmul.f32 %v1229, %v1274
        %v1282 = vmul.f32 %v1234, %v1275
        %v1283 = vmul.f32 %v1239, %v1276
        %v1284 = vld [vmem:[%s4 + $0x4] sm:$0x1]
        %v1285 = vlaneseq
        %v1286 = vshrl.u32 %v1285, 7
        %v1287 = vsub.s32 0, %v1286
        %v1288 = vrot.slane %v1284, %v1287
        %v1289 = vmul.f32 %v1277, %v1288
        %v1290 = vmul.f32 %v1278, %v1288
        %v1291 = vmul.f32 %v1279, %v1288
        %v1292 = vmul.f32 %v1280, %v1288
        %v1293 = vmul.f32 %v1281, %v1288
        %v1294 = vmul.f32 %v1282, %v1288
        %v1295 = vmul.f32 %v1283, %v1288
        %v1296 = vsel %vm854, %v1289, 0.0
        %1297 = vadd.xlane.f32.xlu0 %v1296
        %v1298 = vpop.xlane.xlu0 %1297
        %v1299 = vsel %vm854, %v1290, 0.0
        %1300 = vadd.xlane.f32.xlu0 %v1299
        %v1301 = vpop.xlane.xlu0 %1300
        %v1302 = vsel %vm854, %v1291, 0.0
        %1303 = vadd.xlane.f32.xlu0 %v1302
        %v1304 = vpop.xlane.xlu0 %1303
        %v1305 = vsel %vm854, %v1292, 0.0
        %1306 = vadd.xlane.f32.xlu0 %v1305
        %v1307 = vpop.xlane.xlu0 %1306
        %v1308 = vsel %vm854, %v1293, 0.0
        %1309 = vadd.xlane.f32.xlu0 %v1308
        %v1310 = vpop.xlane.xlu0 %1309
        %v1311 = vsel %vm854, %v1294, 0.0
        %1312 = vadd.xlane.f32.xlu0 %v1311
        %v1313 = vpop.xlane.xlu0 %1312
        %v1314 = vsel %vm854, %v1295, 0.0
        %1315 = vadd.xlane.f32.xlu0 %v1314
        %v1316 = vpop.xlane.xlu0 %1315
        %v1317 = vld [vmem:[%s4 + $0x7] sm:$0x1]
        %v1318 = vlaneseq
        %v1319 = vshrl.u32 %v1318, 7
        %v1320 = vsub.s32 0, %v1319
        %v1321 = vrot.slane %v1317, %v1320
        %v1322 = vadd.f32 %v1298, %v1321
        %v1323 = vadd.f32 %v1301, %v1321
        %v1324 = vadd.f32 %v1304, %v1321
        %v1325 = vadd.f32 %v1307, %v1321
        %v1326 = vadd.f32 %v1310, %v1321
        %v1327 = vadd.f32 %v1313, %v1321
        %v1328 = vadd.f32 %v1316, %v1321
        %v1329 = vsub.f32 0.0, %v1322
        %v1330 = vsub.f32 0.0, %v1323
        %v1331 = vsub.f32 0.0, %v1324
        %v1332 = vsub.f32 0.0, %v1325
        %v1333 = vsub.f32 0.0, %v1326
        %v1334 = vsub.f32 0.0, %v1327
        %v1335 = vsub.f32 0.0, %v1328
        %v1336 = vmul.f32 %v1329, 1.442695
        %v1337 = vpow.pop %v1336
        %v1338 = vmul.f32 %v1330, 1.442695
        %v1339 = vpow.pop %v1338
        %v1340 = vmul.f32 %v1331, 1.442695
        %v1341 = vpow.pop %v1340
        %v1342 = vmul.f32 %v1332, 1.442695
        %v1343 = vpow.pop %v1342
        %v1344 = vmul.f32 %v1333, 1.442695
        %v1345 = vpow.pop %v1344
        %v1346 = vmul.f32 %v1334, 1.442695
        %v1347 = vpow.pop %v1346
        %v1348 = vmul.f32 %v1335, 1.442695
        %v1349 = vpow.pop %v1348
        %v1350 = vadd.f32 %v1337, 1.0
        %v1351 = vadd.f32 %v1339, 1.0
        %v1352 = vadd.f32 %v1341, 1.0
        %v1353 = vadd.f32 %v1343, 1.0
        %v1354 = vadd.f32 %v1345, 1.0
        %v1355 = vadd.f32 %v1347, 1.0
        %v1356 = vadd.f32 %v1349, 1.0
        %v1357 = vrcp.pop %v1350
        %v1358 = vrcp.pop %v1351
        %v1359 = vrcp.pop %v1352
        %v1360 = vrcp.pop %v1353
        %v1361 = vrcp.pop %v1354
        %v1362 = vrcp.pop %v1355
        %v1363 = vrcp.pop %v1356
        %1365 = vset.pattern.permute.xlu0 0
        %1366 = vperm.xlu0 %1365, %v1357
        %v1367 = vpop.permute.xlu0 %1366
        %1370 = vset.pattern.permute.xlu0 0
        %1371 = vperm.xlu0 %1370, %v1358
        %v1372 = vpop.permute.xlu0 %1371
        %1375 = vset.pattern.permute.xlu0 0
        %1376 = vperm.xlu0 %1375, %v1359
        %v1377 = vpop.permute.xlu0 %1376
        %1380 = vset.pattern.permute.xlu0 0
        %1381 = vperm.xlu0 %1380, %v1360
        %v1382 = vpop.permute.xlu0 %1381
        %1385 = vset.pattern.permute.xlu0 0
        %1386 = vperm.xlu0 %1385, %v1361
        %v1387 = vpop.permute.xlu0 %1386
        %1390 = vset.pattern.permute.xlu0 0
        %1391 = vperm.xlu0 %1390, %v1362
        %v1392 = vpop.permute.xlu0 %1391
        %1395 = vset.pattern.permute.xlu0 0
        %1396 = vperm.xlu0 %1395, %v1363
        %v1397 = vpop.permute.xlu0 %1396
        %v1399 = vmul.f32 %v1277, %v1367
        %v1400 = vmul.f32 %v1278, %v1372
        %v1401 = vmul.f32 %v1279, %v1377
        %v1402 = vmul.f32 %v1280, %v1382
        %v1403 = vmul.f32 %v1281, %v1387
        %v1404 = vmul.f32 %v1282, %v1392
        %v1405 = vmul.f32 %v1283, %v1397
        %1406 = vset.pattern.permute.xlu0 1
        %1407 = vperm.xlu0 %1406, %v378
        %v1408 = vpop.permute.xlu0 %1407
        %1410 = vset.pattern.permute.xlu0 1
        %1411 = vperm.xlu0 %1410, %v379
        %v1412 = vpop.permute.xlu0 %1411
        %1414 = vset.pattern.permute.xlu0 1
        %1415 = vperm.xlu0 %1414, %v380
        %v1416 = vpop.permute.xlu0 %1415
        %1418 = vset.pattern.permute.xlu0 1
        %1419 = vperm.xlu0 %1418, %v381
        %v1420 = vpop.permute.xlu0 %1419
        %1422 = vset.pattern.permute.xlu0 1
        %1423 = vperm.xlu0 %1422, %v382
        %v1424 = vpop.permute.xlu0 %1423
        %1426 = vset.pattern.permute.xlu0 1
        %1427 = vperm.xlu0 %1426, %v383
        %v1428 = vpop.permute.xlu0 %1427
        %1430 = vset.pattern.permute.xlu0 1
        %1431 = vperm.xlu0 %1430, %v384
        %v1432 = vpop.permute.xlu0 %1431
        %v1434 = vmul.f32 %v1399, %v1408
        %v1435 = vmul.f32 %v1400, %v1412
        %v1436 = vmul.f32 %v1401, %v1416
        %v1437 = vmul.f32 %v1402, %v1420
        %v1438 = vmul.f32 %v1403, %v1424
        %v1439 = vmul.f32 %v1404, %v1428
        %v1440 = vmul.f32 %v1405, %v1432
        %vm1441 = vcmask 457728
        %v1443 = vsel %vm1441, %v399, 0
        %1445 = vmatprep.subr.mxu0 0.0
        %1446 = vmatpush1.msra.mxu0 %v1434
        %1447 = vmatprep.subr.mxu0 0.0
        %1448 = vmatpush1.msra.mxu0 %v1435
        %1449 = vmatprep.subr.mxu0 0.0
        %1450 = vmatpush1.msra.mxu0 %v1436
        %1451 = vmatprep.subr.mxu0 0.0
        %1452 = vmatpush1.msra.mxu0 %v1437
        %1453 = vmatprep.subr.mxu0 0.0
        %1454 = vmatpush1.msra.mxu0 %v1438
        %1455 = vmatprep.subr.mxu0 0.0
        %1456 = vmatpush1.msra.mxu0 %v1439
        %1457 = vmatprep.subr.mxu0 0.0
        %1458 = vmatpush1.msra.mxu0 %v1440
        %1459 = vmatprep.subr.mxu0 0.0
        %1460 = vmatpush1.msra.mxu0 0.0
        %1461 = vmatprep.subr.mxu0 0.0
        %1462 = vmatpush1.msra.mxu0 0.0
        %1463 = vmatprep.subr.mxu0 0.0
        %1464 = vmatpush1.msra.mxu0 0.0
        %1465 = vmatprep.subr.mxu0 0.0
        %1466 = vmatpush1.msra.mxu0 0.0
        %1467 = vmatprep.subr.mxu0 0.0
        %1468 = vmatpush1.msra.mxu0 0.0
        %1469 = vmatprep.subr.mxu0 0.0
        %1470 = vmatpush1.msra.mxu0 0.0
        %1471 = vmatprep.subr.mxu0 0.0
        %1472 = vmatpush1.msra.mxu0 0.0
        %1473 = vmatprep.subr.mxu0 0.0
        %1474 = vmatpush1.msra.mxu0 0.0
        %1475 = vmatprep.subr.mxu0 0.0
        %1476 = vmatpush1.msra.mxu0 0.0
        %1477 = vmatprep.subr.mxu0 0.0
        %1478 = vmatpush1.msra.mxu0 0.0
        %1479 = vmatprep.subr.mxu0 0.0
        %1480 = vmatpush1.msra.mxu0 0.0
        %1481 = vmatprep.subr.mxu0 0.0
        %1482 = vmatpush1.msra.mxu0 0.0
        %1483 = vmatprep.subr.mxu0 0.0
        %1484 = vmatpush1.msra.mxu0 0.0
        %1485 = vmatprep.subr.mxu0 0.0
        %1486 = vmatpush1.msra.mxu0 0.0
        %1487 = vmatprep.subr.mxu0 0.0
        %1488 = vmatpush1.msra.mxu0 0.0
        %1489 = vmatprep.subr.mxu0 0.0
        %1490 = vmatpush1.msra.mxu0 0.0
        %1491 = vmatprep.subr.mxu0 0.0
        %1492 = vmatpush1.msra.mxu0 0.0
        %1493 = vmatprep.subr.mxu0 0.0
        %1494 = vmatpush1.msra.mxu0 0.0
        %1495 = vmatprep.subr.mxu0 0.0
        %1496 = vmatpush1.msra.mxu0 0.0
        %1497 = vmatprep.subr.mxu0 0.0
        %1498 = vmatpush1.msra.mxu0 0.0
        %1499 = vmatprep.subr.mxu0 0.0
        %1500 = vmatpush1.msra.mxu0 0.0
        %1501 = vmatprep.subr.mxu0 0.0
        %1502 = vmatpush1.msra.mxu0 0.0
        %1503 = vmatprep.subr.mxu0 0.0
        %1504 = vmatpush1.msra.mxu0 0.0
        %1505 = vmatprep.subr.mxu0 0.0
        %1506 = vmatpush1.msra.mxu0 0.0
        %1507 = vmatprep.subr.mxu0 0.0
        %1508 = vmatpush1.msra.mxu0 0.0
        %1509 = vmatprep.mubr.f32.mxu0 0.0
        %1510 = vmatmul.mubr.f32.gmra.mrb[0].mxu0 %v1443
        %v1511 = vpop.f32.mrb[0].mxu0
        %v1512 = vadd.f32 0.0, %v1511
        %v1513 = vpop.f32.mrb[0].mxu0
        %1514 = vdwg.mxu0
        %v1515 = vmul.f32 %v1512, 0.01
        %1517 = vrot.lane.b32.xlu0 %v1515, 32
        %v1518 = vpop.permute.xlu0 %1517
        %v1520 = vsel %vm854, %v376, %v1518
        %s1521 = scalar_lea.vmem %s2, 64
        %v1522 = vld [vmem:[%s1521] sm:$0xff]
        %v1523 = vld [vmem:[%s1521 + $0x8] sm:$0xff]
        %v1524 = vld [vmem:[%s1521 + $0x10] sm:$0xff]
        %v1525 = vld [vmem:[%s1521 + $0x18] sm:$0xff]
        %v1526 = vld [vmem:[%s1521 + $0x20] sm:$0xff]
        %v1527 = vld [vmem:[%s1521 + $0x28] sm:$0xff]
        %v1528 = vld [vmem:[%s1521 + $0x30] sm:$0xff]
        %v1529 = vld [vmem:[%s1521 + $0x38] sm:$0xff]
        %v1530 = vld [vmem:[%s4 + $0x5] sm:$0x1]
        %v1531 = vlaneseq
        %v1532 = vshrl.u32 %v1531, 7
        %v1533 = vsub.s32 0, %v1532
        %v1534 = vrot.slane %v1530, %v1533
        %v1536 = vsel %vm882, %v1520, 0
        %1538 = vmatprep.subr.mxu0 0.0
        %1539 = vmatpush1.msra.mxu0 %v1522
        %1540 = vmatprep.subr.mxu0 0.0
        %1541 = vmatpush1.msra.mxu0 %v1523
        %1542 = vmatprep.subr.mxu0 0.0
        %1543 = vmatpush1.msra.mxu0 %v1524
        %1544 = vmatprep.subr.mxu0 0.0
        %1545 = vmatpush1.msra.mxu0 %v1525
        %1546 = vmatprep.subr.mxu0 0.0
        %1547 = vmatpush1.msra.mxu0 %v1526
        %1548 = vmatprep.subr.mxu0 0.0
        %1549 = vmatpush1.msra.mxu0 %v1527
        %1550 = vmatprep.subr.mxu0 0.0
        %1551 = vmatpush1.msra.mxu0 %v1528
        %1552 = vmatprep.subr.mxu0 0.0
        %1553 = vmatpush1.msra.mxu0 %v1529
        %1554 = vmatprep.subr.mxu0 0.0
        %1555 = vmatpush1.msra.mxu0 0.0
        %1556 = vmatprep.subr.mxu0 0.0
        %1557 = vmatpush1.msra.mxu0 0.0
        %1558 = vmatprep.subr.mxu0 0.0
        %1559 = vmatpush1.msra.mxu0 0.0
        %1560 = vmatprep.subr.mxu0 0.0
        %1561 = vmatpush1.msra.mxu0 0.0
        %1562 = vmatprep.subr.mxu0 0.0
        %1563 = vmatpush1.msra.mxu0 0.0
        %1564 = vmatprep.subr.mxu0 0.0
        %1565 = vmatpush1.msra.mxu0 0.0
        %1566 = vmatprep.subr.mxu0 0.0
        %1567 = vmatpush1.msra.mxu0 0.0
        %1568 = vmatprep.subr.mxu0 0.0
        %1569 = vmatpush1.msra.mxu0 0.0
        %1570 = vmatprep.subr.mxu0 0.0
        %1571 = vmatpush1.msra.mxu0 0.0
        %1572 = vmatprep.subr.mxu0 0.0
        %1573 = vmatpush1.msra.mxu0 0.0
        %1574 = vmatprep.subr.mxu0 0.0
        %1575 = vmatpush1.msra.mxu0 0.0
        %1576 = vmatprep.subr.mxu0 0.0
        %1577 = vmatpush1.msra.mxu0 0.0
        %1578 = vmatprep.subr.mxu0 0.0
        %1579 = vmatpush1.msra.mxu0 0.0
        %1580 = vmatprep.subr.mxu0 0.0
        %1581 = vmatpush1.msra.mxu0 0.0
        %1582 = vmatprep.subr.mxu0 0.0
        %1583 = vmatpush1.msra.mxu0 0.0
        %1584 = vmatprep.subr.mxu0 0.0
        %1585 = vmatpush1.msra.mxu0 0.0
        %1586 = vmatprep.subr.mxu0 0.0
        %1587 = vmatpush1.msra.mxu0 0.0
        %1588 = vmatprep.subr.mxu0 0.0
        %1589 = vmatpush1.msra.mxu0 0.0
        %1590 = vmatprep.subr.mxu0 0.0
        %1591 = vmatpush1.msra.mxu0 0.0
        %1592 = vmatprep.subr.mxu0 0.0
        %1593 = vmatpush1.msra.mxu0 0.0
        %1594 = vmatprep.subr.mxu0 0.0
        %1595 = vmatpush1.msra.mxu0 0.0
        %1596 = vmatprep.subr.mxu0 0.0
        %1597 = vmatpush1.msra.mxu0 0.0
        %1598 = vmatprep.subr.mxu0 0.0
        %1599 = vmatpush1.msra.mxu0 0.0
        %1600 = vmatprep.subr.mxu0 0.0
        %1601 = vmatpush1.msra.mxu0 0.0
        %1602 = vmatprep.mubr.f32.mxu0 0.0
        %1603 = vmatmul.mubr.f32.gmra.mrb[0].mxu0 %v1536
        %v1604 = vpop.f32.mrb[0].mxu0
        %v1605 = vadd.f32 %v1534, %v1604
        %v1606 = vpop.f32.mrb[0].mxu0
        %1607 = vdwg.mxu0
        %v1608 = vsub.f32 0.0, %v1605
        %v1609 = vmul.f32 %v1608, 1.442695
        %v1610 = vpow.pop %v1609
        %v1611 = vadd.f32 %v1610, 1.0
        %v1612 = vrcp.pop %v1611
        %v1613 = vmul.f32 %v1605, %v1612
        %s1614 = scalar_lea.vmem %s3, 32
        %v1615 = vld [vmem:[%s1614] sm:$0xff]
        %v1616 = vld [vmem:[%s1614 + $0x8] sm:$0xff]
        %v1617 = vld [vmem:[%s1614 + $0x10] sm:$0xff]
        %v1618 = vld [vmem:[%s1614 + $0x18] sm:$0xff]
        %v1619 = vld [vmem:[%s4 + $0x6] sm:$0x1]
        %v1620 = vlaneseq
        %v1621 = vshrl.u32 %v1620, 7
        %v1622 = vsub.s32 0, %v1621
        %v1623 = vrot.slane %v1619, %v1622
        %v1625 = vsel %vm854, %v1613, 0
        %1627 = vmatprep.subr.mxu0 0.0
        %1628 = vmatpush1.msra.mxu0 %v1615
        %1629 = vmatprep.subr.mxu0 0.0
        %1630 = vmatpush1.msra.mxu0 %v1616
        %1631 = vmatprep.subr.mxu0 0.0
        %1632 = vmatpush1.msra.mxu0 %v1617
        %1633 = vmatprep.subr.mxu0 0.0
        %1634 = vmatpush1.msra.mxu0 %v1618
        %1635 = vmatprep.subr.mxu0 0.0
        %1636 = vmatpush1.msra.mxu0 0.0
        %1637 = vmatprep.subr.mxu0 0.0
        %1638 = vmatpush1.msra.mxu0 0.0
        %1639 = vmatprep.subr.mxu0 0.0
        %1640 = vmatpush1.msra.mxu0 0.0
        %1641 = vmatprep.subr.mxu0 0.0
        %1642 = vmatpush1.msra.mxu0 0.0
        %1643 = vmatprep.subr.mxu0 0.0
        %1644 = vmatpush1.msra.mxu0 0.0
        %1645 = vmatprep.subr.mxu0 0.0
        %1646 = vmatpush1.msra.mxu0 0.0
        %1647 = vmatprep.subr.mxu0 0.0
        %1648 = vmatpush1.msra.mxu0 0.0
        %1649 = vmatprep.subr.mxu0 0.0
        %1650 = vmatpush1.msra.mxu0 0.0
        %1651 = vmatprep.subr.mxu0 0.0
        %1652 = vmatpush1.msra.mxu0 0.0
        %1653 = vmatprep.subr.mxu0 0.0
        %1654 = vmatpush1.msra.mxu0 0.0
        %1655 = vmatprep.subr.mxu0 0.0
        %1656 = vmatpush1.msra.mxu0 0.0
        %1657 = vmatprep.subr.mxu0 0.0
        %1658 = vmatpush1.msra.mxu0 0.0
        %1659 = vmatprep.subr.mxu0 0.0
        %1660 = vmatpush1.msra.mxu0 0.0
        %1661 = vmatprep.subr.mxu0 0.0
        %1662 = vmatpush1.msra.mxu0 0.0
        %1663 = vmatprep.subr.mxu0 0.0
        %1664 = vmatpush1.msra.mxu0 0.0
        %1665 = vmatprep.subr.mxu0 0.0
        %1666 = vmatpush1.msra.mxu0 0.0
        %1667 = vmatprep.subr.mxu0 0.0
        %1668 = vmatpush1.msra.mxu0 0.0
        %1669 = vmatprep.subr.mxu0 0.0
        %1670 = vmatpush1.msra.mxu0 0.0
        %1671 = vmatprep.subr.mxu0 0.0
        %1672 = vmatpush1.msra.mxu0 0.0
        %1673 = vmatprep.subr.mxu0 0.0
        %1674 = vmatpush1.msra.mxu0 0.0
        %1675 = vmatprep.subr.mxu0 0.0
        %1676 = vmatpush1.msra.mxu0 0.0
        %1677 = vmatprep.subr.mxu0 0.0
        %1678 = vmatpush1.msra.mxu0 0.0
        %1679 = vmatprep.subr.mxu0 0.0
        %1680 = vmatpush1.msra.mxu0 0.0
        %1681 = vmatprep.subr.mxu0 0.0
        %1682 = vmatpush1.msra.mxu0 0.0
        %1683 = vmatprep.subr.mxu0 0.0
        %1684 = vmatpush1.msra.mxu0 0.0
        %1685 = vmatprep.subr.mxu0 0.0
        %1686 = vmatpush1.msra.mxu0 0.0
        %1687 = vmatprep.subr.mxu0 0.0
        %1688 = vmatpush1.msra.mxu0 0.0
        %1689 = vmatprep.subr.mxu0 0.0
        %1690 = vmatpush1.msra.mxu0 0.0
        %1691 = vmatprep.mubr.f32.mxu0 0.0
        %1692 = vmatmul.mubr.f32.gmra.mrb[0].mxu0 %v1625
        %v1693 = vpop.f32.mrb[0].mxu0
        %v1694 = vadd.f32 %v1623, %v1693
        %v1695 = vpop.f32.mrb[0].mxu0
        %1696 = vdwg.mxu0
        %v1697 = vadd.f32 %v376, %v1694
        %1699 = vset.pattern.permute.xlu0 3
        %1700 = vperm.xlu0 %1699, %v377
        %v1701 = vpop.permute.xlu0 %1700
        %v1703 = vmul.f32 %v1697, %v1701
        %1704 = vmatprep.subr.mxu0 0.0
        %1705 = vmatpush1.msra.mxu0 %v1703
        %1706 = vmatprep.subr.mxu0 0.0
        %1707 = vmatpush1.msra.mxu0 0.0
        %1708 = vmatprep.subr.mxu0 0.0
        %1709 = vmatpush1.msra.mxu0 0.0
        %1710 = vmatprep.subr.mxu0 0.0
        %1711 = vmatpush1.msra.mxu0 0.0
        %1712 = vmatprep.subr.mxu0 0.0
        %1713 = vmatpush1.msra.mxu0 0.0
        %1714 = vmatprep.subr.mxu0 0.0
        %1715 = vmatpush1.msra.mxu0 0.0
        %1716 = vmatprep.subr.mxu0 0.0
        %1717 = vmatpush1.msra.mxu0 0.0
        %1718 = vmatprep.subr.mxu0 0.0
        %1719 = vmatpush1.msra.mxu0 0.0
        %1720 = vmatprep.subr.mxu0 0.0
        %1721 = vmatpush1.msra.mxu0 0.0
        %1722 = vmatprep.subr.mxu0 0.0
        %1723 = vmatpush1.msra.mxu0 0.0
        %1724 = vmatprep.subr.mxu0 0.0
        %1725 = vmatpush1.msra.mxu0 0.0
        %1726 = vmatprep.subr.mxu0 0.0
        %1727 = vmatpush1.msra.mxu0 0.0
        %1728 = vmatprep.subr.mxu0 0.0
        %1729 = vmatpush1.msra.mxu0 0.0
        %1730 = vmatprep.subr.mxu0 0.0
        %1731 = vmatpush1.msra.mxu0 0.0
        %1732 = vmatprep.subr.mxu0 0.0
        %1733 = vmatpush1.msra.mxu0 0.0
        %1734 = vmatprep.subr.mxu0 0.0
        %1735 = vmatpush1.msra.mxu0 0.0
        %1736 = vmatprep.subr.mxu0 0.0
        %1737 = vmatpush1.msra.mxu0 0.0
        %1738 = vmatprep.subr.mxu0 0.0
        %1739 = vmatpush1.msra.mxu0 0.0
        %1740 = vmatprep.subr.mxu0 0.0
        %1741 = vmatpush1.msra.mxu0 0.0
        %1742 = vmatprep.subr.mxu0 0.0
        %1743 = vmatpush1.msra.mxu0 0.0
        %1744 = vmatprep.subr.mxu0 0.0
        %1745 = vmatpush1.msra.mxu0 0.0
        %1746 = vmatprep.subr.mxu0 0.0
        %1747 = vmatpush1.msra.mxu0 0.0
        %1748 = vmatprep.subr.mxu0 0.0
        %1749 = vmatpush1.msra.mxu0 0.0
        %1750 = vmatprep.subr.mxu0 0.0
        %1751 = vmatpush1.msra.mxu0 0.0
        %1752 = vmatprep.subr.mxu0 0.0
        %1753 = vmatpush1.msra.mxu0 0.0
        %1754 = vmatprep.subr.mxu0 0.0
        %1755 = vmatpush1.msra.mxu0 0.0
        %1756 = vmatprep.subr.mxu0 0.0
        %1757 = vmatpush1.msra.mxu0 0.0
        %1758 = vmatprep.subr.mxu0 0.0
        %1759 = vmatpush1.msra.mxu0 0.0
        %1760 = vmatprep.subr.mxu0 0.0
        %1761 = vmatpush1.msra.mxu0 0.0
        %1762 = vmatprep.subr.mxu0 0.0
        %1763 = vmatpush1.msra.mxu0 0.0
        %1764 = vmatprep.subr.mxu0 0.0
        %1765 = vmatpush1.msra.mxu0 0.0
        %1766 = vmatprep.subr.mxu0 0.0
        %1767 = vmatpush1.msra.mxu0 0.0
        %1768 = vmatprep.mubr.f32.mxu0 0.0
        %1769 = vmatmul.mubr.f32.gmra.mrb[0].mxu0 %v402
        %v1770 = vpop.f32.mrb[0].mxu0
        %v1771 = vadd.f32 0.0, %v1770
        %v1772 = vpop.f32.mrb[0].mxu0
        %1773 = vmatprep.mubr.f32.mxu0 0.0
        %1774 = vmatmul.mubr.f32.gmra.mrb[0].mxu0 %v405
        %v1775 = vpop.f32.mrb[0].mxu0
        %v1776 = vadd.f32 0.0, %v1775
        %v1777 = vpop.f32.mrb[0].mxu0
        %1778 = vmatprep.mubr.f32.mxu0 0.0
        %1779 = vmatmul.mubr.f32.gmra.mrb[0].mxu0 %v408
        %v1780 = vpop.f32.mrb[0].mxu0
        %v1781 = vadd.f32 0.0, %v1780
        %v1782 = vpop.f32.mrb[0].mxu0
        %1783 = vmatprep.mubr.f32.mxu0 0.0
        %1784 = vmatmul.mubr.f32.gmra.mrb[0].mxu0 %v411
        %v1785 = vpop.f32.mrb[0].mxu0
        %v1786 = vadd.f32 0.0, %v1785
        %v1787 = vpop.f32.mrb[0].mxu0
        %1788 = vmatprep.mubr.f32.mxu0 0.0
        %1789 = vmatmul.mubr.f32.gmra.mrb[0].mxu0 %v414
        %v1790 = vpop.f32.mrb[0].mxu0
        %v1791 = vadd.f32 0.0, %v1790
        %v1792 = vpop.f32.mrb[0].mxu0
        %1793 = vmatprep.mubr.f32.mxu0 0.0
        %1794 = vmatmul.mubr.f32.gmra.mrb[0].mxu0 %v417
        %v1795 = vpop.f32.mrb[0].mxu0
        %v1796 = vadd.f32 0.0, %v1795
        %v1797 = vpop.f32.mrb[0].mxu0
        %1798 = vmatprep.mubr.f32.mxu0 0.0
        %1799 = vmatmul.mubr.f32.gmra.mrb[0].mxu0 %v420
        %v1800 = vpop.f32.mrb[0].mxu0
        %v1801 = vadd.f32 0.0, %v1800
        %v1802 = vpop.f32.mrb[0].mxu0
        %1803 = vmatprep.mubr.f32.mxu0 0.0
        %1804 = vmatmul.mubr.f32.gmra.mrb[0].mxu0 %v423
        %v1805 = vpop.f32.mrb[0].mxu0
        %v1806 = vadd.f32 0.0, %v1805
        %v1807 = vpop.f32.mrb[0].mxu0
        %1808 = vmatprep.mubr.f32.mxu0 0.0
        %1809 = vmatmul.mubr.f32.gmra.mrb[0].mxu0 %v426
        %v1810 = vpop.f32.mrb[0].mxu0
        %v1811 = vadd.f32 0.0, %v1810
        %v1812 = vpop.f32.mrb[0].mxu0
        %1813 = vmatprep.mubr.f32.mxu0 0.0
        %1814 = vmatmul.mubr.f32.gmra.mrb[0].mxu0 %v429
        %v1815 = vpop.f32.mrb[0].mxu0
        %v1816 = vadd.f32 0.0, %v1815
        %v1817 = vpop.f32.mrb[0].mxu0
        %1818 = vmatprep.mubr.f32.mxu0 0.0
        %1819 = vmatmul.mubr.f32.gmra.mrb[0].mxu0 %v432
        %v1820 = vpop.f32.mrb[0].mxu0
        %v1821 = vadd.f32 0.0, %v1820
        %v1822 = vpop.f32.mrb[0].mxu0
        %1823 = vmatprep.mubr.f32.mxu0 0.0
        %1824 = vmatmul.mubr.f32.gmra.mrb[0].mxu0 %v435
        %v1825 = vpop.f32.mrb[0].mxu0
        %v1826 = vadd.f32 0.0, %v1825
        %v1827 = vpop.f32.mrb[0].mxu0
        %1828 = vmatprep.mubr.f32.mxu0 0.0
        %1829 = vmatmul.mubr.f32.gmra.mrb[0].mxu0 %v438
        %v1830 = vpop.f32.mrb[0].mxu0
        %v1831 = vadd.f32 0.0, %v1830
        %v1832 = vpop.f32.mrb[0].mxu0
        %1833 = vmatprep.mubr.f32.mxu0 0.0
        %1834 = vmatmul.mubr.f32.gmra.mrb[0].mxu0 %v441
        %v1835 = vpop.f32.mrb[0].mxu0
        %v1836 = vadd.f32 0.0, %v1835
        %v1837 = vpop.f32.mrb[0].mxu0
        %1838 = vdwg.mxu0
        %1846 = vrot.lane.b32.xlu0 %v1806, 32
        %v1847 = vpop.permute.xlu0 %1846
        %1848 = vrot.lane.b32.xlu0 %v1811, 32
        %v1849 = vpop.permute.xlu0 %1848
        %1850 = vrot.lane.b32.xlu0 %v1816, 32
        %v1851 = vpop.permute.xlu0 %1850
        %1852 = vrot.lane.b32.xlu0 %v1821, 32
        %v1853 = vpop.permute.xlu0 %1852
        %1854 = vrot.lane.b32.xlu0 %v1826, 32
        %v1855 = vpop.permute.xlu0 %1854
        %1856 = vrot.lane.b32.xlu0 %v1831, 32
        %v1857 = vpop.permute.xlu0 %1856
        %1858 = vrot.lane.b32.xlu0 %v1836, 32
        %v1859 = vpop.permute.xlu0 %1858
        %v1867 = vsel %vm854, %v1771, %v1847
        %v1868 = vsel %vm854, %v1776, %v1849
        %v1869 = vsel %vm854, %v1781, %v1851
        %v1870 = vsel %vm854, %v1786, %v1853
        %v1871 = vsel %vm854, %v1791, %v1855
        %v1872 = vsel %vm854, %v1796, %v1857
        %v1873 = vsel %vm854, %v1801, %v1859
        %s1874 = scalar_lea.vmem %s2, 128
        %v1875 = vld [vmem:[%s1874] sm:$0xff]
        %v1876 = vld [vmem:[%s1874 + $0x8] sm:$0xff]
        %v1877 = vld [vmem:[%s1874 + $0x10] sm:$0xff]
        %v1878 = vld [vmem:[%s1874 + $0x18] sm:$0xff]
        %v1879 = vld [vmem:[%s1874 + $0x20] sm:$0xff]
        %v1880 = vld [vmem:[%s1874 + $0x28] sm:$0xff]
        %v1881 = vld [vmem:[%s1874 + $0x30] sm:$0xff]
        %v1882 = vld [vmem:[%s1874 + $0x38] sm:$0xff]
        %v1883 = vld [vmem:[%s4 + $0x8] sm:$0x1]
        %v1884 = vlaneseq
        %v1885 = vshrl.u32 %v1884, 7
        %v1886 = vsub.s32 0, %v1885
        %v1887 = vrot.slane %v1883, %v1886
        %v1888 = vmul.f32 %v595, %v1887
        %v1889 = vmul.f32 %v598, %v1887
        %v1890 = vmul.f32 %v601, %v1887
        %v1891 = vmul.f32 %v604, %v1887
        %v1892 = vmul.f32 %v607, %v1887
        %v1893 = vmul.f32 %v610, %v1887
        %v1894 = vmul.f32 %v613, %v1887
        %v1896 = vsel %vm882, %v1867, 0
        %v1899 = vsel %vm882, %v1868, 0
        %v1902 = vsel %vm882, %v1869, 0
        %v1905 = vsel %vm882, %v1870, 0
        %v1908 = vsel %vm882, %v1871, 0
        %v1911 = vsel %vm882, %v1872, 0
        %v1914 = vsel %vm882, %v1873, 0
        %1916 = vmatprep.subr.mxu0 0.0
        %1917 = vmatpush1.msra.mxu0 %v1875
        %1918 = vmatprep.subr.mxu0 0.0
        %1919 = vmatpush1.msra.mxu0 %v1876
        %1920 = vmatprep.subr.mxu0 0.0
        %1921 = vmatpush1.msra.mxu0 %v1877
        %1922 = vmatprep.subr.mxu0 0.0
        %1923 = vmatpush1.msra.mxu0 %v1878
        %1924 = vmatprep.subr.mxu0 0.0
        %1925 = vmatpush1.msra.mxu0 %v1879
        %1926 = vmatprep.subr.mxu0 0.0
        %1927 = vmatpush1.msra.mxu0 %v1880
        %1928 = vmatprep.subr.mxu0 0.0
        %1929 = vmatpush1.msra.mxu0 %v1881
        %1930 = vmatprep.subr.mxu0 0.0
        %1931 = vmatpush1.msra.mxu0 %v1882
        %1932 = vmatprep.subr.mxu0 0.0
        %1933 = vmatpush1.msra.mxu0 0.0
        %1934 = vmatprep.subr.mxu0 0.0
        %1935 = vmatpush1.msra.mxu0 0.0
        %1936 = vmatprep.subr.mxu0 0.0
        %1937 = vmatpush1.msra.mxu0 0.0
        %1938 = vmatprep.subr.mxu0 0.0
        %1939 = vmatpush1.msra.mxu0 0.0
        %1940 = vmatprep.subr.mxu0 0.0
        %1941 = vmatpush1.msra.mxu0 0.0
        %1942 = vmatprep.subr.mxu0 0.0
        %1943 = vmatpush1.msra.mxu0 0.0
        %1944 = vmatprep.subr.mxu0 0.0
        %1945 = vmatpush1.msra.mxu0 0.0
        %1946 = vmatprep.subr.mxu0 0.0
        %1947 = vmatpush1.msra.mxu0 0.0
        %1948 = vmatprep.subr.mxu0 0.0
        %1949 = vmatpush1.msra.mxu0 0.0
        %1950 = vmatprep.subr.mxu0 0.0
        %1951 = vmatpush1.msra.mxu0 0.0
        %1952 = vmatprep.subr.mxu0 0.0
        %1953 = vmatpush1.msra.mxu0 0.0
        %1954 = vmatprep.subr.mxu0 0.0
        %1955 = vmatpush1.msra.mxu0 0.0
        %1956 = vmatprep.subr.mxu0 0.0
        %1957 = vmatpush1.msra.mxu0 0.0
        %1958 = vmatprep.subr.mxu0 0.0
        %1959 = vmatpush1.msra.mxu0 0.0
        %1960 = vmatprep.subr.mxu0 0.0
        %1961 = vmatpush1.msra.mxu0 0.0
        %1962 = vmatprep.subr.mxu0 0.0
        %1963 = vmatpush1.msra.mxu0 0.0
        %1964 = vmatprep.subr.mxu0 0.0
        %1965 = vmatpush1.msra.mxu0 0.0
        %1966 = vmatprep.subr.mxu0 0.0
        %1967 = vmatpush1.msra.mxu0 0.0
        %1968 = vmatprep.subr.mxu0 0.0
        %1969 = vmatpush1.msra.mxu0 0.0
        %1970 = vmatprep.subr.mxu0 0.0
        %1971 = vmatpush1.msra.mxu0 0.0
        %1972 = vmatprep.subr.mxu0 0.0
        %1973 = vmatpush1.msra.mxu0 0.0
        %1974 = vmatprep.subr.mxu0 0.0
        %1975 = vmatpush1.msra.mxu0 0.0
        %1976 = vmatprep.subr.mxu0 0.0
        %1977 = vmatpush1.msra.mxu0 0.0
        %1978 = vmatprep.subr.mxu0 0.0
        %1979 = vmatpush1.msra.mxu0 0.0
        %1980 = vmatprep.mubr.f32.mxu0 0.0
        %1981 = vmatmul.mubr.f32.gmra.mrb[0].mxu0 %v1896
        %v1982 = vpop.f32.mrb[0].mxu0
        %v1983 = vadd.f32 %v1888, %v1982
        %v1984 = vpop.f32.mrb[0].mxu0
        %1985 = vmatprep.mubr.f32.mxu0 0.0
        %1986 = vmatmul.mubr.f32.gmra.mrb[0].mxu0 %v1899
        %v1987 = vpop.f32.mrb[0].mxu0
        %v1988 = vadd.f32 %v1889, %v1987
        %v1989 = vpop.f32.mrb[0].mxu0
        %1990 = vmatprep.mubr.f32.mxu0 0.0
        %1991 = vmatmul.mubr.f32.gmra.mrb[0].mxu0 %v1902
        %v1992 = vpop.f32.mrb[0].mxu0
        %v1993 = vadd.f32 %v1890, %v1992
        %v1994 = vpop.f32.mrb[0].mxu0
        %1995 = vmatprep.mubr.f32.mxu0 0.0
        %1996 = vmatmul.mubr.f32.gmra.mrb[0].mxu0 %v1905
        %v1997 = vpop.f32.mrb[0].mxu0
        %v1998 = vadd.f32 %v1891, %v1997
        %v1999 = vpop.f32.mrb[0].mxu0
        %2000 = vmatprep.mubr.f32.mxu0 0.0
        %2001 = vmatmul.mubr.f32.gmra.mrb[0].mxu0 %v1908
        %v2002 = vpop.f32.mrb[0].mxu0
        %v2003 = vadd.f32 %v1892, %v2002
        %v2004 = vpop.f32.mrb[0].mxu0
        %2005 = vmatprep.mubr.f32.mxu0 0.0
        %2006 = vmatmul.mubr.f32.gmra.mrb[0].mxu0 %v1911
        %v2007 = vpop.f32.mrb[0].mxu0
        %v2008 = vadd.f32 %v1893, %v2007
        %v2009 = vpop.f32.mrb[0].mxu0
        %2010 = vmatprep.mubr.f32.mxu0 0.0
        %2011 = vmatmul.mubr.f32.gmra.mrb[0].mxu0 %v1914
        %v2012 = vpop.f32.mrb[0].mxu0
        %v2013 = vadd.f32 %v1894, %v2012
        %v2014 = vpop.f32.mrb[0].mxu0
        %2015 = vdwg.mxu0
        %v2016 = vld [vmem:[%s4 + $0x9] sm:$0x1]
        %v2017 = vlaneseq
        %v2018 = vshrl.u32 %v2017, 7
        %v2019 = vsub.s32 0, %v2018
        %v2020 = vrot.slane %v2016, %v2019
        %v2021 = vmul.f32 %v1008, %v2020
        %v2022 = vmul.f32 %v1013, %v2020
        %v2023 = vmul.f32 %v1018, %v2020
        %v2024 = vmul.f32 %v1023, %v2020
        %v2025 = vmul.f32 %v1028, %v2020
        %v2026 = vmul.f32 %v1033, %v2020
        %v2027 = vmul.f32 %v1038, %v2020
        %v2028 = vadd.f32 %v1983, %v2021
        %v2029 = vadd.f32 %v1988, %v2022
        %v2030 = vadd.f32 %v1993, %v2023
        %v2031 = vadd.f32 %v1998, %v2024
        %v2032 = vadd.f32 %v2003, %v2025
        %v2033 = vadd.f32 %v2008, %v2026
        %v2034 = vadd.f32 %v2013, %v2027
        %v2035 = vld [vmem:[%s4 + $0xa] sm:$0x1]
        %v2036 = vlaneseq
        %v2037 = vshrl.u32 %v2036, 7
        %v2038 = vsub.s32 0, %v2037
        %v2039 = vrot.slane %v2035, %v2038
        %v2040 = vadd.f32 %v2028, %v2039
        %v2041 = vadd.f32 %v2029, %v2039
        %v2042 = vadd.f32 %v2030, %v2039
        %v2043 = vadd.f32 %v2031, %v2039
        %v2044 = vadd.f32 %v2032, %v2039
        %v2045 = vadd.f32 %v2033, %v2039
        %v2046 = vadd.f32 %v2034, %v2039
        %v2047 = vsub.f32 0.0, %v2040
        %v2048 = vsub.f32 0.0, %v2041
        %v2049 = vsub.f32 0.0, %v2042
        %v2050 = vsub.f32 0.0, %v2043
        %v2051 = vsub.f32 0.0, %v2044
        %v2052 = vsub.f32 0.0, %v2045
        %v2053 = vsub.f32 0.0, %v2046
        %v2054 = vmul.f32 %v2047, 1.442695
        %v2055 = vpow.pop %v2054
        %v2056 = vmul.f32 %v2048, 1.442695
        %v2057 = vpow.pop %v2056
        %v2058 = vmul.f32 %v2049, 1.442695
        %v2059 = vpow.pop %v2058
        %v2060 = vmul.f32 %v2050, 1.442695
        %v2061 = vpow.pop %v2060
        %v2062 = vmul.f32 %v2051, 1.442695
        %v2063 = vpow.pop %v2062
        %v2064 = vmul.f32 %v2052, 1.442695
        %v2065 = vpow.pop %v2064
        %v2066 = vmul.f32 %v2053, 1.442695
        %v2067 = vpow.pop %v2066
        %v2068 = vadd.f32 %v2055, 1.0
        %v2069 = vadd.f32 %v2057, 1.0
        %v2070 = vadd.f32 %v2059, 1.0
        %v2071 = vadd.f32 %v2061, 1.0
        %v2072 = vadd.f32 %v2063, 1.0
        %v2073 = vadd.f32 %v2065, 1.0
        %v2074 = vadd.f32 %v2067, 1.0
        %v2075 = vrcp.pop %v2068
        %v2076 = vrcp.pop %v2069
        %v2077 = vrcp.pop %v2070
        %v2078 = vrcp.pop %v2071
        %v2079 = vrcp.pop %v2072
        %v2080 = vrcp.pop %v2073
        %v2081 = vrcp.pop %v2074
        %v2082 = vmul.f32 %v2040, %v2075
        %v2083 = vmul.f32 %v2041, %v2076
        %v2084 = vmul.f32 %v2042, %v2077
        %v2085 = vmul.f32 %v2043, %v2078
        %v2086 = vmul.f32 %v2044, %v2079
        %v2087 = vmul.f32 %v2045, %v2080
        %v2088 = vmul.f32 %v2046, %v2081
        %s2089 = scalar_lea.vmem %s3, 64
        %v2090 = vld [vmem:[%s2089] sm:$0xff]
        %v2091 = vld [vmem:[%s2089 + $0x8] sm:$0xff]
        %v2092 = vld [vmem:[%s2089 + $0x10] sm:$0xff]
        %v2093 = vld [vmem:[%s2089 + $0x18] sm:$0xff]
        %v2094 = vld [vmem:[%s4 + $0xb] sm:$0x1]
        %v2095 = vlaneseq
        %v2096 = vshrl.u32 %v2095, 7
        %v2097 = vsub.s32 0, %v2096
        %v2098 = vrot.slane %v2094, %v2097
        %v2100 = vsel %vm854, %v2082, 0
        %v2103 = vsel %vm854, %v2083, 0
        %v2106 = vsel %vm854, %v2084, 0
        %v2109 = vsel %vm854, %v2085, 0
        %v2112 = vsel %vm854, %v2086, 0
        %v2115 = vsel %vm854, %v2087, 0
        %v2118 = vsel %vm854, %v2088, 0
        %2120 = vmatprep.subr.mxu0 0.0
        %2121 = vmatpush1.msra.mxu0 %v2090
        %2122 = vmatprep.subr.mxu0 0.0
        %2123 = vmatpush1.msra.mxu0 %v2091
        %2124 = vmatprep.subr.mxu0 0.0
        %2125 = vmatpush1.msra.mxu0 %v2092
        %2126 = vmatprep.subr.mxu0 0.0
        %2127 = vmatpush1.msra.mxu0 %v2093
        %2128 = vmatprep.subr.mxu0 0.0
        %2129 = vmatpush1.msra.mxu0 0.0
        %2130 = vmatprep.subr.mxu0 0.0
        %2131 = vmatpush1.msra.mxu0 0.0
        %2132 = vmatprep.subr.mxu0 0.0
        %2133 = vmatpush1.msra.mxu0 0.0
        %2134 = vmatprep.subr.mxu0 0.0
        %2135 = vmatpush1.msra.mxu0 0.0
        %2136 = vmatprep.subr.mxu0 0.0
        %2137 = vmatpush1.msra.mxu0 0.0
        %2138 = vmatprep.subr.mxu0 0.0
        %2139 = vmatpush1.msra.mxu0 0.0
        %2140 = vmatprep.subr.mxu0 0.0
        %2141 = vmatpush1.msra.mxu0 0.0
        %2142 = vmatprep.subr.mxu0 0.0
        %2143 = vmatpush1.msra.mxu0 0.0
        %2144 = vmatprep.subr.mxu0 0.0
        %2145 = vmatpush1.msra.mxu0 0.0
        %2146 = vmatprep.subr.mxu0 0.0
        %2147 = vmatpush1.msra.mxu0 0.0
        %2148 = vmatprep.subr.mxu0 0.0
        %2149 = vmatpush1.msra.mxu0 0.0
        %2150 = vmatprep.subr.mxu0 0.0
        %2151 = vmatpush1.msra.mxu0 0.0
        %2152 = vmatprep.subr.mxu0 0.0
        %2153 = vmatpush1.msra.mxu0 0.0
        %2154 = vmatprep.subr.mxu0 0.0
        %2155 = vmatpush1.msra.mxu0 0.0
        %2156 = vmatprep.subr.mxu0 0.0
        %2157 = vmatpush1.msra.mxu0 0.0
        %2158 = vmatprep.subr.mxu0 0.0
        %2159 = vmatpush1.msra.mxu0 0.0
        %2160 = vmatprep.subr.mxu0 0.0
        %2161 = vmatpush1.msra.mxu0 0.0
        %2162 = vmatprep.subr.mxu0 0.0
        %2163 = vmatpush1.msra.mxu0 0.0
        %2164 = vmatprep.subr.mxu0 0.0
        %2165 = vmatpush1.msra.mxu0 0.0
        %2166 = vmatprep.subr.mxu0 0.0
        %2167 = vmatpush1.msra.mxu0 0.0
        %2168 = vmatprep.subr.mxu0 0.0
        %2169 = vmatpush1.msra.mxu0 0.0
        %2170 = vmatprep.subr.mxu0 0.0
        %2171 = vmatpush1.msra.mxu0 0.0
        %2172 = vmatprep.subr.mxu0 0.0
        %2173 = vmatpush1.msra.mxu0 0.0
        %2174 = vmatprep.subr.mxu0 0.0
        %2175 = vmatpush1.msra.mxu0 0.0
        %2176 = vmatprep.subr.mxu0 0.0
        %2177 = vmatpush1.msra.mxu0 0.0
        %2178 = vmatprep.subr.mxu0 0.0
        %2179 = vmatpush1.msra.mxu0 0.0
        %2180 = vmatprep.subr.mxu0 0.0
        %2181 = vmatpush1.msra.mxu0 0.0
        %2182 = vmatprep.subr.mxu0 0.0
        %2183 = vmatpush1.msra.mxu0 0.0
        %2184 = vmatprep.mubr.f32.mxu0 0.0
        %2185 = vmatmul.mubr.f32.gmra.mrb[0].mxu0 %v2100
        %v2186 = vpop.f32.mrb[0].mxu0
        %v2187 = vadd.f32 %v2098, %v2186
        %v2188 = vpop.f32.mrb[0].mxu0
        %2189 = vmatprep.mubr.f32.mxu0 0.0
        %2190 = vmatmul.mubr.f32.gmra.mrb[0].mxu0 %v2103
        %v2191 = vpop.f32.mrb[0].mxu0
        %v2192 = vadd.f32 %v2098, %v2191
        %v2193 = vpop.f32.mrb[0].mxu0
        %2194 = vmatprep.mubr.f32.mxu0 0.0
        %2195 = vmatmul.mubr.f32.gmra.mrb[0].mxu0 %v2106
        %v2196 = vpop.f32.mrb[0].mxu0
        %v2197 = vadd.f32 %v2098, %v2196
        %v2198 = vpop.f32.mrb[0].mxu0
        %2199 = vmatprep.mubr.f32.mxu0 0.0
        %2200 = vmatmul.mubr.f32.gmra.mrb[0].mxu0 %v2109
        %v2201 = vpop.f32.mrb[0].mxu0
        %v2202 = vadd.f32 %v2098, %v2201
        %v2203 = vpop.f32.mrb[0].mxu0
        %2204 = vmatprep.mubr.f32.mxu0 0.0
        %2205 = vmatmul.mubr.f32.gmra.mrb[0].mxu0 %v2112
        %v2206 = vpop.f32.mrb[0].mxu0
        %v2207 = vadd.f32 %v2098, %v2206
        %v2208 = vpop.f32.mrb[0].mxu0
        %2209 = vmatprep.mubr.f32.mxu0 0.0
        %2210 = vmatmul.mubr.f32.gmra.mrb[0].mxu0 %v2115
        %v2211 = vpop.f32.mrb[0].mxu0
        %v2212 = vadd.f32 %v2098, %v2211
        %v2213 = vpop.f32.mrb[0].mxu0
        %2214 = vmatprep.mubr.f32.mxu0 0.0
        %2215 = vmatmul.mubr.f32.gmra.mrb[0].mxu0 %v2118
        %v2216 = vpop.f32.mrb[0].mxu0
        %v2217 = vadd.f32 %v2098, %v2216
        %v2218 = vpop.f32.mrb[0].mxu0
        %2219 = vdwg.mxu0
        %v2220 = vsub.f32 0.0, %v2187
        %v2221 = vsub.f32 0.0, %v2192
        %v2222 = vsub.f32 0.0, %v2197
        %v2223 = vsub.f32 0.0, %v2202
        %v2224 = vsub.f32 0.0, %v2207
        %v2225 = vsub.f32 0.0, %v2212
        %v2226 = vsub.f32 0.0, %v2217
        %v2227 = vmul.f32 %v2220, 1.442695
        %v2228 = vpow.pop %v2227
        %v2229 = vmul.f32 %v2221, 1.442695
        %v2230 = vpow.pop %v2229
        %v2231 = vmul.f32 %v2222, 1.442695
        %v2232 = vpow.pop %v2231
        %v2233 = vmul.f32 %v2223, 1.442695
        %v2234 = vpow.pop %v2233
        %v2235 = vmul.f32 %v2224, 1.442695
        %v2236 = vpow.pop %v2235
        %v2237 = vmul.f32 %v2225, 1.442695
        %v2238 = vpow.pop %v2237
        %v2239 = vmul.f32 %v2226, 1.442695
        %v2240 = vpow.pop %v2239
        %v2241 = vadd.f32 %v2228, 1.0
        %v2242 = vadd.f32 %v2230, 1.0
        %v2243 = vadd.f32 %v2232, 1.0
        %v2244 = vadd.f32 %v2234, 1.0
        %v2245 = vadd.f32 %v2236, 1.0
        %v2246 = vadd.f32 %v2238, 1.0
        %v2247 = vadd.f32 %v2240, 1.0
        %v2248 = vrcp.pop %v2241
        %v2249 = vrcp.pop %v2242
        %v2250 = vrcp.pop %v2243
        %v2251 = vrcp.pop %v2244
        %v2252 = vrcp.pop %v2245
        %v2253 = vrcp.pop %v2246
        %v2254 = vrcp.pop %v2247
        %v2255 = vmul.f32 %v2187, %v2248
        %v2256 = vmul.f32 %v2192, %v2249
        %v2257 = vmul.f32 %v2197, %v2250
        %v2258 = vmul.f32 %v2202, %v2251
        %v2259 = vmul.f32 %v2207, %v2252
        %v2260 = vmul.f32 %v2212, %v2253
        %v2261 = vmul.f32 %v2217, %v2254
        %v2262 = vld [vmem:[%s4 + $0xc] sm:$0x1]
        %v2263 = vlaneseq
        %v2264 = vshrl.u32 %v2263, 7
        %v2265 = vsub.s32 0, %v2264
        %v2266 = vrot.slane %v2262, %v2265
        %v2267 = vmul.f32 %v2255, %v2266
        %v2268 = vmul.f32 %v2256, %v2266
        %v2269 = vmul.f32 %v2257, %v2266
        %v2270 = vmul.f32 %v2258, %v2266
        %v2271 = vmul.f32 %v2259, %v2266
        %v2272 = vmul.f32 %v2260, %v2266
        %v2273 = vmul.f32 %v2261, %v2266
        %v2274 = vsel %vm854, %v2267, 0.0
        %2275 = vadd.xlane.f32.xlu0 %v2274
        %v2276 = vpop.xlane.xlu0 %2275
        %v2277 = vsel %vm854, %v2268, 0.0
        %2278 = vadd.xlane.f32.xlu0 %v2277
        %v2279 = vpop.xlane.xlu0 %2278
        %v2280 = vsel %vm854, %v2269, 0.0
        %2281 = vadd.xlane.f32.xlu0 %v2280
        %v2282 = vpop.xlane.xlu0 %2281
        %v2283 = vsel %vm854, %v2270, 0.0
        %2284 = vadd.xlane.f32.xlu0 %v2283
        %v2285 = vpop.xlane.xlu0 %2284
        %v2286 = vsel %vm854, %v2271, 0.0
        %2287 = vadd.xlane.f32.xlu0 %v2286
        %v2288 = vpop.xlane.xlu0 %2287
        %v2289 = vsel %vm854, %v2272, 0.0
        %2290 = vadd.xlane.f32.xlu0 %v2289
        %v2291 = vpop.xlane.xlu0 %2290
        %v2292 = vsel %vm854, %v2273, 0.0
        %2293 = vadd.xlane.f32.xlu0 %v2292
        %v2294 = vpop.xlane.xlu0 %2293
        %v2295 = vld [vmem:[%s4 + $0xf] sm:$0x1]
        %v2296 = vlaneseq
        %v2297 = vshrl.u32 %v2296, 7
        %v2298 = vsub.s32 0, %v2297
        %v2299 = vrot.slane %v2295, %v2298
        %v2300 = vadd.f32 %v2276, %v2299
        %v2301 = vadd.f32 %v2279, %v2299
        %v2302 = vadd.f32 %v2282, %v2299
        %v2303 = vadd.f32 %v2285, %v2299
        %v2304 = vadd.f32 %v2288, %v2299
        %v2305 = vadd.f32 %v2291, %v2299
        %v2306 = vadd.f32 %v2294, %v2299
        %v2307 = vsub.f32 0.0, %v2300
        %v2308 = vsub.f32 0.0, %v2301
        %v2309 = vsub.f32 0.0, %v2302
        %v2310 = vsub.f32 0.0, %v2303
        %v2311 = vsub.f32 0.0, %v2304
        %v2312 = vsub.f32 0.0, %v2305
        %v2313 = vsub.f32 0.0, %v2306
        %v2314 = vmul.f32 %v2307, 1.442695
        %v2315 = vpow.pop %v2314
        %v2316 = vmul.f32 %v2308, 1.442695
        %v2317 = vpow.pop %v2316
        %v2318 = vmul.f32 %v2309, 1.442695
        %v2319 = vpow.pop %v2318
        %v2320 = vmul.f32 %v2310, 1.442695
        %v2321 = vpow.pop %v2320
        %v2322 = vmul.f32 %v2311, 1.442695
        %v2323 = vpow.pop %v2322
        %v2324 = vmul.f32 %v2312, 1.442695
        %v2325 = vpow.pop %v2324
        %v2326 = vmul.f32 %v2313, 1.442695
        %v2327 = vpow.pop %v2326
        %v2328 = vadd.f32 %v2315, 1.0
        %v2329 = vadd.f32 %v2317, 1.0
        %v2330 = vadd.f32 %v2319, 1.0
        %v2331 = vadd.f32 %v2321, 1.0
        %v2332 = vadd.f32 %v2323, 1.0
        %v2333 = vadd.f32 %v2325, 1.0
        %v2334 = vadd.f32 %v2327, 1.0
        %v2335 = vrcp.pop %v2328
        %v2336 = vrcp.pop %v2329
        %v2337 = vrcp.pop %v2330
        %v2338 = vrcp.pop %v2331
        %v2339 = vrcp.pop %v2332
        %v2340 = vrcp.pop %v2333
        %v2341 = vrcp.pop %v2334
        %2343 = vset.pattern.permute.xlu0 0
        %2344 = vperm.xlu0 %2343, %v2335
        %v2345 = vpop.permute.xlu0 %2344
        %2348 = vset.pattern.permute.xlu0 0
        %2349 = vperm.xlu0 %2348, %v2336
        %v2350 = vpop.permute.xlu0 %2349
        %2353 = vset.pattern.permute.xlu0 0
        %2354 = vperm.xlu0 %2353, %v2337
        %v2355 = vpop.permute.xlu0 %2354
        %2358 = vset.pattern.permute.xlu0 0
        %2359 = vperm.xlu0 %2358, %v2338
        %v2360 = vpop.permute.xlu0 %2359
        %2363 = vset.pattern.permute.xlu0 0
        %2364 = vperm.xlu0 %2363, %v2339
        %v2365 = vpop.permute.xlu0 %2364
        %2368 = vset.pattern.permute.xlu0 0
        %2369 = vperm.xlu0 %2368, %v2340
        %v2370 = vpop.permute.xlu0 %2369
        %2373 = vset.pattern.permute.xlu0 0
        %2374 = vperm.xlu0 %2373, %v2341
        %v2375 = vpop.permute.xlu0 %2374
        %v2377 = vmul.f32 %v2255, %v2345
        %v2378 = vmul.f32 %v2256, %v2350
        %v2379 = vmul.f32 %v2257, %v2355
        %v2380 = vmul.f32 %v2258, %v2360
        %v2381 = vmul.f32 %v2259, %v2365
        %v2382 = vmul.f32 %v2260, %v2370
        %v2383 = vmul.f32 %v2261, %v2375
        %v2384 = vmul.f32 %v2377, %v1408
        %v2385 = vmul.f32 %v2378, %v1412
        %v2386 = vmul.f32 %v2379, %v1416
        %v2387 = vmul.f32 %v2380, %v1420
        %v2388 = vmul.f32 %v2381, %v1424
        %v2389 = vmul.f32 %v2382, %v1428
        %v2390 = vmul.f32 %v2383, %v1432
        %2391 = vmatprep.subr.mxu0 0.0
        %2392 = vmatpush1.msra.mxu0 %v2384
        %2393 = vmatprep.subr.mxu0 0.0
        %2394 = vmatpush1.msra.mxu0 %v2385
        %2395 = vmatprep.subr.mxu0 0.0
        %2396 = vmatpush1.msra.mxu0 %v2386
        %2397 = vmatprep.subr.mxu0 0.0
        %2398 = vmatpush1.msra.mxu0 %v2387
        %2399 = vmatprep.subr.mxu0 0.0
        %2400 = vmatpush1.msra.mxu0 %v2388
        %2401 = vmatprep.subr.mxu0 0.0
        %2402 = vmatpush1.msra.mxu0 %v2389
        %2403 = vmatprep.subr.mxu0 0.0
        %2404 = vmatpush1.msra.mxu0 %v2390
        %2405 = vmatprep.subr.mxu0 0.0
        %2406 = vmatpush1.msra.mxu0 0.0
        %2407 = vmatprep.subr.mxu0 0.0
        %2408 = vmatpush1.msra.mxu0 0.0
        %2409 = vmatprep.subr.mxu0 0.0
        %2410 = vmatpush1.msra.mxu0 0.0
        %2411 = vmatprep.subr.mxu0 0.0
        %2412 = vmatpush1.msra.mxu0 0.0
        %2413 = vmatprep.subr.mxu0 0.0
        %2414 = vmatpush1.msra.mxu0 0.0
        %2415 = vmatprep.subr.mxu0 0.0
        %2416 = vmatpush1.msra.mxu0 0.0
        %2417 = vmatprep.subr.mxu0 0.0
        %2418 = vmatpush1.msra.mxu0 0.0
        %2419 = vmatprep.subr.mxu0 0.0
        %2420 = vmatpush1.msra.mxu0 0.0
        %2421 = vmatprep.subr.mxu0 0.0
        %2422 = vmatpush1.msra.mxu0 0.0
        %2423 = vmatprep.subr.mxu0 0.0
        %2424 = vmatpush1.msra.mxu0 0.0
        %2425 = vmatprep.subr.mxu0 0.0
        %2426 = vmatpush1.msra.mxu0 0.0
        %2427 = vmatprep.subr.mxu0 0.0
        %2428 = vmatpush1.msra.mxu0 0.0
        %2429 = vmatprep.subr.mxu0 0.0
        %2430 = vmatpush1.msra.mxu0 0.0
        %2431 = vmatprep.subr.mxu0 0.0
        %2432 = vmatpush1.msra.mxu0 0.0
        %2433 = vmatprep.subr.mxu0 0.0
        %2434 = vmatpush1.msra.mxu0 0.0
        %2435 = vmatprep.subr.mxu0 0.0
        %2436 = vmatpush1.msra.mxu0 0.0
        %2437 = vmatprep.subr.mxu0 0.0
        %2438 = vmatpush1.msra.mxu0 0.0
        %2439 = vmatprep.subr.mxu0 0.0
        %2440 = vmatpush1.msra.mxu0 0.0
        %2441 = vmatprep.subr.mxu0 0.0
        %2442 = vmatpush1.msra.mxu0 0.0
        %2443 = vmatprep.subr.mxu0 0.0
        %2444 = vmatpush1.msra.mxu0 0.0
        %2445 = vmatprep.subr.mxu0 0.0
        %2446 = vmatpush1.msra.mxu0 0.0
        %2447 = vmatprep.subr.mxu0 0.0
        %2448 = vmatpush1.msra.mxu0 0.0
        %2449 = vmatprep.subr.mxu0 0.0
        %2450 = vmatpush1.msra.mxu0 0.0
        %2451 = vmatprep.subr.mxu0 0.0
        %2452 = vmatpush1.msra.mxu0 0.0
        %2453 = vmatprep.subr.mxu0 0.0
        %2454 = vmatpush1.msra.mxu0 0.0
        %2455 = vmatprep.mubr.f32.mxu0 0.0
        %2456 = vmatmul.mubr.f32.gmra.mrb[0].mxu0 %v1443
        %v2457 = vpop.f32.mrb[0].mxu0
        %v2458 = vadd.f32 0.0, %v2457
        %v2459 = vpop.f32.mrb[0].mxu0
        %2460 = vdwg.mxu0
        %v2461 = vmul.f32 %v2458, 0.01
        %2463 = vrot.lane.b32.xlu0 %v2461, 32
        %v2464 = vpop.permute.xlu0 %2463
        %v2466 = vsel %vm854, %v1703, %v2464
        %s2467 = scalar_lea.vmem %s2, 192
        %v2468 = vld [vmem:[%s2467] sm:$0xff]
        %v2469 = vld [vmem:[%s2467 + $0x8] sm:$0xff]
        %v2470 = vld [vmem:[%s2467 + $0x10] sm:$0xff]
        %v2471 = vld [vmem:[%s2467 + $0x18] sm:$0xff]
        %v2472 = vld [vmem:[%s2467 + $0x20] sm:$0xff]
        %v2473 = vld [vmem:[%s2467 + $0x28] sm:$0xff]
        %v2474 = vld [vmem:[%s2467 + $0x30] sm:$0xff]
        %v2475 = vld [vmem:[%s2467 + $0x38] sm:$0xff]
        %v2476 = vld [vmem:[%s4 + $0xd] sm:$0x1]
        %v2477 = vlaneseq
        %v2478 = vshrl.u32 %v2477, 7
        %v2479 = vsub.s32 0, %v2478
        %v2480 = vrot.slane %v2476, %v2479
        %v2482 = vsel %vm882, %v2466, 0
        %2484 = vmatprep.subr.mxu0 0.0
        %2485 = vmatpush1.msra.mxu0 %v2468
        %2486 = vmatprep.subr.mxu0 0.0
        %2487 = vmatpush1.msra.mxu0 %v2469
        %2488 = vmatprep.subr.mxu0 0.0
        %2489 = vmatpush1.msra.mxu0 %v2470
        %2490 = vmatprep.subr.mxu0 0.0
        %2491 = vmatpush1.msra.mxu0 %v2471
        %2492 = vmatprep.subr.mxu0 0.0
        %2493 = vmatpush1.msra.mxu0 %v2472
        %2494 = vmatprep.subr.mxu0 0.0
        %2495 = vmatpush1.msra.mxu0 %v2473
        %2496 = vmatprep.subr.mxu0 0.0
        %2497 = vmatpush1.msra.mxu0 %v2474
        %2498 = vmatprep.subr.mxu0 0.0
        %2499 = vmatpush1.msra.mxu0 %v2475
        %2500 = vmatprep.subr.mxu0 0.0
        %2501 = vmatpush1.msra.mxu0 0.0
        %2502 = vmatprep.subr.mxu0 0.0
        %2503 = vmatpush1.msra.mxu0 0.0
        %2504 = vmatprep.subr.mxu0 0.0
        %2505 = vmatpush1.msra.mxu0 0.0
        %2506 = vmatprep.subr.mxu0 0.0
        %2507 = vmatpush1.msra.mxu0 0.0
        %2508 = vmatprep.subr.mxu0 0.0
        %2509 = vmatpush1.msra.mxu0 0.0
        %2510 = vmatprep.subr.mxu0 0.0
        %2511 = vmatpush1.msra.mxu0 0.0
        %2512 = vmatprep.subr.mxu0 0.0
        %2513 = vmatpush1.msra.mxu0 0.0
        %2514 = vmatprep.subr.mxu0 0.0
        %2515 = vmatpush1.msra.mxu0 0.0
        %2516 = vmatprep.subr.mxu0 0.0
        %2517 = vmatpush1.msra.mxu0 0.0
        %2518 = vmatprep.subr.mxu0 0.0
        %2519 = vmatpush1.msra.mxu0 0.0
        %2520 = vmatprep.subr.mxu0 0.0
        %2521 = vmatpush1.msra.mxu0 0.0
        %2522 = vmatprep.subr.mxu0 0.0
        %2523 = vmatpush1.msra.mxu0 0.0
        %2524 = vmatprep.subr.mxu0 0.0
        %2525 = vmatpush1.msra.mxu0 0.0
        %2526 = vmatprep.subr.mxu0 0.0
        %2527 = vmatpush1.msra.mxu0 0.0
        %2528 = vmatprep.subr.mxu0 0.0
        %2529 = vmatpush1.msra.mxu0 0.0
        %2530 = vmatprep.subr.mxu0 0.0
        %2531 = vmatpush1.msra.mxu0 0.0
        %2532 = vmatprep.subr.mxu0 0.0
        %2533 = vmatpush1.msra.mxu0 0.0
        %2534 = vmatprep.subr.mxu0 0.0
        %2535 = vmatpush1.msra.mxu0 0.0
        %2536 = vmatprep.subr.mxu0 0.0
        %2537 = vmatpush1.msra.mxu0 0.0
        %2538 = vmatprep.subr.mxu0 0.0
        %2539 = vmatpush1.msra.mxu0 0.0
        %2540 = vmatprep.subr.mxu0 0.0
        %2541 = vmatpush1.msra.mxu0 0.0
        %2542 = vmatprep.subr.mxu0 0.0
        %2543 = vmatpush1.msra.mxu0 0.0
        %2544 = vmatprep.subr.mxu0 0.0
        %2545 = vmatpush1.msra.mxu0 0.0
        %2546 = vmatprep.subr.mxu0 0.0
        %2547 = vmatpush1.msra.mxu0 0.0
        %2548 = vmatprep.mubr.f32.mxu0 0.0
        %2549 = vmatmul.mubr.f32.gmra.mrb[0].mxu0 %v2482
        %v2550 = vpop.f32.mrb[0].mxu0
        %v2551 = vadd.f32 %v2480, %v2550
        %v2552 = vpop.f32.mrb[0].mxu0
        %2553 = vdwg.mxu0
        %v2554 = vsub.f32 0.0, %v2551
        %v2555 = vmul.f32 %v2554, 1.442695
        %v2556 = vpow.pop %v2555
        %v2557 = vadd.f32 %v2556, 1.0
        %v2558 = vrcp.pop %v2557
        %v2559 = vmul.f32 %v2551, %v2558
        %s2560 = scalar_lea.vmem %s3, 96
        %v2561 = vld [vmem:[%s2560] sm:$0xff]
        %v2562 = vld [vmem:[%s2560 + $0x8] sm:$0xff]
        %v2563 = vld [vmem:[%s2560 + $0x10] sm:$0xff]
        %v2564 = vld [vmem:[%s2560 + $0x18] sm:$0xff]
        %v2565 = vld [vmem:[%s4 + $0xe] sm:$0x1]
        %v2566 = vlaneseq
        %v2567 = vshrl.u32 %v2566, 7
        %v2568 = vsub.s32 0, %v2567
        %v2569 = vrot.slane %v2565, %v2568
        %v2571 = vsel %vm854, %v2559, 0
        %2573 = vmatprep.subr.mxu0 0.0
        %2574 = vmatpush1.msra.mxu0 %v2561
        %2575 = vmatprep.subr.mxu0 0.0
        %2576 = vmatpush1.msra.mxu0 %v2562
        %2577 = vmatprep.subr.mxu0 0.0
        %2578 = vmatpush1.msra.mxu0 %v2563
        %2579 = vmatprep.subr.mxu0 0.0
        %2580 = vmatpush1.msra.mxu0 %v2564
        %2581 = vmatprep.subr.mxu0 0.0
        %2582 = vmatpush1.msra.mxu0 0.0
        %2583 = vmatprep.subr.mxu0 0.0
        %2584 = vmatpush1.msra.mxu0 0.0
        %2585 = vmatprep.subr.mxu0 0.0
        %2586 = vmatpush1.msra.mxu0 0.0
        %2587 = vmatprep.subr.mxu0 0.0
        %2588 = vmatpush1.msra.mxu0 0.0
        %2589 = vmatprep.subr.mxu0 0.0
        %2590 = vmatpush1.msra.mxu0 0.0
        %2591 = vmatprep.subr.mxu0 0.0
        %2592 = vmatpush1.msra.mxu0 0.0
        %2593 = vmatprep.subr.mxu0 0.0
        %2594 = vmatpush1.msra.mxu0 0.0
        %2595 = vmatprep.subr.mxu0 0.0
        %2596 = vmatpush1.msra.mxu0 0.0
        %2597 = vmatprep.subr.mxu0 0.0
        %2598 = vmatpush1.msra.mxu0 0.0
        %2599 = vmatprep.subr.mxu0 0.0
        %2600 = vmatpush1.msra.mxu0 0.0
        %2601 = vmatprep.subr.mxu0 0.0
        %2602 = vmatpush1.msra.mxu0 0.0
        %2603 = vmatprep.subr.mxu0 0.0
        %2604 = vmatpush1.msra.mxu0 0.0
        %2605 = vmatprep.subr.mxu0 0.0
        %2606 = vmatpush1.msra.mxu0 0.0
        %2607 = vmatprep.subr.mxu0 0.0
        %2608 = vmatpush1.msra.mxu0 0.0
        %2609 = vmatprep.subr.mxu0 0.0
        %2610 = vmatpush1.msra.mxu0 0.0
        %2611 = vmatprep.subr.mxu0 0.0
        %2612 = vmatpush1.msra.mxu0 0.0
        %2613 = vmatprep.subr.mxu0 0.0
        %2614 = vmatpush1.msra.mxu0 0.0
        %2615 = vmatprep.subr.mxu0 0.0
        %2616 = vmatpush1.msra.mxu0 0.0
        %2617 = vmatprep.subr.mxu0 0.0
        %2618 = vmatpush1.msra.mxu0 0.0
        %2619 = vmatprep.subr.mxu0 0.0
        %2620 = vmatpush1.msra.mxu0 0.0
        %2621 = vmatprep.subr.mxu0 0.0
        %2622 = vmatpush1.msra.mxu0 0.0
        %2623 = vmatprep.subr.mxu0 0.0
        %2624 = vmatpush1.msra.mxu0 0.0
        %2625 = vmatprep.subr.mxu0 0.0
        %2626 = vmatpush1.msra.mxu0 0.0
        %2627 = vmatprep.subr.mxu0 0.0
        %2628 = vmatpush1.msra.mxu0 0.0
        %2629 = vmatprep.subr.mxu0 0.0
        %2630 = vmatpush1.msra.mxu0 0.0
        %2631 = vmatprep.subr.mxu0 0.0
        %2632 = vmatpush1.msra.mxu0 0.0
        %2633 = vmatprep.subr.mxu0 0.0
        %2634 = vmatpush1.msra.mxu0 0.0
        %2635 = vmatprep.subr.mxu0 0.0
        %2636 = vmatpush1.msra.mxu0 0.0
        %2637 = vmatprep.mubr.f32.mxu0 0.0
        %2638 = vmatmul.mubr.f32.gmra.mrb[0].mxu0 %v2571
        %v2639 = vpop.f32.mrb[0].mxu0
        %v2640 = vadd.f32 %v2569, %v2639
        %v2641 = vpop.f32.mrb[0].mxu0
        %2642 = vdwg.mxu0
        %v2643 = vadd.f32 %v1703, %v2640
        %v2644 = vmul.f32 %v2643, %v1701
        %2645 = vmatprep.subr.mxu0 0.0
        %2646 = vmatpush1.msra.mxu0 %v2644
        %2647 = vmatprep.subr.mxu0 0.0
        %2648 = vmatpush1.msra.mxu0 0.0
        %2649 = vmatprep.subr.mxu0 0.0
        %2650 = vmatpush1.msra.mxu0 0.0
        %2651 = vmatprep.subr.mxu0 0.0
        %2652 = vmatpush1.msra.mxu0 0.0
        %2653 = vmatprep.subr.mxu0 0.0
        %2654 = vmatpush1.msra.mxu0 0.0
        %2655 = vmatprep.subr.mxu0 0.0
        %2656 = vmatpush1.msra.mxu0 0.0
        %2657 = vmatprep.subr.mxu0 0.0
        %2658 = vmatpush1.msra.mxu0 0.0
        %2659 = vmatprep.subr.mxu0 0.0
        %2660 = vmatpush1.msra.mxu0 0.0
        %2661 = vmatprep.subr.mxu0 0.0
        %2662 = vmatpush1.msra.mxu0 0.0
        %2663 = vmatprep.subr.mxu0 0.0
        %2664 = vmatpush1.msra.mxu0 0.0
        %2665 = vmatprep.subr.mxu0 0.0
        %2666 = vmatpush1.msra.mxu0 0.0
        %2667 = vmatprep.subr.mxu0 0.0
        %2668 = vmatpush1.msra.mxu0 0.0
        %2669 = vmatprep.subr.mxu0 0.0
        %2670 = vmatpush1.msra.mxu0 0.0
        %2671 = vmatprep.subr.mxu0 0.0
        %2672 = vmatpush1.msra.mxu0 0.0
        %2673 = vmatprep.subr.mxu0 0.0
        %2674 = vmatpush1.msra.mxu0 0.0
        %2675 = vmatprep.subr.mxu0 0.0
        %2676 = vmatpush1.msra.mxu0 0.0
        %2677 = vmatprep.subr.mxu0 0.0
        %2678 = vmatpush1.msra.mxu0 0.0
        %2679 = vmatprep.subr.mxu0 0.0
        %2680 = vmatpush1.msra.mxu0 0.0
        %2681 = vmatprep.subr.mxu0 0.0
        %2682 = vmatpush1.msra.mxu0 0.0
        %2683 = vmatprep.subr.mxu0 0.0
        %2684 = vmatpush1.msra.mxu0 0.0
        %2685 = vmatprep.subr.mxu0 0.0
        %2686 = vmatpush1.msra.mxu0 0.0
        %2687 = vmatprep.subr.mxu0 0.0
        %2688 = vmatpush1.msra.mxu0 0.0
        %2689 = vmatprep.subr.mxu0 0.0
        %2690 = vmatpush1.msra.mxu0 0.0
        %2691 = vmatprep.subr.mxu0 0.0
        %2692 = vmatpush1.msra.mxu0 0.0
        %2693 = vmatprep.subr.mxu0 0.0
        %2694 = vmatpush1.msra.mxu0 0.0
        %2695 = vmatprep.subr.mxu0 0.0
        %2696 = vmatpush1.msra.mxu0 0.0
        %2697 = vmatprep.subr.mxu0 0.0
        %2698 = vmatpush1.msra.mxu0 0.0
        %2699 = vmatprep.subr.mxu0 0.0
        %2700 = vmatpush1.msra.mxu0 0.0
        %2701 = vmatprep.subr.mxu0 0.0
        %2702 = vmatpush1.msra.mxu0 0.0
        %2703 = vmatprep.subr.mxu0 0.0
        %2704 = vmatpush1.msra.mxu0 0.0
        %2705 = vmatprep.subr.mxu0 0.0
        %2706 = vmatpush1.msra.mxu0 0.0
        %2707 = vmatprep.subr.mxu0 0.0
        %2708 = vmatpush1.msra.mxu0 0.0
        %2709 = vmatprep.mubr.f32.mxu0 0.0
        %2710 = vmatmul.mubr.f32.gmra.mrb[0].mxu0 %v402
        %v2711 = vpop.f32.mrb[0].mxu0
        %v2712 = vadd.f32 0.0, %v2711
        %v2713 = vpop.f32.mrb[0].mxu0
        %2714 = vmatprep.mubr.f32.mxu0 0.0
        %2715 = vmatmul.mubr.f32.gmra.mrb[0].mxu0 %v405
        %v2716 = vpop.f32.mrb[0].mxu0
        %v2717 = vadd.f32 0.0, %v2716
        %v2718 = vpop.f32.mrb[0].mxu0
        %2719 = vmatprep.mubr.f32.mxu0 0.0
        %2720 = vmatmul.mubr.f32.gmra.mrb[0].mxu0 %v408
        %v2721 = vpop.f32.mrb[0].mxu0
        %v2722 = vadd.f32 0.0, %v2721
        %v2723 = vpop.f32.mrb[0].mxu0
        %2724 = vmatprep.mubr.f32.mxu0 0.0
        %2725 = vmatmul.mubr.f32.gmra.mrb[0].mxu0 %v411
        %v2726 = vpop.f32.mrb[0].mxu0
        %v2727 = vadd.f32 0.0, %v2726
        %v2728 = vpop.f32.mrb[0].mxu0
        %2729 = vmatprep.mubr.f32.mxu0 0.0
        %2730 = vmatmul.mubr.f32.gmra.mrb[0].mxu0 %v414
        %v2731 = vpop.f32.mrb[0].mxu0
        %v2732 = vadd.f32 0.0, %v2731
        %v2733 = vpop.f32.mrb[0].mxu0
        %2734 = vmatprep.mubr.f32.mxu0 0.0
        %2735 = vmatmul.mubr.f32.gmra.mrb[0].mxu0 %v417
        %v2736 = vpop.f32.mrb[0].mxu0
        %v2737 = vadd.f32 0.0, %v2736
        %v2738 = vpop.f32.mrb[0].mxu0
        %2739 = vmatprep.mubr.f32.mxu0 0.0
        %2740 = vmatmul.mubr.f32.gmra.mrb[0].mxu0 %v420
        %v2741 = vpop.f32.mrb[0].mxu0
        %v2742 = vadd.f32 0.0, %v2741
        %v2743 = vpop.f32.mrb[0].mxu0
        %2744 = vmatprep.mubr.f32.mxu0 0.0
        %2745 = vmatmul.mubr.f32.gmra.mrb[0].mxu0 %v423
        %v2746 = vpop.f32.mrb[0].mxu0
        %v2747 = vadd.f32 0.0, %v2746
        %v2748 = vpop.f32.mrb[0].mxu0
        %2749 = vmatprep.mubr.f32.mxu0 0.0
        %2750 = vmatmul.mubr.f32.gmra.mrb[0].mxu0 %v426
        %v2751 = vpop.f32.mrb[0].mxu0
        %v2752 = vadd.f32 0.0, %v2751
        %v2753 = vpop.f32.mrb[0].mxu0
        %2754 = vmatprep.mubr.f32.mxu0 0.0
        %2755 = vmatmul.mubr.f32.gmra.mrb[0].mxu0 %v429
        %v2756 = vpop.f32.mrb[0].mxu0
        %v2757 = vadd.f32 0.0, %v2756
        %v2758 = vpop.f32.mrb[0].mxu0
        %2759 = vmatprep.mubr.f32.mxu0 0.0
        %2760 = vmatmul.mubr.f32.gmra.mrb[0].mxu0 %v432
        %v2761 = vpop.f32.mrb[0].mxu0
        %v2762 = vadd.f32 0.0, %v2761
        %v2763 = vpop.f32.mrb[0].mxu0
        %2764 = vmatprep.mubr.f32.mxu0 0.0
        %2765 = vmatmul.mubr.f32.gmra.mrb[0].mxu0 %v435
        %v2766 = vpop.f32.mrb[0].mxu0
        %v2767 = vadd.f32 0.0, %v2766
        %v2768 = vpop.f32.mrb[0].mxu0
        %2769 = vmatprep.mubr.f32.mxu0 0.0
        %2770 = vmatmul.mubr.f32.gmra.mrb[0].mxu0 %v438
        %v2771 = vpop.f32.mrb[0].mxu0
        %v2772 = vadd.f32 0.0, %v2771
        %v2773 = vpop.f32.mrb[0].mxu0
        %2774 = vmatprep.mubr.f32.mxu0 0.0
        %2775 = vmatmul.mubr.f32.gmra.mrb[0].mxu0 %v441
        %v2776 = vpop.f32.mrb[0].mxu0
        %v2777 = vadd.f32 0.0, %v2776
        %v2778 = vpop.f32.mrb[0].mxu0
        %2779 = vdwg.mxu0
        %2787 = vrot.lane.b32.xlu0 %v2747, 32
        %v2788 = vpop.permute.xlu0 %2787
        %2789 = vrot.lane.b32.xlu0 %v2752, 32
        %v2790 = vpop.permute.xlu0 %2789
        %2791 = vrot.lane.b32.xlu0 %v2757, 32
        %v2792 = vpop.permute.xlu0 %2791
        %2793 = vrot.lane.b32.xlu0 %v2762, 32
        %v2794 = vpop.permute.xlu0 %2793
        %2795 = vrot.lane.b32.xlu0 %v2767, 32
        %v2796 = vpop.permute.xlu0 %2795
        %2797 = vrot.lane.b32.xlu0 %v2772, 32
        %v2798 = vpop.permute.xlu0 %2797
        %2799 = vrot.lane.b32.xlu0 %v2777, 32
        %v2800 = vpop.permute.xlu0 %2799
        %v2808 = vsel %vm854, %v2712, %v2788
        %v2809 = vsel %vm854, %v2717, %v2790
        %v2810 = vsel %vm854, %v2722, %v2792
        %v2811 = vsel %vm854, %v2727, %v2794
        %v2812 = vsel %vm854, %v2732, %v2796
        %v2813 = vsel %vm854, %v2737, %v2798
        %v2814 = vsel %vm854, %v2742, %v2800
        %s2815 = scalar_lea.vmem %s2, 256
        %v2816 = vld [vmem:[%s2815] sm:$0xff]
        %v2817 = vld [vmem:[%s2815 + $0x8] sm:$0xff]
        %v2818 = vld [vmem:[%s2815 + $0x10] sm:$0xff]
        %v2819 = vld [vmem:[%s2815 + $0x18] sm:$0xff]
        %v2820 = vld [vmem:[%s2815 + $0x20] sm:$0xff]
        %v2821 = vld [vmem:[%s2815 + $0x28] sm:$0xff]
        %v2822 = vld [vmem:[%s2815 + $0x30] sm:$0xff]
        %v2823 = vld [vmem:[%s2815 + $0x38] sm:$0xff]
        %v2824 = vld [vmem:[%s4 + $0x10] sm:$0x1]
        %v2825 = vlaneseq
        %v2826 = vshrl.u32 %v2825, 7
        %v2827 = vsub.s32 0, %v2826
        %v2828 = vrot.slane %v2824, %v2827
        %v2829 = vmul.f32 %v595, %v2828
        %v2830 = vmul.f32 %v598, %v2828
        %v2831 = vmul.f32 %v601, %v2828
        %v2832 = vmul.f32 %v604, %v2828
        %v2833 = vmul.f32 %v607, %v2828
        %v2834 = vmul.f32 %v610, %v2828
        %v2835 = vmul.f32 %v613, %v2828
        %v2837 = vsel %vm882, %v2808, 0
        %v2840 = vsel %vm882, %v2809, 0
        %v2843 = vsel %vm882, %v2810, 0
        %v2846 = vsel %vm882, %v2811, 0
        %v2849 = vsel %vm882, %v2812, 0
        %v2852 = vsel %vm882, %v2813, 0
        %v2855 = vsel %vm882, %v2814, 0
        %2857 = vmatprep.subr.mxu0 0.0
        %2858 = vmatpush1.msra.mxu0 %v2816
        %2859 = vmatprep.subr.mxu0 0.0
        %2860 = vmatpush1.msra.mxu0 %v2817
        %2861 = vmatprep.subr.mxu0 0.0
        %2862 = vmatpush1.msra.mxu0 %v2818
        %2863 = vmatprep.subr.mxu0 0.0
        %2864 = vmatpush1.msra.mxu0 %v2819
        %2865 = vmatprep.subr.mxu0 0.0
        %2866 = vmatpush1.msra.mxu0 %v2820
        %2867 = vmatprep.subr.mxu0 0.0
        %2868 = vmatpush1.msra.mxu0 %v2821
        %2869 = vmatprep.subr.mxu0 0.0
        %2870 = vmatpush1.msra.mxu0 %v2822
        %2871 = vmatprep.subr.mxu0 0.0
        %2872 = vmatpush1.msra.mxu0 %v2823
        %2873 = vmatprep.subr.mxu0 0.0
        %2874 = vmatpush1.msra.mxu0 0.0
        %2875 = vmatprep.subr.mxu0 0.0
        %2876 = vmatpush1.msra.mxu0 0.0
        %2877 = vmatprep.subr.mxu0 0.0
        %2878 = vmatpush1.msra.mxu0 0.0
        %2879 = vmatprep.subr.mxu0 0.0
        %2880 = vmatpush1.msra.mxu0 0.0
        %2881 = vmatprep.subr.mxu0 0.0
        %2882 = vmatpush1.msra.mxu0 0.0
        %2883 = vmatprep.subr.mxu0 0.0
        %2884 = vmatpush1.msra.mxu0 0.0
        %2885 = vmatprep.subr.mxu0 0.0
        %2886 = vmatpush1.msra.mxu0 0.0
        %2887 = vmatprep.subr.mxu0 0.0
        %2888 = vmatpush1.msra.mxu0 0.0
        %2889 = vmatprep.subr.mxu0 0.0
        %2890 = vmatpush1.msra.mxu0 0.0
        %2891 = vmatprep.subr.mxu0 0.0
        %2892 = vmatpush1.msra.mxu0 0.0
        %2893 = vmatprep.subr.mxu0 0.0
        %2894 = vmatpush1.msra.mxu0 0.0
        %2895 = vmatprep.subr.mxu0 0.0
        %2896 = vmatpush1.msra.mxu0 0.0
        %2897 = vmatprep.subr.mxu0 0.0
        %2898 = vmatpush1.msra.mxu0 0.0
        %2899 = vmatprep.subr.mxu0 0.0
        %2900 = vmatpush1.msra.mxu0 0.0
        %2901 = vmatprep.subr.mxu0 0.0
        %2902 = vmatpush1.msra.mxu0 0.0
        %2903 = vmatprep.subr.mxu0 0.0
        %2904 = vmatpush1.msra.mxu0 0.0
        %2905 = vmatprep.subr.mxu0 0.0
        %2906 = vmatpush1.msra.mxu0 0.0
        %2907 = vmatprep.subr.mxu0 0.0
        %2908 = vmatpush1.msra.mxu0 0.0
        %2909 = vmatprep.subr.mxu0 0.0
        %2910 = vmatpush1.msra.mxu0 0.0
        %2911 = vmatprep.subr.mxu0 0.0
        %2912 = vmatpush1.msra.mxu0 0.0
        %2913 = vmatprep.subr.mxu0 0.0
        %2914 = vmatpush1.msra.mxu0 0.0
        %2915 = vmatprep.subr.mxu0 0.0
        %2916 = vmatpush1.msra.mxu0 0.0
        %2917 = vmatprep.subr.mxu0 0.0
        %2918 = vmatpush1.msra.mxu0 0.0
        %2919 = vmatprep.subr.mxu0 0.0
        %2920 = vmatpush1.msra.mxu0 0.0
        %2921 = vmatprep.mubr.f32.mxu0 0.0
        %2922 = vmatmul.mubr.f32.gmra.mrb[0].mxu0 %v2837
        %v2923 = vpop.f32.mrb[0].mxu0
        %v2924 = vadd.f32 %v2829, %v2923
        %v2925 = vpop.f32.mrb[0].mxu0
        %2926 = vmatprep.mubr.f32.mxu0 0.0
        %2927 = vmatmul.mubr.f32.gmra.mrb[0].mxu0 %v2840
        %v2928 = vpop.f32.mrb[0].mxu0
        %v2929 = vadd.f32 %v2830, %v2928
        %v2930 = vpop.f32.mrb[0].mxu0
        %2931 = vmatprep.mubr.f32.mxu0 0.0
        %2932 = vmatmul.mubr.f32.gmra.mrb[0].mxu0 %v2843
        %v2933 = vpop.f32.mrb[0].mxu0
        %v2934 = vadd.f32 %v2831, %v2933
        %v2935 = vpop.f32.mrb[0].mxu0
        %2936 = vmatprep.mubr.f32.mxu0 0.0
        %2937 = vmatmul.mubr.f32.gmra.mrb[0].mxu0 %v2846
        %v2938 = vpop.f32.mrb[0].mxu0
        %v2939 = vadd.f32 %v2832, %v2938
        %v2940 = vpop.f32.mrb[0].mxu0
        %2941 = vmatprep.mubr.f32.mxu0 0.0
        %2942 = vmatmul.mubr.f32.gmra.mrb[0].mxu0 %v2849
        %v2943 = vpop.f32.mrb[0].mxu0
        %v2944 = vadd.f32 %v2833, %v2943
        %v2945 = vpop.f32.mrb[0].mxu0
        %2946 = vmatprep.mubr.f32.mxu0 0.0
        %2947 = vmatmul.mubr.f32.gmra.mrb[0].mxu0 %v2852
        %v2948 = vpop.f32.mrb[0].mxu0
        %v2949 = vadd.f32 %v2834, %v2948
        %v2950 = vpop.f32.mrb[0].mxu0
        %2951 = vmatprep.mubr.f32.mxu0 0.0
        %2952 = vmatmul.mubr.f32.gmra.mrb[0].mxu0 %v2855
        %v2953 = vpop.f32.mrb[0].mxu0
        %v2954 = vadd.f32 %v2835, %v2953
        %v2955 = vpop.f32.mrb[0].mxu0
        %2956 = vdwg.mxu0
        %v2957 = vld [vmem:[%s4 + $0x11] sm:$0x1]
        %v2958 = vlaneseq
        %v2959 = vshrl.u32 %v2958, 7
        %v2960 = vsub.s32 0, %v2959
        %v2961 = vrot.slane %v2957, %v2960
        %v2962 = vmul.f32 %v1008, %v2961
        %v2963 = vmul.f32 %v1013, %v2961
        %v2964 = vmul.f32 %v1018, %v2961
        %v2965 = vmul.f32 %v1023, %v2961
        %v2966 = vmul.f32 %v1028, %v2961
        %v2967 = vmul.f32 %v1033, %v2961
        %v2968 = vmul.f32 %v1038, %v2961
        %v2969 = vadd.f32 %v2924, %v2962
        %v2970 = vadd.f32 %v2929, %v2963
        %v2971 = vadd.f32 %v2934, %v2964
        %v2972 = vadd.f32 %v2939, %v2965
        %v2973 = vadd.f32 %v2944, %v2966
        %v2974 = vadd.f32 %v2949, %v2967
        %v2975 = vadd.f32 %v2954, %v2968
        %v2976 = vld [vmem:[%s4 + $0x12] sm:$0x1]
        %v2977 = vlaneseq
        %v2978 = vshrl.u32 %v2977, 7
        %v2979 = vsub.s32 0, %v2978
        %v2980 = vrot.slane %v2976, %v2979
        %v2981 = vadd.f32 %v2969, %v2980
        %v2982 = vadd.f32 %v2970, %v2980
        %v2983 = vadd.f32 %v2971, %v2980
        %v2984 = vadd.f32 %v2972, %v2980
        %v2985 = vadd.f32 %v2973, %v2980
        %v2986 = vadd.f32 %v2974, %v2980
        %v2987 = vadd.f32 %v2975, %v2980
        %v2988 = vsub.f32 0.0, %v2981
        %v2989 = vsub.f32 0.0, %v2982
        %v2990 = vsub.f32 0.0, %v2983
        %v2991 = vsub.f32 0.0, %v2984
        %v2992 = vsub.f32 0.0, %v2985
        %v2993 = vsub.f32 0.0, %v2986
        %v2994 = vsub.f32 0.0, %v2987
        %v2995 = vmul.f32 %v2988, 1.442695
        %v2996 = vpow.pop %v2995
        %v2997 = vmul.f32 %v2989, 1.442695
        %v2998 = vpow.pop %v2997
        %v2999 = vmul.f32 %v2990, 1.442695
        %v3000 = vpow.pop %v2999
        %v3001 = vmul.f32 %v2991, 1.442695
        %v3002 = vpow.pop %v3001
        %v3003 = vmul.f32 %v2992, 1.442695
        %v3004 = vpow.pop %v3003
        %v3005 = vmul.f32 %v2993, 1.442695
        %v3006 = vpow.pop %v3005
        %v3007 = vmul.f32 %v2994, 1.442695
        %v3008 = vpow.pop %v3007
        %v3009 = vadd.f32 %v2996, 1.0
        %v3010 = vadd.f32 %v2998, 1.0
        %v3011 = vadd.f32 %v3000, 1.0
        %v3012 = vadd.f32 %v3002, 1.0
        %v3013 = vadd.f32 %v3004, 1.0
        %v3014 = vadd.f32 %v3006, 1.0
        %v3015 = vadd.f32 %v3008, 1.0
        %v3016 = vrcp.pop %v3009
        %v3017 = vrcp.pop %v3010
        %v3018 = vrcp.pop %v3011
        %v3019 = vrcp.pop %v3012
        %v3020 = vrcp.pop %v3013
        %v3021 = vrcp.pop %v3014
        %v3022 = vrcp.pop %v3015
        %v3023 = vmul.f32 %v2981, %v3016
        %v3024 = vmul.f32 %v2982, %v3017
        %v3025 = vmul.f32 %v2983, %v3018
        %v3026 = vmul.f32 %v2984, %v3019
        %v3027 = vmul.f32 %v2985, %v3020
        %v3028 = vmul.f32 %v2986, %v3021
        %v3029 = vmul.f32 %v2987, %v3022
        %s3030 = scalar_lea.vmem %s3, 128
        %v3031 = vld [vmem:[%s3030] sm:$0xff]
        %v3032 = vld [vmem:[%s3030 + $0x8] sm:$0xff]
        %v3033 = vld [vmem:[%s3030 + $0x10] sm:$0xff]
        %v3034 = vld [vmem:[%s3030 + $0x18] sm:$0xff]
        %v3035 = vld [vmem:[%s4 + $0x13] sm:$0x1]
        %v3036 = vlaneseq
        %v3037 = vshrl.u32 %v3036, 7
        %v3038 = vsub.s32 0, %v3037
        %v3039 = vrot.slane %v3035, %v3038
        %v3041 = vsel %vm854, %v3023, 0
        %v3044 = vsel %vm854, %v3024, 0
        %v3047 = vsel %vm854, %v3025, 0
        %v3050 = vsel %vm854, %v3026, 0
        %v3053 = vsel %vm854, %v3027, 0
        %v3056 = vsel %vm854, %v3028, 0
        %v3059 = vsel %vm854, %v3029, 0
        %3061 = vmatprep.subr.mxu0 0.0
        %3062 = vmatpush1.msra.mxu0 %v3031
        %3063 = vmatprep.subr.mxu0 0.0
        %3064 = vmatpush1.msra.mxu0 %v3032
        %3065 = vmatprep.subr.mxu0 0.0
        %3066 = vmatpush1.msra.mxu0 %v3033
        %3067 = vmatprep.subr.mxu0 0.0
        %3068 = vmatpush1.msra.mxu0 %v3034
        %3069 = vmatprep.subr.mxu0 0.0
        %3070 = vmatpush1.msra.mxu0 0.0
        %3071 = vmatprep.subr.mxu0 0.0
        %3072 = vmatpush1.msra.mxu0 0.0
        %3073 = vmatprep.subr.mxu0 0.0
        %3074 = vmatpush1.msra.mxu0 0.0
        %3075 = vmatprep.subr.mxu0 0.0
        %3076 = vmatpush1.msra.mxu0 0.0
        %3077 = vmatprep.subr.mxu0 0.0
        %3078 = vmatpush1.msra.mxu0 0.0
        %3079 = vmatprep.subr.mxu0 0.0
        %3080 = vmatpush1.msra.mxu0 0.0
        %3081 = vmatprep.subr.mxu0 0.0
        %3082 = vmatpush1.msra.mxu0 0.0
        %3083 = vmatprep.subr.mxu0 0.0
        %3084 = vmatpush1.msra.mxu0 0.0
        %3085 = vmatprep.subr.mxu0 0.0
        %3086 = vmatpush1.msra.mxu0 0.0
        %3087 = vmatprep.subr.mxu0 0.0
        %3088 = vmatpush1.msra.mxu0 0.0
        %3089 = vmatprep.subr.mxu0 0.0
        %3090 = vmatpush1.msra.mxu0 0.0
        %3091 = vmatprep.subr.mxu0 0.0
        %3092 = vmatpush1.msra.mxu0 0.0
        %3093 = vmatprep.subr.mxu0 0.0
        %3094 = vmatpush1.msra.mxu0 0.0
        %3095 = vmatprep.subr.mxu0 0.0
        %3096 = vmatpush1.msra.mxu0 0.0
        %3097 = vmatprep.subr.mxu0 0.0
        %3098 = vmatpush1.msra.mxu0 0.0
        %3099 = vmatprep.subr.mxu0 0.0
        %3100 = vmatpush1.msra.mxu0 0.0
        %3101 = vmatprep.subr.mxu0 0.0
        %3102 = vmatpush1.msra.mxu0 0.0
        %3103 = vmatprep.subr.mxu0 0.0
        %3104 = vmatpush1.msra.mxu0 0.0
        %3105 = vmatprep.subr.mxu0 0.0
        %3106 = vmatpush1.msra.mxu0 0.0
        %3107 = vmatprep.subr.mxu0 0.0
        %3108 = vmatpush1.msra.mxu0 0.0
        %3109 = vmatprep.subr.mxu0 0.0
        %3110 = vmatpush1.msra.mxu0 0.0
        %3111 = vmatprep.subr.mxu0 0.0
        %3112 = vmatpush1.msra.mxu0 0.0
        %3113 = vmatprep.subr.mxu0 0.0
        %3114 = vmatpush1.msra.mxu0 0.0
        %3115 = vmatprep.subr.mxu0 0.0
        %3116 = vmatpush1.msra.mxu0 0.0
        %3117 = vmatprep.subr.mxu0 0.0
        %3118 = vmatpush1.msra.mxu0 0.0
        %3119 = vmatprep.subr.mxu0 0.0
        %3120 = vmatpush1.msra.mxu0 0.0
        %3121 = vmatprep.subr.mxu0 0.0
        %3122 = vmatpush1.msra.mxu0 0.0
        %3123 = vmatprep.subr.mxu0 0.0
        %3124 = vmatpush1.msra.mxu0 0.0
        %3125 = vmatprep.mubr.f32.mxu0 0.0
        %3126 = vmatmul.mubr.f32.gmra.mrb[0].mxu0 %v3041
        %v3127 = vpop.f32.mrb[0].mxu0
        %v3128 = vadd.f32 %v3039, %v3127
        %v3129 = vpop.f32.mrb[0].mxu0
        %3130 = vmatprep.mubr.f32.mxu0 0.0
        %3131 = vmatmul.mubr.f32.gmra.mrb[0].mxu0 %v3044
        %v3132 = vpop.f32.mrb[0].mxu0
        %v3133 = vadd.f32 %v3039, %v3132
        %v3134 = vpop.f32.mrb[0].mxu0
        %3135 = vmatprep.mubr.f32.mxu0 0.0
        %3136 = vmatmul.mubr.f32.gmra.mrb[0].mxu0 %v3047
        %v3137 = vpop.f32.mrb[0].mxu0
        %v3138 = vadd.f32 %v3039, %v3137
        %v3139 = vpop.f32.mrb[0].mxu0
        %3140 = vmatprep.mubr.f32.mxu0 0.0
        %3141 = vmatmul.mubr.f32.gmra.mrb[0].mxu0 %v3050
        %v3142 = vpop.f32.mrb[0].mxu0
        %v3143 = vadd.f32 %v3039, %v3142
        %v3144 = vpop.f32.mrb[0].mxu0
        %3145 = vmatprep.mubr.f32.mxu0 0.0
        %3146 = vmatmul.mubr.f32.gmra.mrb[0].mxu0 %v3053
        %v3147 = vpop.f32.mrb[0].mxu0
        %v3148 = vadd.f32 %v3039, %v3147
        %v3149 = vpop.f32.mrb[0].mxu0
        %3150 = vmatprep.mubr.f32.mxu0 0.0
        %3151 = vmatmul.mubr.f32.gmra.mrb[0].mxu0 %v3056
        %v3152 = vpop.f32.mrb[0].mxu0
        %v3153 = vadd.f32 %v3039, %v3152
        %v3154 = vpop.f32.mrb[0].mxu0
        %3155 = vmatprep.mubr.f32.mxu0 0.0
        %3156 = vmatmul.mubr.f32.gmra.mrb[0].mxu0 %v3059
        %v3157 = vpop.f32.mrb[0].mxu0
        %v3158 = vadd.f32 %v3039, %v3157
        %v3159 = vpop.f32.mrb[0].mxu0
        %3160 = vdwg.mxu0
        %v3161 = vsub.f32 0.0, %v3128
        %v3162 = vsub.f32 0.0, %v3133
        %v3163 = vsub.f32 0.0, %v3138
        %v3164 = vsub.f32 0.0, %v3143
        %v3165 = vsub.f32 0.0, %v3148
        %v3166 = vsub.f32 0.0, %v3153
        %v3167 = vsub.f32 0.0, %v3158
        %v3168 = vmul.f32 %v3161, 1.442695
        %v3169 = vpow.pop %v3168
        %v3170 = vmul.f32 %v3162, 1.442695
        %v3171 = vpow.pop %v3170
        %v3172 = vmul.f32 %v3163, 1.442695
        %v3173 = vpow.pop %v3172
        %v3174 = vmul.f32 %v3164, 1.442695
        %v3175 = vpow.pop %v3174
        %v3176 = vmul.f32 %v3165, 1.442695
        %v3177 = vpow.pop %v3176
        %v3178 = vmul.f32 %v3166, 1.442695
        %v3179 = vpow.pop %v3178
        %v3180 = vmul.f32 %v3167, 1.442695
        %v3181 = vpow.pop %v3180
        %v3182 = vadd.f32 %v3169, 1.0
        %v3183 = vadd.f32 %v3171, 1.0
        %v3184 = vadd.f32 %v3173, 1.0
        %v3185 = vadd.f32 %v3175, 1.0
        %v3186 = vadd.f32 %v3177, 1.0
        %v3187 = vadd.f32 %v3179, 1.0
        %v3188 = vadd.f32 %v3181, 1.0
        %v3189 = vrcp.pop %v3182
        %v3190 = vrcp.pop %v3183
        %v3191 = vrcp.pop %v3184
        %v3192 = vrcp.pop %v3185
        %v3193 = vrcp.pop %v3186
        %v3194 = vrcp.pop %v3187
        %v3195 = vrcp.pop %v3188
        %v3196 = vmul.f32 %v3128, %v3189
        %v3197 = vmul.f32 %v3133, %v3190
        %v3198 = vmul.f32 %v3138, %v3191
        %v3199 = vmul.f32 %v3143, %v3192
        %v3200 = vmul.f32 %v3148, %v3193
        %v3201 = vmul.f32 %v3153, %v3194
        %v3202 = vmul.f32 %v3158, %v3195
        %v3203 = vld [vmem:[%s4 + $0x14] sm:$0x1]
        %v3204 = vlaneseq
        %v3205 = vshrl.u32 %v3204, 7
        %v3206 = vsub.s32 0, %v3205
        %v3207 = vrot.slane %v3203, %v3206
        %v3208 = vmul.f32 %v3196, %v3207
        %v3209 = vmul.f32 %v3197, %v3207
        %v3210 = vmul.f32 %v3198, %v3207
        %v3211 = vmul.f32 %v3199, %v3207
        %v3212 = vmul.f32 %v3200, %v3207
        %v3213 = vmul.f32 %v3201, %v3207
        %v3214 = vmul.f32 %v3202, %v3207
        %v3215 = vsel %vm854, %v3208, 0.0
        %3216 = vadd.xlane.f32.xlu0 %v3215
        %v3217 = vpop.xlane.xlu0 %3216
        %v3218 = vsel %vm854, %v3209, 0.0
        %3219 = vadd.xlane.f32.xlu0 %v3218
        %v3220 = vpop.xlane.xlu0 %3219
        %v3221 = vsel %vm854, %v3210, 0.0
        %3222 = vadd.xlane.f32.xlu0 %v3221
        %v3223 = vpop.xlane.xlu0 %3222
        %v3224 = vsel %vm854, %v3211, 0.0
        %3225 = vadd.xlane.f32.xlu0 %v3224
        %v3226 = vpop.xlane.xlu0 %3225
        %v3227 = vsel %vm854, %v3212, 0.0
        %3228 = vadd.xlane.f32.xlu0 %v3227
        %v3229 = vpop.xlane.xlu0 %3228
        %v3230 = vsel %vm854, %v3213, 0.0
        %3231 = vadd.xlane.f32.xlu0 %v3230
        %v3232 = vpop.xlane.xlu0 %3231
        %v3233 = vsel %vm854, %v3214, 0.0
        %3234 = vadd.xlane.f32.xlu0 %v3233
        %v3235 = vpop.xlane.xlu0 %3234
        %v3236 = vmul.f32 %v684, %v3217
        %v3237 = vmul.f32 %v685, %v3220
        %v3238 = vmul.f32 %v686, %v3223
        %v3239 = vmul.f32 %v687, %v3226
        %v3240 = vmul.f32 %v688, %v3229
        %v3241 = vmul.f32 %v689, %v3232
        %v3242 = vmul.f32 %v690, %v3235
        %v3243 = vmul.f32 %v3236, %v1408
        %v3244 = vmul.f32 %v3237, %v1412
        %v3245 = vmul.f32 %v3238, %v1416
        %v3246 = vmul.f32 %v3239, %v1420
        %v3247 = vmul.f32 %v3240, %v1424
        %v3248 = vmul.f32 %v3241, %v1428
        %v3249 = vmul.f32 %v3242, %v1432
        %3250 = vmatprep.subr.mxu0 0.0
        %3251 = vmatpush1.msra.mxu0 %v3243
        %3252 = vmatprep.subr.mxu0 0.0
        %3253 = vmatpush1.msra.mxu0 %v3244
        %3254 = vmatprep.subr.mxu0 0.0
        %3255 = vmatpush1.msra.mxu0 %v3245
        %3256 = vmatprep.subr.mxu0 0.0
        %3257 = vmatpush1.msra.mxu0 %v3246
        %3258 = vmatprep.subr.mxu0 0.0
        %3259 = vmatpush1.msra.mxu0 %v3247
        %3260 = vmatprep.subr.mxu0 0.0
        %3261 = vmatpush1.msra.mxu0 %v3248
        %3262 = vmatprep.subr.mxu0 0.0
        %3263 = vmatpush1.msra.mxu0 %v3249
        %3264 = vmatprep.subr.mxu0 0.0
        %3265 = vmatpush1.msra.mxu0 0.0
        %3266 = vmatprep.subr.mxu0 0.0
        %3267 = vmatpush1.msra.mxu0 0.0
        %3268 = vmatprep.subr.mxu0 0.0
        %3269 = vmatpush1.msra.mxu0 0.0
        %3270 = vmatprep.subr.mxu0 0.0
        %3271 = vmatpush1.msra.mxu0 0.0
        %3272 = vmatprep.subr.mxu0 0.0
        %3273 = vmatpush1.msra.mxu0 0.0
        %3274 = vmatprep.subr.mxu0 0.0
        %3275 = vmatpush1.msra.mxu0 0.0
        %3276 = vmatprep.subr.mxu0 0.0
        %3277 = vmatpush1.msra.mxu0 0.0
        %3278 = vmatprep.subr.mxu0 0.0
        %3279 = vmatpush1.msra.mxu0 0.0
        %3280 = vmatprep.subr.mxu0 0.0
        %3281 = vmatpush1.msra.mxu0 0.0
        %3282 = vmatprep.subr.mxu0 0.0
        %3283 = vmatpush1.msra.mxu0 0.0
        %3284 = vmatprep.subr.mxu0 0.0
        %3285 = vmatpush1.msra.mxu0 0.0
        %3286 = vmatprep.subr.mxu0 0.0
        %3287 = vmatpush1.msra.mxu0 0.0
        %3288 = vmatprep.subr.mxu0 0.0
        %3289 = vmatpush1.msra.mxu0 0.0
        %3290 = vmatprep.subr.mxu0 0.0
        %3291 = vmatpush1.msra.mxu0 0.0
        %3292 = vmatprep.subr.mxu0 0.0
        %3293 = vmatpush1.msra.mxu0 0.0
        %3294 = vmatprep.subr.mxu0 0.0
        %3295 = vmatpush1.msra.mxu0 0.0
        %3296 = vmatprep.subr.mxu0 0.0
        %3297 = vmatpush1.msra.mxu0 0.0
        %3298 = vmatprep.subr.mxu0 0.0
        %3299 = vmatpush1.msra.mxu0 0.0
        %3300 = vmatprep.subr.mxu0 0.0
        %3301 = vmatpush1.msra.mxu0 0.0
        %3302 = vmatprep.subr.mxu0 0.0
        %3303 = vmatpush1.msra.mxu0 0.0
        %3304 = vmatprep.subr.mxu0 0.0
        %3305 = vmatpush1.msra.mxu0 0.0
        %3306 = vmatprep.subr.mxu0 0.0
        %3307 = vmatpush1.msra.mxu0 0.0
        %3308 = vmatprep.subr.mxu0 0.0
        %3309 = vmatpush1.msra.mxu0 0.0
        %3310 = vmatprep.subr.mxu0 0.0
        %3311 = vmatpush1.msra.mxu0 0.0
        %3312 = vmatprep.subr.mxu0 0.0
        %3313 = vmatpush1.msra.mxu0 0.0
        %3314 = vmatprep.mubr.f32.mxu0 0.0
        %3315 = vmatmul.mubr.f32.gmra.mrb[0].mxu0 %v1443
        %v3316 = vpop.f32.mrb[0].mxu0
        %v3317 = vadd.f32 0.0, %v3316
        %v3318 = vpop.f32.mrb[0].mxu0
        %3319 = vdwg.mxu0
        %v3320 = vmul.f32 %v3317, 0.01
        %3321 = vset.pattern.permute.xlu0 4
        %3322 = vperm.xlu0 %3321, %v377
        %v3323 = vpop.permute.xlu0 %3322
        %v3325 = vmul.f32 %v3320, %v3323
        %v3326 = vadd.f32 %v377, %v3325
        %v3327 = vmul.f32 %v3326, %v1701
        %3328 = vst.msk [vmem:[%s375] sm:$0xff] %vm592, %v3327
        %v3329 = vmul.f32 %v2644, %v1701
        %3330 = vst.msk [vmem:[%s352] sm:$0xff] %vm854, %v3329
        %s3331 = sand.u32 %s215, 1
        %s3332 = scalar_lea.sflag [#allocation3], %s3331
        %s3333 = sand.u32 %s215, 1
        %s3334 = smul.addr %s3333, 8
        %s3335 = scalar_lea.vmem [#allocation2], %s3334
        %p3336 = scmp.lt.s32.totalorder %s24, 3
        %s3337 = scalar_select %p3336, %s24, 3
        %s3338 = smul.addr %s3337, 8
        %s3339 = scalar_lea.vmem %s9, %s3338
        // Predicated region
        $region53: #{tpu_custom_call.1} parent=51 // pred_check
          %p3340 = pneg %p225
        $region54: #{tpu_custom_call.1} parent=51 // pred_check_branch
          %3342 = sbr.rel (%p3340) target = $region56
        $region55: #{tpu_custom_call.1} parent=51 // pred_region
          %s3344 = ssub.s32 128, 128
          %3345 = vsyncadd %s3332, %s3344
          %s3346 = smul.addr %s24, 128
          %s3347 = scalar_lea.hbm %s8, %s3346
          %s3349 = sshll.u32 %s3335, 4
          %s3350 = int_to_ptr.vmem [resolvable:$true] %s3349
          %3352 = dma.vmem_to_hbm [thread:$0]  %s3350, 128, %s3347, %s3332
        $region56: #{tpu_custom_call.1} parent=51 // pred_fallthru
          _
        // Predicated region
        $region57: #{tpu_custom_call.1} parent=51 // pred_check
          %p3353 = pneg %p251
        $region58: #{tpu_custom_call.1} parent=51 // pred_check_branch
          %3355 = sbr.rel (%p3353) target = $region60
        $region59: #{tpu_custom_call.1} parent=51 // pred_region
          _
        $region60: #{tpu_custom_call.1} parent=51 // pred_fallthru
          _
      $region52: #{tpu_custom_call.1} parent=5 // pred_fallthru
        _
      %p3356 = scmp.le.s32.totalorder 2, %s19
      // Predicated region
      $region61: #{tpu_custom_call.1} parent=5 // pred_check
        %p3357 = pneg %p3356
      $region62: #{tpu_custom_call.1} parent=5 // pred_check_branch
        %3359 = sbr.rel (%p3357) target = $region64
      $region63: #{tpu_custom_call.1} parent=5 // pred_region
        %s3360 = ssub.s32 %s19, 2
        // Predicated region
        $region65: #{tpu_custom_call.1} parent=63 // pred_check
          %p3361 = pneg %p231
        $region66: #{tpu_custom_call.1} parent=63 // pred_check_branch
          %3363 = sbr.rel (%p3361) target = $region68
        $region67: #{tpu_custom_call.1} parent=63 // pred_region
          %s3364 = sand.u32 %s216, 1
          %s3365 = scalar_lea.sflag [#allocation3], %s3364
          %s3366 = sand.u32 %s216, 1
          %s3367 = smul.addr %s3366, 8
          %s3368 = scalar_lea.vmem [#allocation2], %s3367
          %3369 = dma.done %s3365, 128
        $region68: #{tpu_custom_call.1} parent=63 // pred_fallthru
          _
        // Predicated region
        $region69: #{tpu_custom_call.1} parent=63 // pred_check
          %p3370 = pneg %p257
        $region70: #{tpu_custom_call.1} parent=63 // pred_check_branch
          %3372 = sbr.rel (%p3370) target = $region72
        $region71: #{tpu_custom_call.1} parent=63 // pred_region
          %p3373 = scmp.lt.s32.totalorder %s25, 3
          %s3374 = scalar_select %p3373, %s25, 3
          %s3375 = smul.addr %s3374, 8
          %s3376 = scalar_lea.vmem %s9, %s3375
        $region72: #{tpu_custom_call.1} parent=63 // pred_fallthru
          _
      $region64: #{tpu_custom_call.1} parent=5 // pred_fallthru
        _
    $region6: #{tpu_custom_call.1} parent=1 // loop_footer
      %s23 = sadd.s32 1, %s19
    $region7: #{tpu_custom_call.1} parent=1 // loop_footer_branch
      %18 = sbr.rel target = $region3
    $region8: #{tpu_custom_call.1} parent=1 // loop_exit
      _
    %3377 = vsyncpa [#allocation3], 1
    %s3378 = scalar_lea.sflag [#allocation3], 1
    %3379 = vsyncpa %s3378, 1

</llo_original>
